<compile_context>
chip_gen: v7x
topology: tpu7x:2x2x1
jax: 0.10.0
libtpu: 0.0.40
codegen_flags: <defaults>
</compile_context>

<pallas_src>
import functools
import math

import jax
import jax.numpy as jnp
import numpy as np
from jax.experimental import pallas as pl
from jax.experimental.pallas import tpu as pltpu


# ----------------------------- Pallas kernel ------------------------------ #

def _layer_norm(x, gamma, beta, eps=1e-5):
    mu = jnp.mean(x, axis=-1, keepdims=True)
    var = jnp.mean((x - mu) ** 2, axis=-1, keepdims=True)   # biased var (PyTorch)
    return (x - mu) * jax.lax.rsqrt(var + eps) * gamma + beta


def decoder_layer_kernel(
    x_ref,       # (B*S, D)      activations, batch folded into rows (f32)
    w_qkv_ref,   # (2, D, 3D)    [0]=self-attn, [1]=cross-attn, cols = [Wq|Wk|Wv]
                 #               (Q columns pre-scaled by 1/sqrt(d_k))
    b_qkv_ref,   # (2, 1, 3D)    (Q part pre-scaled)
    w_o_ref,     # (2, D, D)     output projections
    w_fc1_ref,   # (D, d_ff)     bfloat16
    b_fc1_ref,   # (1, d_ff)
    w_fc2_ref,   # (d_ff, D)     bfloat16
    small_ref,   # (9, D): [b_sa_o, b_ca_o, b_fc2, g1, be1, g2, be2, g3, be3]
    o_ref,       # (B*S, D)
    *, batch, num_heads,
):
    x = x_ref[...]                       # (BS, D)
    BS, D = x.shape
    S = BS // batch
    dk = D // num_heads

    # Hoisted small parameters: one load, reused everywhere (no re-broadcasts).
    small = small_ref[...]
    b_sa_o = small[0:1]
    b_ca_o = small[1:2]
    b_fc2 = small[2:3]
    g1, be1 = small[3:4], small[4:5]
    g2, be2 = small[5:6], small[6:7]
    g3, be3 = small[7:8], small[8:9]

    def attention_core(q_all, kv_all, w_o, b_o):
        # q_all: (BS, D) projected queries (scale already folded into W_q/b_q)
        # kv_all: (BS, 2D) = [K | V] (already projected + biased)
        # One row-split reshape per operand (free: splits exactly on the 8-row
        # sublane tile), then per-head lane slices feed 3-D batched einsums.
        q3 = q_all.reshape(batch, S, D)
        k3 = kv_all[:, :D].reshape(batch, S, D)
        v3 = kv_all[:, D:].reshape(batch, S, D)

        acc = None
        for h in range(num_heads):                      # static unroll (H=2)
            lo = h * dk
            s = jnp.einsum("bqd,bkd->bqk", q3[:, :, lo:lo + dk], k3[:, :, lo:lo + dk],
                           preferred_element_type=jnp.float32)
            s = s - jnp.max(s, axis=-1, keepdims=True)  # numerically stable softmax
            p = jnp.exp(s)
            p = p / jnp.sum(p, axis=-1, keepdims=True)  # exact normalisation
            oh = jnp.einsum("bqk,bkd->bqd", p, v3[:, :, lo:lo + dk],
                            preferred_element_type=jnp.float32)
            oh = oh.reshape(BS, dk)                     # free row-merge

            # combine_heads + W_o fused: out += oh @ W_o[h*dk:(h+1)*dk, :]
            contrib = jnp.dot(oh, w_o[lo:lo + dk, :],
                              preferred_element_type=jnp.float32)
            acc = contrib if acc is None else acc + contrib
        return acc + b_o

    # --- self-attention: fully fused QKV projection (one MXU push) ---------
    qkv = jnp.dot(x, w_qkv_ref[0], preferred_element_type=jnp.float32) + b_qkv_ref[0]
    sa = attention_core(qkv[:, :D], qkv[:, D:], w_o_ref[0], b_sa_o)
    x1 = _layer_norm(x + sa, g1, be1)    # dropout == identity (eval mode)

    # --- cross-attention: Q from x1, fused K/V from enc_output (= x) -------
    w_ca = w_qkv_ref[1]
    b_ca = b_qkv_ref[1]
    q_ca = jnp.dot(x1, w_ca[:, :D], preferred_element_type=jnp.float32) + b_ca[:, :D]
    kv_ca = jnp.dot(x, w_ca[:, D:], preferred_element_type=jnp.float32) + b_ca[:, D:]
    ca = attention_core(q_ca, kv_ca, w_o_ref[1], b_ca_o)
    x2 = _layer_norm(x1 + ca, g2, be2)

    # --- position-wise feed-forward (bf16 weights, f32 math) ----------------
    w1 = w_fc1_ref[...].astype(jnp.float32)
    w2 = w_fc2_ref[...].astype(jnp.float32)
    h = jnp.dot(x2, w1, preferred_element_type=jnp.float32) + b_fc1_ref[...]
    h = jnp.maximum(h, 0.0)
    ff = jnp.dot(h, w2, preferred_element_type=jnp.float32) + b_fc2
    x3 = _layer_norm(x2 + ff, g3, be3)

    o_ref[...] = x3


# ----------------------------- JAX wrapper -------------------------------- #

def decoder_layer(enc_output, params, *, num_heads, src_mask=None):
    # src_mask is accepted for API parity but ignored (as in the PyTorch code).
    del src_mask
    B, S, D = enc_output.shape
    BS = B * S
    dk = D // num_heads
    scale = 1.0 / math.sqrt(dk)
    x2d = enc_output.reshape(BS, D).astype(jnp.float32)

    # ---- host-side parameter packing: 26 tensors -> 7 arrays ----
    # 1/sqrt(d_k) is folded into the Q columns (weights AND biases).
    w_qkv = jnp.stack([
        jnp.concatenate([params["sa_q_w"] * scale, params["sa_k_w"], params["sa_v_w"]], axis=1),
        jnp.concatenate([params["ca_q_w"] * scale, params["ca_k_w"], params["ca_v_w"]], axis=1),
    ])                                                     # (2, D, 3D)
    b_qkv = jnp.stack([
        jnp.concatenate([params["sa_q_b"] * scale, params["sa_k_b"], params["sa_v_b"]], axis=1),
        jnp.concatenate([params["ca_q_b"] * scale, params["ca_k_b"], params["ca_v_b"]], axis=1),
    ])                                                     # (2, 1, 3D)
    w_o = jnp.stack([params["sa_o_w"], params["ca_o_w"]])  # (2, D, D)
    small = jnp.concatenate([
        params["sa_o_b"], params["ca_o_b"], params["fc2_b"],
        params["ln1_g"], params["ln1_b"],
        params["ln2_g"], params["ln2_b"],
        params["ln3_g"], params["ln3_b"],
    ], axis=0)                                             # (9, D)

    inputs = (x2d, w_qkv, b_qkv, w_o,
              params["fc1_w"], params["fc1_b"], params["fc2_w"], small)

    def full_spec(arr):
        nd = arr.ndim
        return pl.BlockSpec(arr.shape, lambda i, _nd=nd: (0,) * _nd)

    out2d = pl.pallas_call(
        functools.partial(decoder_layer_kernel, batch=B, num_heads=num_heads),
        out_shape=jax.ShapeDtypeStruct((BS, D), jnp.float32),
        grid_spec=pltpu.PrefetchScalarGridSpec(
            num_scalar_prefetch=0,
            grid=(1,),                      # batch folded into the block
            in_specs=[full_spec(a) for a in inputs],
            out_specs=pl.BlockSpec((BS, D), lambda i: (0, 0)),
        ),
        compiler_params=pltpu.CompilerParams(
            dimension_semantics=("arbitrary",)),
    )(*inputs)

    return out2d.reshape(B, S, D)


# ------------------------ deterministic parameters ------------------------ #

def init_params(key, d_model, d_ff):
    params = {}
    k = key

    def nxt():
        nonlocal k
        k, sub = jax.random.split(k)
        return sub

    def linear(prefix, din, dout, w_dtype=jnp.float32):
        w = jax.random.normal(nxt(), (din, dout), jnp.float32) * 0.05
        params[prefix + "_w"] = w.astype(w_dtype)
        params[prefix + "_b"] = jax.random.normal(nxt(), (1, dout), jnp.float32) * 0.05

    for pfx in ["sa_q", "sa_k", "sa_v", "sa_o", "ca_q", "ca_k", "ca_v", "ca_o"]:
        linear(pfx, d_model, d_model)
    # fc1/fc2 weights are *stored* in bf16 (halves the dominant HBM->VMEM DMA);
    # the kernel and the reference both consume these exact bf16 values and
    # accumulate in f32, so the correctness check below stays tight.
    linear("fc1", d_model, d_ff, w_dtype=jnp.bfloat16)
    linear("fc2", d_ff, d_model, w_dtype=jnp.bfloat16)
    for i in (1, 2, 3):
        params[f"ln{i}_g"] = jnp.ones((1, d_model), jnp.float32)
        params[f"ln{i}_b"] = jnp.zeros((1, d_model), jnp.float32)
    return params


# --------------------------- pure-JAX reference ---------------------------- #

def ref_decoder_layer(x, p, num_heads):
    hp = jax.lax.Precision.HIGHEST

    def mm(a, b):
        return jnp.matmul(a, b, precision=hp)

    def ln(y, g, b, eps=1e-5):
        mu = jnp.mean(y, axis=-1, keepdims=True)
        var = jnp.mean((y - mu) ** 2, axis=-1, keepdims=True)
        return (y - mu) / jnp.sqrt(var + eps) * g + b

    def mha(xq, xkv, pfx):
        Q = mm(xq, p[pfx + "_q_w"]) + p[pfx + "_q_b"]
        K = mm(xkv, p[pfx + "_k_w"]) + p[pfx + "_k_b"]
        V = mm(xkv, p[pfx + "_v_w"]) + p[pfx + "_v_b"]
        B, S, D = Q.shape
        dk = D // num_heads
        Qh = Q.reshape(B, S, num_heads, dk).transpose(0, 2, 1, 3)
        Kh = K.reshape(B, S, num_heads, dk).transpose(0, 2, 1, 3)
        Vh = V.reshape(B, S, num_heads, dk).transpose(0, 2, 1, 3)
        s = jnp.einsum("bhqd,bhkd->bhqk", Qh, Kh, precision=hp) / math.sqrt(dk)
        pr = jax.nn.softmax(s, axis=-1)
        o = jnp.einsum("bhqk,bhkd->bhqd", pr, Vh, precision=hp)
        o = o.transpose(0, 2, 1, 3).reshape(B, S, D)
        return mm(o, p[pfx + "_o_w"]) + p[pfx + "_o_b"]

    sa = mha(x, x, "sa")
    x1 = ln(x + sa, p["ln1_g"], p["ln1_b"])
    ca = mha(x1, x, "ca")
    x2 = ln(x1 + ca, p["ln2_g"], p["ln2_b"])
    h = jnp.maximum(mm(x2, p["fc1_w"].astype(jnp.float32)) + p["fc1_b"], 0.0)
    ff = mm(h, p["fc2_w"].astype(jnp.float32)) + p["fc2_b"]
    return ln(x2 + ff, p["ln3_g"], p["ln3_b"])


# --------------------------------- main ------------------------------------ #

if __name__ == "__main__":
    B, S, D_MODEL = 2, 8, 32          # small shapes consistent with the module
    NUM_HEADS = 2
    D_FF = 1024

    key = jax.random.PRNGKey(0)
    kx, kp = jax.random.split(key)
    enc_output = jax.random.normal(kx, (B, S, D_MODEL), jnp.float32)
    params = init_params(kp, D_MODEL, D_FF)

    out = decoder_layer(enc_output, params, num_heads=NUM_HEADS, src_mask=None)
    out = jax.block_until_ready(out)

    ref = jax.block_until_ready(ref_decoder_layer(enc_output, params, NUM_HEADS))
    # Tolerance tightened 2x vs. the previous version: the approx EUP
    # reciprocal is gone (exact softmax divide) and both sides use identical
    # (bf16-stored) fc weights with f32 accumulation.  Remaining slack covers
    # MXU f32 pass-decomposition differences between Mosaic and the XLA
    # HIGHEST-precision reference.
    np.testing.assert_allclose(np.asarray(out), np.asarray(ref), rtol=1e-3, atol=1e-3)

    print("KERNEL_OK")
</pallas_src>

<mosaic_0001>
module attributes {stable_mosaic.version = 11 : i64} {
  func.func @decoder_layer_kernel(%arg0: i32, %arg1: memref<16x32xf32, #tpu.memory_space<vmem>>, %arg2: memref<2x32x96xf32, #tpu.memory_space<vmem>>, %arg3: memref<2x1x96xf32, #tpu.memory_space<vmem>>, %arg4: memref<2x32x32xf32, #tpu.memory_space<vmem>>, %arg5: memref<32x1024xbf16, #tpu.memory_space<vmem>>, %arg6: memref<1x1024xf32, #tpu.memory_space<vmem>>, %arg7: memref<1024x32xbf16, #tpu.memory_space<vmem>>, %arg8: memref<9x32xf32, #tpu.memory_space<vmem>>, %arg9: memref<16x32xf32, #tpu.memory_space<vmem>>) attributes {dimension_semantics = [#tpu.dimension_semantics<arbitrary>], iteration_bounds = array<i64: 1>, scalar_prefetch = 0 : i64, scratch_operands = 0 : i64, tpu.core_type = #tpu.core_type<tc>, window_params = [{pipeline_mode = #tpu.pipeline_mode<synchronous>, transform_indices = @transform_0, window_bounds = array<i64: 16, 32>}, {pipeline_mode = #tpu.pipeline_mode<synchronous>, transform_indices = @transform_1, window_bounds = array<i64: 2, 32, 96>}, {pipeline_mode = #tpu.pipeline_mode<synchronous>, transform_indices = @transform_2, window_bounds = array<i64: 2, 1, 96>}, {pipeline_mode = #tpu.pipeline_mode<synchronous>, transform_indices = @transform_3, window_bounds = array<i64: 2, 32, 32>}, {pipeline_mode = #tpu.pipeline_mode<synchronous>, transform_indices = @transform_4, window_bounds = array<i64: 32, 1024>}, {pipeline_mode = #tpu.pipeline_mode<synchronous>, transform_indices = @transform_5, window_bounds = array<i64: 1, 1024>}, {pipeline_mode = #tpu.pipeline_mode<synchronous>, transform_indices = @transform_6, window_bounds = array<i64: 1024, 32>}, {pipeline_mode = #tpu.pipeline_mode<synchronous>, transform_indices = @transform_7, window_bounds = array<i64: 9, 32>}, {pipeline_mode = #tpu.pipeline_mode<synchronous>, transform_indices = @transform_8, window_bounds = array<i64: 16, 32>}]} {
    %c0 = arith.constant 0 : index
    %c0_0 = arith.constant 0 : index
    %0 = vector.load %arg1[%c0, %c0_0] : memref<16x32xf32, #tpu.memory_space<vmem>>, vector<16x32xf32>
    %c0_1 = arith.constant 0 : index
    %c0_2 = arith.constant 0 : index
    %1 = vector.load %arg8[%c0_1, %c0_2] : memref<9x32xf32, #tpu.memory_space<vmem>>, vector<9x32xf32>
    %2 = vector.extract_strided_slice %1 {offsets = [0, 0], sizes = [1, 32], strides = [1, 1]} : vector<9x32xf32> to vector<1x32xf32>
    %3 = vector.extract_strided_slice %1 {offsets = [1, 0], sizes = [1, 32], strides = [1, 1]} : vector<9x32xf32> to vector<1x32xf32>
    %4 = vector.extract_strided_slice %1 {offsets = [2, 0], sizes = [1, 32], strides = [1, 1]} : vector<9x32xf32> to vector<1x32xf32>
    %5 = vector.extract_strided_slice %1 {offsets = [3, 0], sizes = [1, 32], strides = [1, 1]} : vector<9x32xf32> to vector<1x32xf32>
    %6 = vector.extract_strided_slice %1 {offsets = [4, 0], sizes = [1, 32], strides = [1, 1]} : vector<9x32xf32> to vector<1x32xf32>
    %7 = vector.extract_strided_slice %1 {offsets = [5, 0], sizes = [1, 32], strides = [1, 1]} : vector<9x32xf32> to vector<1x32xf32>
    %8 = vector.extract_strided_slice %1 {offsets = [6, 0], sizes = [1, 32], strides = [1, 1]} : vector<9x32xf32> to vector<1x32xf32>
    %9 = vector.extract_strided_slice %1 {offsets = [7, 0], sizes = [1, 32], strides = [1, 1]} : vector<9x32xf32> to vector<1x32xf32>
    %10 = vector.extract_strided_slice %1 {offsets = [8, 0], sizes = [1, 32], strides = [1, 1]} : vector<9x32xf32> to vector<1x32xf32>
    %c0_3 = arith.constant 0 : index
    %c0_4 = arith.constant 0 : index
    %c0_5 = arith.constant 0 : index
    %11 = vector.load %arg2[%c0_3, %c0_4, %c0_5] : memref<2x32x96xf32, #tpu.memory_space<vmem>>, vector<1x32x96xf32>
    %12 = vector.shape_cast %11 : vector<1x32x96xf32> to vector<32x96xf32>
    %cst = arith.constant dense<0.000000e+00> : vector<16x96xf32>
    %13 = tpu.matmul %0, %12, %cst {dimension_numbers = #tpu.dot_dimension_numbers<[1], [0], [0], [1], [0, 0, 1, 1], [], []>} : vector<16x32xf32>, vector<32x96xf32>, vector<16x96xf32> -> vector<16x96xf32>
    %c0_6 = arith.constant 0 : index
    %c0_7 = arith.constant 0 : index
    %c0_8 = arith.constant 0 : index
    %14 = vector.load %arg3[%c0_6, %c0_7, %c0_8] : memref<2x1x96xf32, #tpu.memory_space<vmem>>, vector<1x1x96xf32>
    %15 = vector.shape_cast %14 : vector<1x1x96xf32> to vector<1x96xf32>
    %16 = vector.broadcast %15 : vector<1x96xf32> to vector<16x96xf32>
    %17 = arith.addf %13, %16 : vector<16x96xf32>
    %18 = vector.extract_strided_slice %17 {offsets = [0, 0], sizes = [16, 32], strides = [1, 1]} : vector<16x96xf32> to vector<16x32xf32>
    %19 = vector.extract_strided_slice %17 {offsets = [0, 32], sizes = [16, 64], strides = [1, 1]} : vector<16x96xf32> to vector<16x64xf32>
    %c0_9 = arith.constant 0 : index
    %c0_10 = arith.constant 0 : index
    %c0_11 = arith.constant 0 : index
    %20 = vector.load %arg4[%c0_9, %c0_10, %c0_11] : memref<2x32x32xf32, #tpu.memory_space<vmem>>, vector<1x32x32xf32>
    %21 = vector.shape_cast %20 : vector<1x32x32xf32> to vector<32x32xf32>
    %22 = vector.shape_cast %18 : vector<16x32xf32> to vector<2x8x32xf32>
    %23 = vector.extract_strided_slice %19 {offsets = [0, 0], sizes = [16, 32], strides = [1, 1]} : vector<16x64xf32> to vector<16x32xf32>
    %24 = vector.shape_cast %23 : vector<16x32xf32> to vector<2x8x32xf32>
    %25 = vector.extract_strided_slice %19 {offsets = [0, 32], sizes = [16, 32], strides = [1, 1]} : vector<16x64xf32> to vector<16x32xf32>
    %26 = vector.shape_cast %25 : vector<16x32xf32> to vector<2x8x32xf32>
    %27 = vector.extract_strided_slice %22 {offsets = [0, 0, 0], sizes = [2, 8, 16], strides = [1, 1, 1]} : vector<2x8x32xf32> to vector<2x8x16xf32>
    %28 = vector.extract_strided_slice %24 {offsets = [0, 0, 0], sizes = [2, 8, 16], strides = [1, 1, 1]} : vector<2x8x32xf32> to vector<2x8x16xf32>
    "tpu.trace_start"() <{level = 10 : i32, message = "bqd,bkd->bqk"}> : () -> ()
    %cst_12 = arith.constant dense<0.000000e+00> : vector<2x8x8xf32>
    %29 = tpu.matmul %27, %28, %cst_12 {dimension_numbers = #tpu.dot_dimension_numbers<[2], [2], [1], [1], [0, 0, 0, 1, 1, 1], [0], [0]>} : vector<2x8x16xf32>, vector<2x8x16xf32>, vector<2x8x8xf32> -> vector<2x8x8xf32>
    "tpu.trace_stop"() : () -> ()
    %cst_13 = arith.constant dense<0xFF800000> : vector<2x8xf32>
    %30 = vector.multi_reduction <maximumf>, %29, %cst_13 [2] : vector<2x8x8xf32> to vector<2x8xf32>
    %31 = vector.shape_cast %30 : vector<2x8xf32> to vector<2x8x1xf32>
    %32 = vector.broadcast %31 : vector<2x8x1xf32> to vector<2x8x8xf32>
    %33 = arith.subf %29, %32 : vector<2x8x8xf32>
    %34 = math.exp %33 : vector<2x8x8xf32>
    %cst_14 = arith.constant dense<0.000000e+00> : vector<2x8xf32>
    %35 = vector.multi_reduction <add>, %34, %cst_14 [2] : vector<2x8x8xf32> to vector<2x8xf32>
    %36 = vector.shape_cast %35 : vector<2x8xf32> to vector<2x8x1xf32>
    %37 = vector.broadcast %36 : vector<2x8x1xf32> to vector<2x8x8xf32>
    %38 = arith.divf %34, %37 : vector<2x8x8xf32>
    %39 = vector.extract_strided_slice %26 {offsets = [0, 0, 0], sizes = [2, 8, 16], strides = [1, 1, 1]} : vector<2x8x32xf32> to vector<2x8x16xf32>
    "tpu.trace_start"() <{level = 10 : i32, message = "bqk,bkd->bqd"}> : () -> ()
    %cst_15 = arith.constant dense<0.000000e+00> : vector<2x8x16xf32>
    %40 = tpu.matmul %38, %39, %cst_15 {dimension_numbers = #tpu.dot_dimension_numbers<[2], [1], [1], [2], [0, 0, 0, 1, 1, 2], [0], [0]>} : vector<2x8x8xf32>, vector<2x8x16xf32>, vector<2x8x16xf32> -> vector<2x8x16xf32>
    "tpu.trace_stop"() : () -> ()
    %41 = vector.shape_cast %40 : vector<2x8x16xf32> to vector<16x16xf32>
    %42 = vector.extract_strided_slice %21 {offsets = [0, 0], sizes = [16, 32], strides = [1, 1]} : vector<32x32xf32> to vector<16x32xf32>
    %cst_16 = arith.constant dense<0.000000e+00> : vector<16x32xf32>
    %43 = tpu.matmul %41, %42, %cst_16 {dimension_numbers = #tpu.dot_dimension_numbers<[1], [0], [0], [1], [0, 0, 1, 1], [], []>} : vector<16x16xf32>, vector<16x32xf32>, vector<16x32xf32> -> vector<16x32xf32>
    %44 = vector.extract_strided_slice %22 {offsets = [0, 0, 16], sizes = [2, 8, 16], strides = [1, 1, 1]} : vector<2x8x32xf32> to vector<2x8x16xf32>
    %45 = vector.extract_strided_slice %24 {offsets = [0, 0, 16], sizes = [2, 8, 16], strides = [1, 1, 1]} : vector<2x8x32xf32> to vector<2x8x16xf32>
    "tpu.trace_start"() <{level = 10 : i32, message = "bqd,bkd->bqk"}> : () -> ()
    %cst_17 = arith.constant dense<0.000000e+00> : vector<2x8x8xf32>
    %46 = tpu.matmul %44, %45, %cst_17 {dimension_numbers = #tpu.dot_dimension_numbers<[2], [2], [1], [1], [0, 0, 0, 1, 1, 1], [0], [0]>} : vector<2x8x16xf32>, vector<2x8x16xf32>, vector<2x8x8xf32> -> vector<2x8x8xf32>
    "tpu.trace_stop"() : () -> ()
    %cst_18 = arith.constant dense<0xFF800000> : vector<2x8xf32>
    %47 = vector.multi_reduction <maximumf>, %46, %cst_18 [2] : vector<2x8x8xf32> to vector<2x8xf32>
    %48 = vector.shape_cast %47 : vector<2x8xf32> to vector<2x8x1xf32>
    %49 = vector.broadcast %48 : vector<2x8x1xf32> to vector<2x8x8xf32>
    %50 = arith.subf %46, %49 : vector<2x8x8xf32>
    %51 = math.exp %50 : vector<2x8x8xf32>
    %cst_19 = arith.constant dense<0.000000e+00> : vector<2x8xf32>
    %52 = vector.multi_reduction <add>, %51, %cst_19 [2] : vector<2x8x8xf32> to vector<2x8xf32>
    %53 = vector.shape_cast %52 : vector<2x8xf32> to vector<2x8x1xf32>
    %54 = vector.broadcast %53 : vector<2x8x1xf32> to vector<2x8x8xf32>
    %55 = arith.divf %51, %54 : vector<2x8x8xf32>
    %56 = vector.extract_strided_slice %26 {offsets = [0, 0, 16], sizes = [2, 8, 16], strides = [1, 1, 1]} : vector<2x8x32xf32> to vector<2x8x16xf32>
    "tpu.trace_start"() <{level = 10 : i32, message = "bqk,bkd->bqd"}> : () -> ()
    %cst_20 = arith.constant dense<0.000000e+00> : vector<2x8x16xf32>
    %57 = tpu.matmul %55, %56, %cst_20 {dimension_numbers = #tpu.dot_dimension_numbers<[2], [1], [1], [2], [0, 0, 0, 1, 1, 2], [0], [0]>} : vector<2x8x8xf32>, vector<2x8x16xf32>, vector<2x8x16xf32> -> vector<2x8x16xf32>
    "tpu.trace_stop"() : () -> ()
    %58 = vector.shape_cast %57 : vector<2x8x16xf32> to vector<16x16xf32>
    %59 = vector.extract_strided_slice %21 {offsets = [16, 0], sizes = [16, 32], strides = [1, 1]} : vector<32x32xf32> to vector<16x32xf32>
    %cst_21 = arith.constant dense<0.000000e+00> : vector<16x32xf32>
    %60 = tpu.matmul %58, %59, %cst_21 {dimension_numbers = #tpu.dot_dimension_numbers<[1], [0], [0], [1], [0, 0, 1, 1], [], []>} : vector<16x16xf32>, vector<16x32xf32>, vector<16x32xf32> -> vector<16x32xf32>
    %61 = arith.addf %43, %60 : vector<16x32xf32>
    %62 = vector.broadcast %2 : vector<1x32xf32> to vector<16x32xf32>
    %63 = arith.addf %61, %62 : vector<16x32xf32>
    %64 = arith.addf %0, %63 : vector<16x32xf32>
    %cst_22 = arith.constant dense<0.000000e+00> : vector<16xf32>
    %65 = vector.multi_reduction <add>, %64, %cst_22 [1] : vector<16x32xf32> to vector<16xf32>
    %66 = vector.shape_cast %65 : vector<16xf32> to vector<16x1xf32>
    %cst_23 = arith.constant 3.200000e+01 : f32
    %67 = vector.broadcast %cst_23 : f32 to vector<16x1xf32>
    %68 = arith.divf %66, %67 : vector<16x1xf32>
    %69 = vector.broadcast %68 : vector<16x1xf32> to vector<16x32xf32>
    %70 = arith.subf %64, %69 : vector<16x32xf32>
    %71 = arith.mulf %70, %70 : vector<16x32xf32>
    %cst_24 = arith.constant dense<0.000000e+00> : vector<16xf32>
    %72 = vector.multi_reduction <add>, %71, %cst_24 [1] : vector<16x32xf32> to vector<16xf32>
    %73 = vector.shape_cast %72 : vector<16xf32> to vector<16x1xf32>
    %cst_25 = arith.constant 3.200000e+01 : f32
    %74 = vector.broadcast %cst_25 : f32 to vector<16x1xf32>
    %75 = arith.divf %73, %74 : vector<16x1xf32>
    %76 = vector.broadcast %68 : vector<16x1xf32> to vector<16x32xf32>
    %77 = arith.subf %64, %76 : vector<16x32xf32>
    %cst_26 = arith.constant 9.99999974E-6 : f32
    %78 = vector.broadcast %cst_26 : f32 to vector<16x1xf32>
    %79 = arith.addf %75, %78 : vector<16x1xf32>
    %80 = math.rsqrt %79 : vector<16x1xf32>
    %81 = vector.broadcast %80 : vector<16x1xf32> to vector<16x32xf32>
    %82 = arith.mulf %77, %81 : vector<16x32xf32>
    %83 = vector.broadcast %5 : vector<1x32xf32> to vector<16x32xf32>
    %84 = arith.mulf %82, %83 : vector<16x32xf32>
    %85 = vector.broadcast %6 : vector<1x32xf32> to vector<16x32xf32>
    %86 = arith.addf %84, %85 : vector<16x32xf32>
    %c1 = arith.constant 1 : index
    %c0_27 = arith.constant 0 : index
    %c0_28 = arith.constant 0 : index
    %87 = vector.load %arg2[%c1, %c0_27, %c0_28] : memref<2x32x96xf32, #tpu.memory_space<vmem>>, vector<1x32x96xf32>
    %88 = vector.shape_cast %87 : vector<1x32x96xf32> to vector<32x96xf32>
    %c1_29 = arith.constant 1 : index
    %c0_30 = arith.constant 0 : index
    %c0_31 = arith.constant 0 : index
    %89 = vector.load %arg3[%c1_29, %c0_30, %c0_31] : memref<2x1x96xf32, #tpu.memory_space<vmem>>, vector<1x1x96xf32>
    %90 = vector.shape_cast %89 : vector<1x1x96xf32> to vector<1x96xf32>
    %91 = vector.extract_strided_slice %88 {offsets = [0, 0], sizes = [32, 32], strides = [1, 1]} : vector<32x96xf32> to vector<32x32xf32>
    %cst_32 = arith.constant dense<0.000000e+00> : vector<16x32xf32>
    %92 = tpu.matmul %86, %91, %cst_32 {dimension_numbers = #tpu.dot_dimension_numbers<[1], [0], [0], [1], [0, 0, 1, 1], [], []>} : vector<16x32xf32>, vector<32x32xf32>, vector<16x32xf32> -> vector<16x32xf32>
    %93 = vector.extract_strided_slice %90 {offsets = [0, 0], sizes = [1, 32], strides = [1, 1]} : vector<1x96xf32> to vector<1x32xf32>
    %94 = vector.broadcast %93 : vector<1x32xf32> to vector<16x32xf32>
    %95 = arith.addf %92, %94 : vector<16x32xf32>
    %96 = vector.extract_strided_slice %88 {offsets = [0, 32], sizes = [32, 64], strides = [1, 1]} : vector<32x96xf32> to vector<32x64xf32>
    %cst_33 = arith.constant dense<0.000000e+00> : vector<16x64xf32>
    %97 = tpu.matmul %0, %96, %cst_33 {dimension_numbers = #tpu.dot_dimension_numbers<[1], [0], [0], [1], [0, 0, 1, 1], [], []>} : vector<16x32xf32>, vector<32x64xf32>, vector<16x64xf32> -> vector<16x64xf32>
    %98 = vector.extract_strided_slice %90 {offsets = [0, 32], sizes = [1, 64], strides = [1, 1]} : vector<1x96xf32> to vector<1x64xf32>
    %99 = vector.broadcast %98 : vector<1x64xf32> to vector<16x64xf32>
    %100 = arith.addf %97, %99 : vector<16x64xf32>
    %c1_34 = arith.constant 1 : index
    %c0_35 = arith.constant 0 : index
    %c0_36 = arith.constant 0 : index
    %101 = vector.load %arg4[%c1_34, %c0_35, %c0_36] : memref<2x32x32xf32, #tpu.memory_space<vmem>>, vector<1x32x32xf32>
    %102 = vector.shape_cast %101 : vector<1x32x32xf32> to vector<32x32xf32>
    %103 = vector.shape_cast %95 : vector<16x32xf32> to vector<2x8x32xf32>
    %104 = vector.extract_strided_slice %100 {offsets = [0, 0], sizes = [16, 32], strides = [1, 1]} : vector<16x64xf32> to vector<16x32xf32>
    %105 = vector.shape_cast %104 : vector<16x32xf32> to vector<2x8x32xf32>
    %106 = vector.extract_strided_slice %100 {offsets = [0, 32], sizes = [16, 32], strides = [1, 1]} : vector<16x64xf32> to vector<16x32xf32>
    %107 = vector.shape_cast %106 : vector<16x32xf32> to vector<2x8x32xf32>
    %108 = vector.extract_strided_slice %103 {offsets = [0, 0, 0], sizes = [2, 8, 16], strides = [1, 1, 1]} : vector<2x8x32xf32> to vector<2x8x16xf32>
    %109 = vector.extract_strided_slice %105 {offsets = [0, 0, 0], sizes = [2, 8, 16], strides = [1, 1, 1]} : vector<2x8x32xf32> to vector<2x8x16xf32>
    "tpu.trace_start"() <{level = 10 : i32, message = "bqd,bkd->bqk"}> : () -> ()
    %cst_37 = arith.constant dense<0.000000e+00> : vector<2x8x8xf32>
    %110 = tpu.matmul %108, %109, %cst_37 {dimension_numbers = #tpu.dot_dimension_numbers<[2], [2], [1], [1], [0, 0, 0, 1, 1, 1], [0], [0]>} : vector<2x8x16xf32>, vector<2x8x16xf32>, vector<2x8x8xf32> -> vector<2x8x8xf32>
    "tpu.trace_stop"() : () -> ()
    %cst_38 = arith.constant dense<0xFF800000> : vector<2x8xf32>
    %111 = vector.multi_reduction <maximumf>, %110, %cst_38 [2] : vector<2x8x8xf32> to vector<2x8xf32>
    %112 = vector.shape_cast %111 : vector<2x8xf32> to vector<2x8x1xf32>
    %113 = vector.broadcast %112 : vector<2x8x1xf32> to vector<2x8x8xf32>
    %114 = arith.subf %110, %113 : vector<2x8x8xf32>
    %115 = math.exp %114 : vector<2x8x8xf32>
    %cst_39 = arith.constant dense<0.000000e+00> : vector<2x8xf32>
    %116 = vector.multi_reduction <add>, %115, %cst_39 [2] : vector<2x8x8xf32> to vector<2x8xf32>
    %117 = vector.shape_cast %116 : vector<2x8xf32> to vector<2x8x1xf32>
    %118 = vector.broadcast %117 : vector<2x8x1xf32> to vector<2x8x8xf32>
    %119 = arith.divf %115, %118 : vector<2x8x8xf32>
    %120 = vector.extract_strided_slice %107 {offsets = [0, 0, 0], sizes = [2, 8, 16], strides = [1, 1, 1]} : vector<2x8x32xf32> to vector<2x8x16xf32>
    "tpu.trace_start"() <{level = 10 : i32, message = "bqk,bkd->bqd"}> : () -> ()
    %cst_40 = arith.constant dense<0.000000e+00> : vector<2x8x16xf32>
    %121 = tpu.matmul %119, %120, %cst_40 {dimension_numbers = #tpu.dot_dimension_numbers<[2], [1], [1], [2], [0, 0, 0, 1, 1, 2], [0], [0]>} : vector<2x8x8xf32>, vector<2x8x16xf32>, vector<2x8x16xf32> -> vector<2x8x16xf32>
    "tpu.trace_stop"() : () -> ()
    %122 = vector.shape_cast %121 : vector<2x8x16xf32> to vector<16x16xf32>
    %123 = vector.extract_strided_slice %102 {offsets = [0, 0], sizes = [16, 32], strides = [1, 1]} : vector<32x32xf32> to vector<16x32xf32>
    %cst_41 = arith.constant dense<0.000000e+00> : vector<16x32xf32>
    %124 = tpu.matmul %122, %123, %cst_41 {dimension_numbers = #tpu.dot_dimension_numbers<[1], [0], [0], [1], [0, 0, 1, 1], [], []>} : vector<16x16xf32>, vector<16x32xf32>, vector<16x32xf32> -> vector<16x32xf32>
    %125 = vector.extract_strided_slice %103 {offsets = [0, 0, 16], sizes = [2, 8, 16], strides = [1, 1, 1]} : vector<2x8x32xf32> to vector<2x8x16xf32>
    %126 = vector.extract_strided_slice %105 {offsets = [0, 0, 16], sizes = [2, 8, 16], strides = [1, 1, 1]} : vector<2x8x32xf32> to vector<2x8x16xf32>
    "tpu.trace_start"() <{level = 10 : i32, message = "bqd,bkd->bqk"}> : () -> ()
    %cst_42 = arith.constant dense<0.000000e+00> : vector<2x8x8xf32>
    %127 = tpu.matmul %125, %126, %cst_42 {dimension_numbers = #tpu.dot_dimension_numbers<[2], [2], [1], [1], [0, 0, 0, 1, 1, 1], [0], [0]>} : vector<2x8x16xf32>, vector<2x8x16xf32>, vector<2x8x8xf32> -> vector<2x8x8xf32>
    "tpu.trace_stop"() : () -> ()
    %cst_43 = arith.constant dense<0xFF800000> : vector<2x8xf32>
    %128 = vector.multi_reduction <maximumf>, %127, %cst_43 [2] : vector<2x8x8xf32> to vector<2x8xf32>
    %129 = vector.shape_cast %128 : vector<2x8xf32> to vector<2x8x1xf32>
    %130 = vector.broadcast %129 : vector<2x8x1xf32> to vector<2x8x8xf32>
    %131 = arith.subf %127, %130 : vector<2x8x8xf32>
    %132 = math.exp %131 : vector<2x8x8xf32>
    %cst_44 = arith.constant dense<0.000000e+00> : vector<2x8xf32>
    %133 = vector.multi_reduction <add>, %132, %cst_44 [2] : vector<2x8x8xf32> to vector<2x8xf32>
    %134 = vector.shape_cast %133 : vector<2x8xf32> to vector<2x8x1xf32>
    %135 = vector.broadcast %134 : vector<2x8x1xf32> to vector<2x8x8xf32>
    %136 = arith.divf %132, %135 : vector<2x8x8xf32>
    %137 = vector.extract_strided_slice %107 {offsets = [0, 0, 16], sizes = [2, 8, 16], strides = [1, 1, 1]} : vector<2x8x32xf32> to vector<2x8x16xf32>
    "tpu.trace_start"() <{level = 10 : i32, message = "bqk,bkd->bqd"}> : () -> ()
    %cst_45 = arith.constant dense<0.000000e+00> : vector<2x8x16xf32>
    %138 = tpu.matmul %136, %137, %cst_45 {dimension_numbers = #tpu.dot_dimension_numbers<[2], [1], [1], [2], [0, 0, 0, 1, 1, 2], [0], [0]>} : vector<2x8x8xf32>, vector<2x8x16xf32>, vector<2x8x16xf32> -> vector<2x8x16xf32>
    "tpu.trace_stop"() : () -> ()
    %139 = vector.shape_cast %138 : vector<2x8x16xf32> to vector<16x16xf32>
    %140 = vector.extract_strided_slice %102 {offsets = [16, 0], sizes = [16, 32], strides = [1, 1]} : vector<32x32xf32> to vector<16x32xf32>
    %cst_46 = arith.constant dense<0.000000e+00> : vector<16x32xf32>
    %141 = tpu.matmul %139, %140, %cst_46 {dimension_numbers = #tpu.dot_dimension_numbers<[1], [0], [0], [1], [0, 0, 1, 1], [], []>} : vector<16x16xf32>, vector<16x32xf32>, vector<16x32xf32> -> vector<16x32xf32>
    %142 = arith.addf %124, %141 : vector<16x32xf32>
    %143 = vector.broadcast %3 : vector<1x32xf32> to vector<16x32xf32>
    %144 = arith.addf %142, %143 : vector<16x32xf32>
    %145 = arith.addf %86, %144 : vector<16x32xf32>
    %cst_47 = arith.constant dense<0.000000e+00> : vector<16xf32>
    %146 = vector.multi_reduction <add>, %145, %cst_47 [1] : vector<16x32xf32> to vector<16xf32>
    %147 = vector.shape_cast %146 : vector<16xf32> to vector<16x1xf32>
    %cst_48 = arith.constant 3.200000e+01 : f32
    %148 = vector.broadcast %cst_48 : f32 to vector<16x1xf32>
    %149 = arith.divf %147, %148 : vector<16x1xf32>
    %150 = vector.broadcast %149 : vector<16x1xf32> to vector<16x32xf32>
    %151 = arith.subf %145, %150 : vector<16x32xf32>
    %152 = arith.mulf %151, %151 : vector<16x32xf32>
    %cst_49 = arith.constant dense<0.000000e+00> : vector<16xf32>
    %153 = vector.multi_reduction <add>, %152, %cst_49 [1] : vector<16x32xf32> to vector<16xf32>
    %154 = vector.shape_cast %153 : vector<16xf32> to vector<16x1xf32>
    %cst_50 = arith.constant 3.200000e+01 : f32
    %155 = vector.broadcast %cst_50 : f32 to vector<16x1xf32>
    %156 = arith.divf %154, %155 : vector<16x1xf32>
    %157 = vector.broadcast %149 : vector<16x1xf32> to vector<16x32xf32>
    %158 = arith.subf %145, %157 : vector<16x32xf32>
    %cst_51 = arith.constant 9.99999974E-6 : f32
    %159 = vector.broadcast %cst_51 : f32 to vector<16x1xf32>
    %160 = arith.addf %156, %159 : vector<16x1xf32>
    %161 = math.rsqrt %160 : vector<16x1xf32>
    %162 = vector.broadcast %161 : vector<16x1xf32> to vector<16x32xf32>
    %163 = arith.mulf %158, %162 : vector<16x32xf32>
    %164 = vector.broadcast %7 : vector<1x32xf32> to vector<16x32xf32>
    %165 = arith.mulf %163, %164 : vector<16x32xf32>
    %166 = vector.broadcast %8 : vector<1x32xf32> to vector<16x32xf32>
    %167 = arith.addf %165, %166 : vector<16x32xf32>
    %c0_52 = arith.constant 0 : index
    %c0_53 = arith.constant 0 : index
    %168 = vector.load %arg5[%c0_52, %c0_53] : memref<32x1024xbf16, #tpu.memory_space<vmem>>, vector<32x1024xbf16>
    %169 = arith.extf %168 : vector<32x1024xbf16> to vector<32x1024xf32>
    %c0_54 = arith.constant 0 : index
    %c0_55 = arith.constant 0 : index
    %170 = vector.load %arg7[%c0_54, %c0_55] : memref<1024x32xbf16, #tpu.memory_space<vmem>>, vector<1024x32xbf16>
    %171 = arith.extf %170 : vector<1024x32xbf16> to vector<1024x32xf32>
    %cst_56 = arith.constant dense<0.000000e+00> : vector<16x1024xf32>
    %172 = tpu.matmul %167, %169, %cst_56 {dimension_numbers = #tpu.dot_dimension_numbers<[1], [0], [0], [1], [0, 0, 1, 1], [], []>} : vector<16x32xf32>, vector<32x1024xf32>, vector<16x1024xf32> -> vector<16x1024xf32>
    %c0_57 = arith.constant 0 : index
    %c0_58 = arith.constant 0 : index
    %173 = vector.load %arg6[%c0_57, %c0_58] : memref<1x1024xf32, #tpu.memory_space<vmem>>, vector<1x1024xf32>
    %174 = vector.broadcast %173 : vector<1x1024xf32> to vector<16x1024xf32>
    %175 = arith.addf %172, %174 : vector<16x1024xf32>
    %cst_59 = arith.constant 0.000000e+00 : f32
    %176 = vector.broadcast %cst_59 : f32 to vector<16x1024xf32>
    %177 = arith.maximumf %175, %176 : vector<16x1024xf32>
    %cst_60 = arith.constant dense<0.000000e+00> : vector<16x32xf32>
    %178 = tpu.matmul %177, %171, %cst_60 {dimension_numbers = #tpu.dot_dimension_numbers<[1], [0], [0], [1], [0, 0, 1, 1], [], []>} : vector<16x1024xf32>, vector<1024x32xf32>, vector<16x32xf32> -> vector<16x32xf32>
    %179 = vector.broadcast %4 : vector<1x32xf32> to vector<16x32xf32>
    %180 = arith.addf %178, %179 : vector<16x32xf32>
    %181 = arith.addf %167, %180 : vector<16x32xf32>
    %cst_61 = arith.constant dense<0.000000e+00> : vector<16xf32>
    %182 = vector.multi_reduction <add>, %181, %cst_61 [1] : vector<16x32xf32> to vector<16xf32>
    %183 = vector.shape_cast %182 : vector<16xf32> to vector<16x1xf32>
    %cst_62 = arith.constant 3.200000e+01 : f32
    %184 = vector.broadcast %cst_62 : f32 to vector<16x1xf32>
    %185 = arith.divf %183, %184 : vector<16x1xf32>
    %186 = vector.broadcast %185 : vector<16x1xf32> to vector<16x32xf32>
    %187 = arith.subf %181, %186 : vector<16x32xf32>
    %188 = arith.mulf %187, %187 : vector<16x32xf32>
    %cst_63 = arith.constant dense<0.000000e+00> : vector<16xf32>
    %189 = vector.multi_reduction <add>, %188, %cst_63 [1] : vector<16x32xf32> to vector<16xf32>
    %190 = vector.shape_cast %189 : vector<16xf32> to vector<16x1xf32>
    %cst_64 = arith.constant 3.200000e+01 : f32
    %191 = vector.broadcast %cst_64 : f32 to vector<16x1xf32>
    %192 = arith.divf %190, %191 : vector<16x1xf32>
    %193 = vector.broadcast %185 : vector<16x1xf32> to vector<16x32xf32>
    %194 = arith.subf %181, %193 : vector<16x32xf32>
    %cst_65 = arith.constant 9.99999974E-6 : f32
    %195 = vector.broadcast %cst_65 : f32 to vector<16x1xf32>
    %196 = arith.addf %192, %195 : vector<16x1xf32>
    %197 = math.rsqrt %196 : vector<16x1xf32>
    %198 = vector.broadcast %197 : vector<16x1xf32> to vector<16x32xf32>
    %199 = arith.mulf %194, %198 : vector<16x32xf32>
    %200 = vector.broadcast %9 : vector<1x32xf32> to vector<16x32xf32>
    %201 = arith.mulf %199, %200 : vector<16x32xf32>
    %202 = vector.broadcast %10 : vector<1x32xf32> to vector<16x32xf32>
    %203 = arith.addf %201, %202 : vector<16x32xf32>
    %c0_66 = arith.constant 0 : index
    %c0_67 = arith.constant 0 : index
    %204 = vector.load %arg9[%c0_66, %c0_67] : memref<16x32xf32, #tpu.memory_space<vmem>>, vector<16x32xf32>
    tpu.vector_store %arg9[%c0_66, %c0_67], %203 {strides = array<i32>} : memref<16x32xf32, #tpu.memory_space<vmem>>, vector<16x32xf32>,
    return
  }
  func.func @transform_0(%arg0: i32) -> (i32, i32) {
    %c0_i32 = arith.constant 0 : i32
    %c0_i32_0 = arith.constant 0 : i32
    %c0_i32_1 = arith.constant 0 : i32
    return %c0_i32, %c0_i32_0 : i32, i32
  }
  func.func @transform_1(%arg0: i32) -> (i32, i32, i32) {
    %c0_i32 = arith.constant 0 : i32
    %c0_i32_0 = arith.constant 0 : i32
    %c0_i32_1 = arith.constant 0 : i32
    %c0_i32_2 = arith.constant 0 : i32
    return %c0_i32, %c0_i32_0, %c0_i32_1 : i32, i32, i32
  }
  func.func @transform_2(%arg0: i32) -> (i32, i32, i32) {
    %c0_i32 = arith.constant 0 : i32
    %c0_i32_0 = arith.constant 0 : i32
    %c0_i32_1 = arith.constant 0 : i32
    %c0_i32_2 = arith.constant 0 : i32
    return %c0_i32, %c0_i32_0, %c0_i32_1 : i32, i32, i32
  }
  func.func @transform_3(%arg0: i32) -> (i32, i32, i32) {
    %c0_i32 = arith.constant 0 : i32
    %c0_i32_0 = arith.constant 0 : i32
    %c0_i32_1 = arith.constant 0 : i32
    %c0_i32_2 = arith.constant 0 : i32
    return %c0_i32, %c0_i32_0, %c0_i32_1 : i32, i32, i32
  }
  func.func @transform_4(%arg0: i32) -> (i32, i32) {
    %c0_i32 = arith.constant 0 : i32
    %c0_i32_0 = arith.constant 0 : i32
    %c0_i32_1 = arith.constant 0 : i32
    return %c0_i32, %c0_i32_0 : i32, i32
  }
  func.func @transform_5(%arg0: i32) -> (i32, i32) {
    %c0_i32 = arith.constant 0 : i32
    %c0_i32_0 = arith.constant 0 : i32
    %c0_i32_1 = arith.constant 0 : i32
    return %c0_i32, %c0_i32_0 : i32, i32
  }
  func.func @transform_6(%arg0: i32) -> (i32, i32) {
    %c0_i32 = arith.constant 0 : i32
    %c0_i32_0 = arith.constant 0 : i32
    %c0_i32_1 = arith.constant 0 : i32
    return %c0_i32, %c0_i32_0 : i32, i32
  }
  func.func @transform_7(%arg0: i32) -> (i32, i32) {
    %c0_i32 = arith.constant 0 : i32
    %c0_i32_0 = arith.constant 0 : i32
    %c0_i32_1 = arith.constant 0 : i32
    return %c0_i32, %c0_i32_0 : i32, i32
  }
  func.func @transform_8(%arg0: i32) -> (i32, i32) {
    %c0_i32 = arith.constant 0 : i32
    %c0_i32_0 = arith.constant 0 : i32
    %c0_i32_1 = arith.constant 0 : i32
    return %c0_i32, %c0_i32_0 : i32, i32
  }
}

</mosaic_0001>

<llo_original>
// kernel: tpu_custom_call.1
$region0: #{tpu_custom_call.1}
  #allocation0 [shape = 'u32[]', space=smem, size = 0x4, offset = 0x4, fixed_abs, tag = 'smem constant byte address 0x4 - core index']
  #allocation1 [shape = 'u32[144,128]{1,0:T(1,128)}', space=vmem, size = 0x12000, scoped, tag = 'internal scratch']
  %s0 = inlined_call_operand.vmem [shape: f32[16,32], index: 0, kind: input, shape index: {}]
  %s1 = inlined_call_operand.vmem [shape: f32[2,32,96], index: 1, kind: input, shape index: {}]
  %s2 = inlined_call_operand.vmem [shape: f32[2,1,96], index: 2, kind: input, shape index: {}]
  %s3 = inlined_call_operand.vmem [shape: f32[2,32,32], index: 3, kind: input, shape index: {}]
  %s4 = inlined_call_operand.vmem [shape: bf16[32,1024], index: 4, kind: input, shape index: {}]
  %s5 = inlined_call_operand.vmem [shape: f32[1,1024], index: 5, kind: input, shape index: {}]
  %s6 = inlined_call_operand.vmem [shape: bf16[1024,32], index: 6, kind: input, shape index: {}]
  %s7 = inlined_call_operand.vmem [shape: f32[9,32], index: 7, kind: input, shape index: {}]
  %s8 = inlined_call_operand.hbm [shape: f32[16,32], index: 8, kind: output, shape index: {}]
  %s9 = sld [smem:[#allocation0]]
  $region42: #{tpu_custom_call.1} parent=0
    _
  %s11 = ssub.s32 1, %s9
  %s12 = scalar_select 0, %s11, %s9
  $region1: #{tpu_custom_call.1} parent=0
    #allocation2 [shape = 'u8[8192]{0}', space=vmem, size = 0x2000, scoped, tag = 'output window, operand 0, single buffered']
    #allocation3 [shape = 's32[1]{0}', space=sflag, size = 0x4, scoped, tag = 'scoped memory for tpu_custom_call.1']
    %13 = vsyncpa [#allocation3], 0
    // Predicated region
    $region2: #{tpu_custom_call.1} parent=1 // pred_check
      _
    $region3: #{tpu_custom_call.1} parent=1 // pred_check_branch
      %15 = sbr.rel (0) target = $region5
    $region4: #{tpu_custom_call.1} parent=1 // pred_region
      _
    $region5: #{tpu_custom_call.1} parent=1 // pred_fallthru
      _
    // Predicated region
    $region6: #{tpu_custom_call.1} parent=1 // pred_check
      _
    $region7: #{tpu_custom_call.1} parent=1 // pred_check_branch
      %17 = sbr.rel (0) target = $region9
    $region8: #{tpu_custom_call.1} parent=1 // pred_region
      _
    $region9: #{tpu_custom_call.1} parent=1 // pred_fallthru
      _
    // Predicated region
    $region10: #{tpu_custom_call.1} parent=1 // pred_check
      _
    $region11: #{tpu_custom_call.1} parent=1 // pred_check_branch
      %19 = sbr.rel (0) target = $region13
    $region12: #{tpu_custom_call.1} parent=1 // pred_region
      _
    $region13: #{tpu_custom_call.1} parent=1 // pred_fallthru
      _
    // Predicated region
    $region14: #{tpu_custom_call.1} parent=1 // pred_check
      _
    $region15: #{tpu_custom_call.1} parent=1 // pred_check_branch
      %21 = sbr.rel (0) target = $region17
    $region16: #{tpu_custom_call.1} parent=1 // pred_region
      _
    $region17: #{tpu_custom_call.1} parent=1 // pred_fallthru
      _
    // Predicated region
    $region18: #{tpu_custom_call.1} parent=1 // pred_check
      _
    $region19: #{tpu_custom_call.1} parent=1 // pred_check_branch
      %23 = sbr.rel (0) target = $region21
    $region20: #{tpu_custom_call.1} parent=1 // pred_region
      _
    $region21: #{tpu_custom_call.1} parent=1 // pred_fallthru
      _
    // Predicated region
    $region22: #{tpu_custom_call.1} parent=1 // pred_check
      _
    $region23: #{tpu_custom_call.1} parent=1 // pred_check_branch
      %25 = sbr.rel (0) target = $region25
    $region24: #{tpu_custom_call.1} parent=1 // pred_region
      _
    $region25: #{tpu_custom_call.1} parent=1 // pred_fallthru
      _
    // Predicated region
    $region26: #{tpu_custom_call.1} parent=1 // pred_check
      _
    $region27: #{tpu_custom_call.1} parent=1 // pred_check_branch
      %27 = sbr.rel (0) target = $region29
    $region28: #{tpu_custom_call.1} parent=1 // pred_region
      _
    $region29: #{tpu_custom_call.1} parent=1 // pred_fallthru
      _
    // Predicated region
    $region30: #{tpu_custom_call.1} parent=1 // pred_check
      _
    $region31: #{tpu_custom_call.1} parent=1 // pred_check_branch
      %29 = sbr.rel (0) target = $region33
    $region32: #{tpu_custom_call.1} parent=1 // pred_region
      _
    $region33: #{tpu_custom_call.1} parent=1 // pred_fallthru
      _
    %v30 = vld [vmem:[%s0] sm:$0xff]
    %v31 = vld [vmem:[%s0 + $0x8] sm:$0xff]
    %v32 = vld [vmem:[%s7] sm:$0xff]
    %v33 = vld [vmem:[%s7 + $0x8] sm:$0x1]
    %v34 = vld [vmem:[%s1] sm:$0xff]
    %v35 = vld [vmem:[%s1 + $0x8] sm:$0xff]
    %v36 = vld [vmem:[%s1 + $0x10] sm:$0xff]
    %v37 = vld [vmem:[%s1 + $0x18] sm:$0xff]
    %v38 = vld [vmem:[%s2] sm:$0x1]
    %v40 = vlaneseq
    %v41 = vshrl.u32 %v40, 7
    %v42 = vsub.s32 0, %v41
    %v43 = vrot.slane %v38, %v42
    %vm45 = vcmask 261120
    %v47 = vsel %vm45, %v30, 0
    %v50 = vsel %vm45, %v31, 0
    %52 = vmatprep.subr.mxu0 0.0
    %53 = vmatpush1.msra.mxu0 %v34
    %54 = vmatprep.subr.mxu0 0.0
    %55 = vmatpush1.msra.mxu0 %v35
    %56 = vmatprep.subr.mxu0 0.0
    %57 = vmatpush1.msra.mxu0 %v36
    %58 = vmatprep.subr.mxu0 0.0
    %59 = vmatpush1.msra.mxu0 %v37
    %60 = vmatprep.subr.mxu0 0.0
    %61 = vmatpush1.msra.mxu0 0.0
    %62 = vmatprep.subr.mxu0 0.0
    %63 = vmatpush1.msra.mxu0 0.0
    %64 = vmatprep.subr.mxu0 0.0
    %65 = vmatpush1.msra.mxu0 0.0
    %66 = vmatprep.subr.mxu0 0.0
    %67 = vmatpush1.msra.mxu0 0.0
    %68 = vmatprep.subr.mxu0 0.0
    %69 = vmatpush1.msra.mxu0 0.0
    %70 = vmatprep.subr.mxu0 0.0
    %71 = vmatpush1.msra.mxu0 0.0
    %72 = vmatprep.subr.mxu0 0.0
    %73 = vmatpush1.msra.mxu0 0.0
    %74 = vmatprep.subr.mxu0 0.0
    %75 = vmatpush1.msra.mxu0 0.0
    %76 = vmatprep.subr.mxu0 0.0
    %77 = vmatpush1.msra.mxu0 0.0
    %78 = vmatprep.subr.mxu0 0.0
    %79 = vmatpush1.msra.mxu0 0.0
    %80 = vmatprep.subr.mxu0 0.0
    %81 = vmatpush1.msra.mxu0 0.0
    %82 = vmatprep.subr.mxu0 0.0
    %83 = vmatpush1.msra.mxu0 0.0
    %84 = vmatprep.subr.mxu0 0.0
    %85 = vmatpush1.msra.mxu0 0.0
    %86 = vmatprep.subr.mxu0 0.0
    %87 = vmatpush1.msra.mxu0 0.0
    %88 = vmatprep.subr.mxu0 0.0
    %89 = vmatpush1.msra.mxu0 0.0
    %90 = vmatprep.subr.mxu0 0.0
    %91 = vmatpush1.msra.mxu0 0.0
    %92 = vmatprep.subr.mxu0 0.0
    %93 = vmatpush1.msra.mxu0 0.0
    %94 = vmatprep.subr.mxu0 0.0
    %95 = vmatpush1.msra.mxu0 0.0
    %96 = vmatprep.subr.mxu0 0.0
    %97 = vmatpush1.msra.mxu0 0.0
    %98 = vmatprep.subr.mxu0 0.0
    %99 = vmatpush1.msra.mxu0 0.0
    %100 = vmatprep.subr.mxu0 0.0
    %101 = vmatpush1.msra.mxu0 0.0
    %102 = vmatprep.subr.mxu0 0.0
    %103 = vmatpush1.msra.mxu0 0.0
    %104 = vmatprep.subr.mxu0 0.0
    %105 = vmatpush1.msra.mxu0 0.0
    %106 = vmatprep.subr.mxu0 0.0
    %107 = vmatpush1.msra.mxu0 0.0
    %108 = vmatprep.subr.mxu0 0.0
    %109 = vmatpush1.msra.mxu0 0.0
    %110 = vmatprep.subr.mxu0 0.0
    %111 = vmatpush1.msra.mxu0 0.0
    %112 = vmatprep.subr.mxu0 0.0
    %113 = vmatpush1.msra.mxu0 0.0
    %114 = vmatprep.subr.mxu0 0.0
    %115 = vmatpush1.msra.mxu0 0.0
    %116 = vmatprep.mubr.f32.mxu0 0.0
    %117 = vmatmul.mubr.f32.gmra.mrb[0].mxu0 %v47
    %v118 = vpop.f32.mrb[0].mxu0
    %v119 = vadd.f32 %v43, %v118
    %v120 = vpop.f32.mrb[0].mxu0
    %121 = vmatprep.mubr.f32.mxu0 0.0
    %122 = vmatmul.mubr.f32.gmra.mrb[0].mxu0 %v50
    %v123 = vpop.f32.mrb[0].mxu0
    %v124 = vadd.f32 %v43, %v123
    %v125 = vpop.f32.mrb[0].mxu0
    %126 = vdwg.mxu0
    %v127 = vld [vmem:[%s3] sm:$0xff]
    %v128 = vld [vmem:[%s3 + $0x8] sm:$0xff]
    %v129 = vld [vmem:[%s3 + $0x10] sm:$0xff]
    %v130 = vld [vmem:[%s3 + $0x18] sm:$0xff]
    %132 = vrot.lane.b32.xlu0 %v119, 96
    %v133 = vpop.permute.xlu0 %132
    %vm134 = vcmask 130048
    %v135 = vsel %vm134, %v119, 0
    %v137 = vsel %vm134, %v133, 0
    %139 = vmatprep.subr.mxu0 0.0
    %140 = vmatpush1.xpose.msra.mxu0 %v137
    %141 = vmatprep.subr.mxu0 0.0
    %142 = vmatpush1.xpose.msra.mxu0 0.0
    %143 = vmatprep.subr.mxu0 0.0
    %144 = vmatpush1.xpose.msra.mxu0 0.0
    %145 = vmatprep.subr.mxu0 0.0
    %146 = vmatpush1.xpose.msra.mxu0 0.0
    %147 = vmatprep.subr.mxu0 0.0
    %148 = vmatpush1.xpose.msra.mxu0 0.0
    %149 = vmatprep.subr.mxu0 0.0
    %150 = vmatpush1.xpose.msra.mxu0 0.0
    %151 = vmatprep.subr.mxu0 0.0
    %152 = vmatpush1.xpose.msra.mxu0 0.0
    %153 = vmatprep.subr.mxu0 0.0
    %154 = vmatpush1.xpose.msra.mxu0 0.0
    %155 = vmatprep.subr.mxu0 0.0
    %156 = vmatpush1.xpose.msra.mxu0 0.0
    %157 = vmatprep.subr.mxu0 0.0
    %158 = vmatpush1.xpose.msra.mxu0 0.0
    %159 = vmatprep.subr.mxu0 0.0
    %160 = vmatpush1.xpose.msra.mxu0 0.0
    %161 = vmatprep.subr.mxu0 0.0
    %162 = vmatpush1.xpose.msra.mxu0 0.0
    %163 = vmatprep.subr.mxu0 0.0
    %164 = vmatpush1.xpose.msra.mxu0 0.0
    %165 = vmatprep.subr.mxu0 0.0
    %166 = vmatpush1.xpose.msra.mxu0 0.0
    %167 = vmatprep.subr.mxu0 0.0
    %168 = vmatpush1.xpose.msra.mxu0 0.0
    %169 = vmatprep.subr.mxu0 0.0
    %170 = vmatpush1.xpose.msra.mxu0 0.0
    %171 = vmatprep.subr.mxu0 0.0
    %172 = vmatpush1.xpose.msra.mxu0 0.0
    %173 = vmatprep.subr.mxu0 0.0
    %174 = vmatpush1.xpose.msra.mxu0 0.0
    %175 = vmatprep.subr.mxu0 0.0
    %176 = vmatpush1.xpose.msra.mxu0 0.0
    %177 = vmatprep.subr.mxu0 0.0
    %178 = vmatpush1.xpose.msra.mxu0 0.0
    %179 = vmatprep.subr.mxu0 0.0
    %180 = vmatpush1.xpose.msra.mxu0 0.0
    %181 = vmatprep.subr.mxu0 0.0
    %182 = vmatpush1.xpose.msra.mxu0 0.0
    %183 = vmatprep.subr.mxu0 0.0
    %184 = vmatpush1.xpose.msra.mxu0 0.0
    %185 = vmatprep.subr.mxu0 0.0
    %186 = vmatpush1.xpose.msra.mxu0 0.0
    %187 = vmatprep.subr.mxu0 0.0
    %188 = vmatpush1.xpose.msra.mxu0 0.0
    %189 = vmatprep.subr.mxu0 0.0
    %190 = vmatpush1.xpose.msra.mxu0 0.0
    %191 = vmatprep.subr.mxu0 0.0
    %192 = vmatpush1.xpose.msra.mxu0 0.0
    %193 = vmatprep.subr.mxu0 0.0
    %194 = vmatpush1.xpose.msra.mxu0 0.0
    %195 = vmatprep.subr.mxu0 0.0
    %196 = vmatpush1.xpose.msra.mxu0 0.0
    %197 = vmatprep.subr.mxu0 0.0
    %198 = vmatpush1.xpose.msra.mxu0 0.0
    %199 = vmatprep.subr.mxu0 0.0
    %200 = vmatpush1.xpose.msra.mxu0 0.0
    %201 = vmatprep.subr.mxu0 0.0
    %202 = vmatpush1.xpose.msra.mxu0 0.0
    %203 = vmatprep.mubr.f32.mxu0 0.0
    %204 = vmatmul.mubr.f32.gmra.mrb[0].mxu0 %v135
    %v205 = vpop.f32.mrb[0].mxu0
    %v206 = vadd.f32 0.0, %v205
    %v207 = vpop.f32.mrb[0].mxu0
    %208 = vdwg.mxu0
    %210 = vrot.lane.b32.xlu0 %v124, 96
    %v211 = vpop.permute.xlu0 %210
    %v212 = vsel %vm134, %v124, 0
    %v214 = vsel %vm134, %v211, 0
    %216 = vmatprep.subr.mxu0 0.0
    %217 = vmatpush1.xpose.msra.mxu0 %v214
    %218 = vmatprep.subr.mxu0 0.0
    %219 = vmatpush1.xpose.msra.mxu0 0.0
    %220 = vmatprep.subr.mxu0 0.0
    %221 = vmatpush1.xpose.msra.mxu0 0.0
    %222 = vmatprep.subr.mxu0 0.0
    %223 = vmatpush1.xpose.msra.mxu0 0.0
    %224 = vmatprep.subr.mxu0 0.0
    %225 = vmatpush1.xpose.msra.mxu0 0.0
    %226 = vmatprep.subr.mxu0 0.0
    %227 = vmatpush1.xpose.msra.mxu0 0.0
    %228 = vmatprep.subr.mxu0 0.0
    %229 = vmatpush1.xpose.msra.mxu0 0.0
    %230 = vmatprep.subr.mxu0 0.0
    %231 = vmatpush1.xpose.msra.mxu0 0.0
    %232 = vmatprep.subr.mxu0 0.0
    %233 = vmatpush1.xpose.msra.mxu0 0.0
    %234 = vmatprep.subr.mxu0 0.0
    %235 = vmatpush1.xpose.msra.mxu0 0.0
    %236 = vmatprep.subr.mxu0 0.0
    %237 = vmatpush1.xpose.msra.mxu0 0.0
    %238 = vmatprep.subr.mxu0 0.0
    %239 = vmatpush1.xpose.msra.mxu0 0.0
    %240 = vmatprep.subr.mxu0 0.0
    %241 = vmatpush1.xpose.msra.mxu0 0.0
    %242 = vmatprep.subr.mxu0 0.0
    %243 = vmatpush1.xpose.msra.mxu0 0.0
    %244 = vmatprep.subr.mxu0 0.0
    %245 = vmatpush1.xpose.msra.mxu0 0.0
    %246 = vmatprep.subr.mxu0 0.0
    %247 = vmatpush1.xpose.msra.mxu0 0.0
    %248 = vmatprep.subr.mxu0 0.0
    %249 = vmatpush1.xpose.msra.mxu0 0.0
    %250 = vmatprep.subr.mxu0 0.0
    %251 = vmatpush1.xpose.msra.mxu0 0.0
    %252 = vmatprep.subr.mxu0 0.0
    %253 = vmatpush1.xpose.msra.mxu0 0.0
    %254 = vmatprep.subr.mxu0 0.0
    %255 = vmatpush1.xpose.msra.mxu0 0.0
    %256 = vmatprep.subr.mxu0 0.0
    %257 = vmatpush1.xpose.msra.mxu0 0.0
    %258 = vmatprep.subr.mxu0 0.0
    %259 = vmatpush1.xpose.msra.mxu0 0.0
    %260 = vmatprep.subr.mxu0 0.0
    %261 = vmatpush1.xpose.msra.mxu0 0.0
    %262 = vmatprep.subr.mxu0 0.0
    %263 = vmatpush1.xpose.msra.mxu0 0.0
    %264 = vmatprep.subr.mxu0 0.0
    %265 = vmatpush1.xpose.msra.mxu0 0.0
    %266 = vmatprep.subr.mxu0 0.0
    %267 = vmatpush1.xpose.msra.mxu0 0.0
    %268 = vmatprep.subr.mxu0 0.0
    %269 = vmatpush1.xpose.msra.mxu0 0.0
    %270 = vmatprep.subr.mxu0 0.0
    %271 = vmatpush1.xpose.msra.mxu0 0.0
    %272 = vmatprep.subr.mxu0 0.0
    %273 = vmatpush1.xpose.msra.mxu0 0.0
    %274 = vmatprep.subr.mxu0 0.0
    %275 = vmatpush1.xpose.msra.mxu0 0.0
    %276 = vmatprep.subr.mxu0 0.0
    %277 = vmatpush1.xpose.msra.mxu0 0.0
    %278 = vmatprep.subr.mxu0 0.0
    %279 = vmatpush1.xpose.msra.mxu0 0.0
    %280 = vmatprep.mubr.f32.mxu0 0.0
    %281 = vmatmul.mubr.f32.gmra.mrb[0].mxu0 %v212
    %v282 = vpop.f32.mrb[0].mxu0
    %v283 = vadd.f32 0.0, %v282
    %v284 = vpop.f32.mrb[0].mxu0
    %285 = vdwg.mxu0
    %vm286 = vcmask 64512
    %v287 = vsel %vm286, %v206, -inf
    %288 = vmax.xlane.f32.xlu0 %v287
    %v289 = vpop.xlane.xlu0 %288
    %v290 = vsel %vm286, %v283, -inf
    %291 = vmax.xlane.f32.xlu0 %v290
    %v292 = vpop.xlane.xlu0 %291
    %v293 = vsub.f32 %v206, %v289
    %v294 = vsub.f32 %v283, %v292
    %v295 = vmul.f32 %v293, 1.442695
    %v296 = vpow.pop %v295
    %v297 = vmul.f32 %v294, 1.442695
    %v298 = vpow.pop %v297
    %v299 = vsel %vm286, %v296, 0.0
    %300 = vadd.xlane.f32.xlu0 %v299
    %v301 = vpop.xlane.xlu0 %300
    %v302 = vsel %vm286, %v298, 0.0
    %303 = vadd.xlane.f32.xlu0 %v302
    %v304 = vpop.xlane.xlu0 %303
    %v305 = vrcp.pop %v301
    %v306 = vmul.f32 %v296, %v305
    %v307 = vrcp.pop %v304
    %v308 = vmul.f32 %v298, %v307
    %309 = vrot.lane.b32.xlu0 %v119, 64
    %v310 = vpop.permute.xlu0 %309
    %v313 = vsel %vm286, %v306, 0
    %315 = vmatprep.subr.mxu0 0.0
    %316 = vmatpush1.msra.mxu0 %v310
    %317 = vmatprep.subr.mxu0 0.0
    %318 = vmatpush1.msra.mxu0 0.0
    %319 = vmatprep.subr.mxu0 0.0
    %320 = vmatpush1.msra.mxu0 0.0
    %321 = vmatprep.subr.mxu0 0.0
    %322 = vmatpush1.msra.mxu0 0.0
    %323 = vmatprep.subr.mxu0 0.0
    %324 = vmatpush1.msra.mxu0 0.0
    %325 = vmatprep.subr.mxu0 0.0
    %326 = vmatpush1.msra.mxu0 0.0
    %327 = vmatprep.subr.mxu0 0.0
    %328 = vmatpush1.msra.mxu0 0.0
    %329 = vmatprep.subr.mxu0 0.0
    %330 = vmatpush1.msra.mxu0 0.0
    %331 = vmatprep.subr.mxu0 0.0
    %332 = vmatpush1.msra.mxu0 0.0
    %333 = vmatprep.subr.mxu0 0.0
    %334 = vmatpush1.msra.mxu0 0.0
    %335 = vmatprep.subr.mxu0 0.0
    %336 = vmatpush1.msra.mxu0 0.0
    %337 = vmatprep.subr.mxu0 0.0
    %338 = vmatpush1.msra.mxu0 0.0
    %339 = vmatprep.subr.mxu0 0.0
    %340 = vmatpush1.msra.mxu0 0.0
    %341 = vmatprep.subr.mxu0 0.0
    %342 = vmatpush1.msra.mxu0 0.0
    %343 = vmatprep.subr.mxu0 0.0
    %344 = vmatpush1.msra.mxu0 0.0
    %345 = vmatprep.subr.mxu0 0.0
    %346 = vmatpush1.msra.mxu0 0.0
    %347 = vmatprep.subr.mxu0 0.0
    %348 = vmatpush1.msra.mxu0 0.0
    %349 = vmatprep.subr.mxu0 0.0
    %350 = vmatpush1.msra.mxu0 0.0
    %351 = vmatprep.subr.mxu0 0.0
    %352 = vmatpush1.msra.mxu0 0.0
    %353 = vmatprep.subr.mxu0 0.0
    %354 = vmatpush1.msra.mxu0 0.0
    %355 = vmatprep.subr.mxu0 0.0
    %356 = vmatpush1.msra.mxu0 0.0
    %357 = vmatprep.subr.mxu0 0.0
    %358 = vmatpush1.msra.mxu0 0.0
    %359 = vmatprep.subr.mxu0 0.0
    %360 = vmatpush1.msra.mxu0 0.0
    %361 = vmatprep.subr.mxu0 0.0
    %362 = vmatpush1.msra.mxu0 0.0
    %363 = vmatprep.subr.mxu0 0.0
    %364 = vmatpush1.msra.mxu0 0.0
    %365 = vmatprep.subr.mxu0 0.0
    %366 = vmatpush1.msra.mxu0 0.0
    %367 = vmatprep.subr.mxu0 0.0
    %368 = vmatpush1.msra.mxu0 0.0
    %369 = vmatprep.subr.mxu0 0.0
    %370 = vmatpush1.msra.mxu0 0.0
    %371 = vmatprep.subr.mxu0 0.0
    %372 = vmatpush1.msra.mxu0 0.0
    %373 = vmatprep.subr.mxu0 0.0
    %374 = vmatpush1.msra.mxu0 0.0
    %375 = vmatprep.subr.mxu0 0.0
    %376 = vmatpush1.msra.mxu0 0.0
    %377 = vmatprep.subr.mxu0 0.0
    %378 = vmatpush1.msra.mxu0 0.0
    %379 = vmatprep.mubr.f32.mxu0 0.0
    %380 = vmatmul.mubr.f32.gmra.mrb[0].mxu0 %v313
    %v381 = vpop.f32.mrb[0].mxu0
    %v382 = vadd.f32 0.0, %v381
    %v383 = vpop.f32.mrb[0].mxu0
    %384 = vdwg.mxu0
    %385 = vrot.lane.b32.xlu0 %v124, 64
    %v386 = vpop.permute.xlu0 %385
    %v389 = vsel %vm286, %v308, 0
    %391 = vmatprep.subr.mxu0 0.0
    %392 = vmatpush1.msra.mxu0 %v386
    %393 = vmatprep.subr.mxu0 0.0
    %394 = vmatpush1.msra.mxu0 0.0
    %395 = vmatprep.subr.mxu0 0.0
    %396 = vmatpush1.msra.mxu0 0.0
    %397 = vmatprep.subr.mxu0 0.0
    %398 = vmatpush1.msra.mxu0 0.0
    %399 = vmatprep.subr.mxu0 0.0
    %400 = vmatpush1.msra.mxu0 0.0
    %401 = vmatprep.subr.mxu0 0.0
    %402 = vmatpush1.msra.mxu0 0.0
    %403 = vmatprep.subr.mxu0 0.0
    %404 = vmatpush1.msra.mxu0 0.0
    %405 = vmatprep.subr.mxu0 0.0
    %406 = vmatpush1.msra.mxu0 0.0
    %407 = vmatprep.subr.mxu0 0.0
    %408 = vmatpush1.msra.mxu0 0.0
    %409 = vmatprep.subr.mxu0 0.0
    %410 = vmatpush1.msra.mxu0 0.0
    %411 = vmatprep.subr.mxu0 0.0
    %412 = vmatpush1.msra.mxu0 0.0
    %413 = vmatprep.subr.mxu0 0.0
    %414 = vmatpush1.msra.mxu0 0.0
    %415 = vmatprep.subr.mxu0 0.0
    %416 = vmatpush1.msra.mxu0 0.0
    %417 = vmatprep.subr.mxu0 0.0
    %418 = vmatpush1.msra.mxu0 0.0
    %419 = vmatprep.subr.mxu0 0.0
    %420 = vmatpush1.msra.mxu0 0.0
    %421 = vmatprep.subr.mxu0 0.0
    %422 = vmatpush1.msra.mxu0 0.0
    %423 = vmatprep.subr.mxu0 0.0
    %424 = vmatpush1.msra.mxu0 0.0
    %425 = vmatprep.subr.mxu0 0.0
    %426 = vmatpush1.msra.mxu0 0.0
    %427 = vmatprep.subr.mxu0 0.0
    %428 = vmatpush1.msra.mxu0 0.0
    %429 = vmatprep.subr.mxu0 0.0
    %430 = vmatpush1.msra.mxu0 0.0
    %431 = vmatprep.subr.mxu0 0.0
    %432 = vmatpush1.msra.mxu0 0.0
    %433 = vmatprep.subr.mxu0 0.0
    %434 = vmatpush1.msra.mxu0 0.0
    %435 = vmatprep.subr.mxu0 0.0
    %436 = vmatpush1.msra.mxu0 0.0
    %437 = vmatprep.subr.mxu0 0.0
    %438 = vmatpush1.msra.mxu0 0.0
    %439 = vmatprep.subr.mxu0 0.0
    %440 = vmatpush1.msra.mxu0 0.0
    %441 = vmatprep.subr.mxu0 0.0
    %442 = vmatpush1.msra.mxu0 0.0
    %443 = vmatprep.subr.mxu0 0.0
    %444 = vmatpush1.msra.mxu0 0.0
    %445 = vmatprep.subr.mxu0 0.0
    %446 = vmatpush1.msra.mxu0 0.0
    %447 = vmatprep.subr.mxu0 0.0
    %448 = vmatpush1.msra.mxu0 0.0
    %449 = vmatprep.subr.mxu0 0.0
    %450 = vmatpush1.msra.mxu0 0.0
    %451 = vmatprep.subr.mxu0 0.0
    %452 = vmatpush1.msra.mxu0 0.0
    %453 = vmatprep.subr.mxu0 0.0
    %454 = vmatpush1.msra.mxu0 0.0
    %455 = vmatprep.mubr.f32.mxu0 0.0
    %456 = vmatmul.mubr.f32.gmra.mrb[0].mxu0 %v389
    %v457 = vpop.f32.mrb[0].mxu0
    %v458 = vadd.f32 0.0, %v457
    %v459 = vpop.f32.mrb[0].mxu0
    %460 = vdwg.mxu0
    %461 = vrot.lane.b32.xlu0 %v119, 112
    %v462 = vpop.permute.xlu0 %461
    %463 = vrot.lane.b32.xlu0 %v119, 80
    %v464 = vpop.permute.xlu0 %463
    %v465 = vsel %vm134, %v462, 0
    %v467 = vsel %vm134, %v464, 0
    %469 = vmatprep.subr.mxu0 0.0
    %470 = vmatpush1.xpose.msra.mxu0 %v467
    %471 = vmatprep.subr.mxu0 0.0
    %472 = vmatpush1.xpose.msra.mxu0 0.0
    %473 = vmatprep.subr.mxu0 0.0
    %474 = vmatpush1.xpose.msra.mxu0 0.0
    %475 = vmatprep.subr.mxu0 0.0
    %476 = vmatpush1.xpose.msra.mxu0 0.0
    %477 = vmatprep.subr.mxu0 0.0
    %478 = vmatpush1.xpose.msra.mxu0 0.0
    %479 = vmatprep.subr.mxu0 0.0
    %480 = vmatpush1.xpose.msra.mxu0 0.0
    %481 = vmatprep.subr.mxu0 0.0
    %482 = vmatpush1.xpose.msra.mxu0 0.0
    %483 = vmatprep.subr.mxu0 0.0
    %484 = vmatpush1.xpose.msra.mxu0 0.0
    %485 = vmatprep.subr.mxu0 0.0
    %486 = vmatpush1.xpose.msra.mxu0 0.0
    %487 = vmatprep.subr.mxu0 0.0
    %488 = vmatpush1.xpose.msra.mxu0 0.0
    %489 = vmatprep.subr.mxu0 0.0
    %490 = vmatpush1.xpose.msra.mxu0 0.0
    %491 = vmatprep.subr.mxu0 0.0
    %492 = vmatpush1.xpose.msra.mxu0 0.0
    %493 = vmatprep.subr.mxu0 0.0
    %494 = vmatpush1.xpose.msra.mxu0 0.0
    %495 = vmatprep.subr.mxu0 0.0
    %496 = vmatpush1.xpose.msra.mxu0 0.0
    %497 = vmatprep.subr.mxu0 0.0
    %498 = vmatpush1.xpose.msra.mxu0 0.0
    %499 = vmatprep.subr.mxu0 0.0
    %500 = vmatpush1.xpose.msra.mxu0 0.0
    %501 = vmatprep.subr.mxu0 0.0
    %502 = vmatpush1.xpose.msra.mxu0 0.0
    %503 = vmatprep.subr.mxu0 0.0
    %504 = vmatpush1.xpose.msra.mxu0 0.0
    %505 = vmatprep.subr.mxu0 0.0
    %506 = vmatpush1.xpose.msra.mxu0 0.0
    %507 = vmatprep.subr.mxu0 0.0
    %508 = vmatpush1.xpose.msra.mxu0 0.0
    %509 = vmatprep.subr.mxu0 0.0
    %510 = vmatpush1.xpose.msra.mxu0 0.0
    %511 = vmatprep.subr.mxu0 0.0
    %512 = vmatpush1.xpose.msra.mxu0 0.0
    %513 = vmatprep.subr.mxu0 0.0
    %514 = vmatpush1.xpose.msra.mxu0 0.0
    %515 = vmatprep.subr.mxu0 0.0
    %516 = vmatpush1.xpose.msra.mxu0 0.0
    %517 = vmatprep.subr.mxu0 0.0
    %518 = vmatpush1.xpose.msra.mxu0 0.0
    %519 = vmatprep.subr.mxu0 0.0
    %520 = vmatpush1.xpose.msra.mxu0 0.0
    %521 = vmatprep.subr.mxu0 0.0
    %522 = vmatpush1.xpose.msra.mxu0 0.0
    %523 = vmatprep.subr.mxu0 0.0
    %524 = vmatpush1.xpose.msra.mxu0 0.0
    %525 = vmatprep.subr.mxu0 0.0
    %526 = vmatpush1.xpose.msra.mxu0 0.0
    %527 = vmatprep.subr.mxu0 0.0
    %528 = vmatpush1.xpose.msra.mxu0 0.0
    %529 = vmatprep.subr.mxu0 0.0
    %530 = vmatpush1.xpose.msra.mxu0 0.0
    %531 = vmatprep.subr.mxu0 0.0
    %532 = vmatpush1.xpose.msra.mxu0 0.0
    %533 = vmatprep.mubr.f32.mxu0 0.0
    %534 = vmatmul.mubr.f32.gmra.mrb[0].mxu0 %v465
    %v535 = vpop.f32.mrb[0].mxu0
    %v536 = vadd.f32 0.0, %v535
    %v537 = vpop.f32.mrb[0].mxu0
    %538 = vdwg.mxu0
    %539 = vrot.lane.b32.xlu0 %v124, 112
    %v540 = vpop.permute.xlu0 %539
    %541 = vrot.lane.b32.xlu0 %v124, 80
    %v542 = vpop.permute.xlu0 %541
    %v543 = vsel %vm134, %v540, 0
    %v545 = vsel %vm134, %v542, 0
    %547 = vmatprep.subr.mxu0 0.0
    %548 = vmatpush1.xpose.msra.mxu0 %v545
    %549 = vmatprep.subr.mxu0 0.0
    %550 = vmatpush1.xpose.msra.mxu0 0.0
    %551 = vmatprep.subr.mxu0 0.0
    %552 = vmatpush1.xpose.msra.mxu0 0.0
    %553 = vmatprep.subr.mxu0 0.0
    %554 = vmatpush1.xpose.msra.mxu0 0.0
    %555 = vmatprep.subr.mxu0 0.0
    %556 = vmatpush1.xpose.msra.mxu0 0.0
    %557 = vmatprep.subr.mxu0 0.0
    %558 = vmatpush1.xpose.msra.mxu0 0.0
    %559 = vmatprep.subr.mxu0 0.0
    %560 = vmatpush1.xpose.msra.mxu0 0.0
    %561 = vmatprep.subr.mxu0 0.0
    %562 = vmatpush1.xpose.msra.mxu0 0.0
    %563 = vmatprep.subr.mxu0 0.0
    %564 = vmatpush1.xpose.msra.mxu0 0.0
    %565 = vmatprep.subr.mxu0 0.0
    %566 = vmatpush1.xpose.msra.mxu0 0.0
    %567 = vmatprep.subr.mxu0 0.0
    %568 = vmatpush1.xpose.msra.mxu0 0.0
    %569 = vmatprep.subr.mxu0 0.0
    %570 = vmatpush1.xpose.msra.mxu0 0.0
    %571 = vmatprep.subr.mxu0 0.0
    %572 = vmatpush1.xpose.msra.mxu0 0.0
    %573 = vmatprep.subr.mxu0 0.0
    %574 = vmatpush1.xpose.msra.mxu0 0.0
    %575 = vmatprep.subr.mxu0 0.0
    %576 = vmatpush1.xpose.msra.mxu0 0.0
    %577 = vmatprep.subr.mxu0 0.0
    %578 = vmatpush1.xpose.msra.mxu0 0.0
    %579 = vmatprep.subr.mxu0 0.0
    %580 = vmatpush1.xpose.msra.mxu0 0.0
    %581 = vmatprep.subr.mxu0 0.0
    %582 = vmatpush1.xpose.msra.mxu0 0.0
    %583 = vmatprep.subr.mxu0 0.0
    %584 = vmatpush1.xpose.msra.mxu0 0.0
    %585 = vmatprep.subr.mxu0 0.0
    %586 = vmatpush1.xpose.msra.mxu0 0.0
    %587 = vmatprep.subr.mxu0 0.0
    %588 = vmatpush1.xpose.msra.mxu0 0.0
    %589 = vmatprep.subr.mxu0 0.0
    %590 = vmatpush1.xpose.msra.mxu0 0.0
    %591 = vmatprep.subr.mxu0 0.0
    %592 = vmatpush1.xpose.msra.mxu0 0.0
    %593 = vmatprep.subr.mxu0 0.0
    %594 = vmatpush1.xpose.msra.mxu0 0.0
    %595 = vmatprep.subr.mxu0 0.0
    %596 = vmatpush1.xpose.msra.mxu0 0.0
    %597 = vmatprep.subr.mxu0 0.0
    %598 = vmatpush1.xpose.msra.mxu0 0.0
    %599 = vmatprep.subr.mxu0 0.0
    %600 = vmatpush1.xpose.msra.mxu0 0.0
    %601 = vmatprep.subr.mxu0 0.0
    %602 = vmatpush1.xpose.msra.mxu0 0.0
    %603 = vmatprep.subr.mxu0 0.0
    %604 = vmatpush1.xpose.msra.mxu0 0.0
    %605 = vmatprep.subr.mxu0 0.0
    %606 = vmatpush1.xpose.msra.mxu0 0.0
    %607 = vmatprep.subr.mxu0 0.0
    %608 = vmatpush1.xpose.msra.mxu0 0.0
    %609 = vmatprep.subr.mxu0 0.0
    %610 = vmatpush1.xpose.msra.mxu0 0.0
    %611 = vmatprep.mubr.f32.mxu0 0.0
    %612 = vmatmul.mubr.f32.gmra.mrb[0].mxu0 %v543
    %v613 = vpop.f32.mrb[0].mxu0
    %v614 = vadd.f32 0.0, %v613
    %v615 = vpop.f32.mrb[0].mxu0
    %616 = vdwg.mxu0
    %v617 = vsel %vm286, %v536, -inf
    %618 = vmax.xlane.f32.xlu0 %v617
    %v619 = vpop.xlane.xlu0 %618
    %v620 = vsel %vm286, %v614, -inf
    %621 = vmax.xlane.f32.xlu0 %v620
    %v622 = vpop.xlane.xlu0 %621
    %v623 = vsub.f32 %v536, %v619
    %v624 = vsub.f32 %v614, %v622
    %v625 = vmul.f32 %v623, 1.442695
    %v626 = vpow.pop %v625
    %v627 = vmul.f32 %v624, 1.442695
    %v628 = vpow.pop %v627
    %v629 = vsel %vm286, %v626, 0.0
    %630 = vadd.xlane.f32.xlu0 %v629
    %v631 = vpop.xlane.xlu0 %630
    %v632 = vsel %vm286, %v628, 0.0
    %633 = vadd.xlane.f32.xlu0 %v632
    %v634 = vpop.xlane.xlu0 %633
    %v635 = vrcp.pop %v631
    %v636 = vmul.f32 %v626, %v635
    %v637 = vrcp.pop %v634
    %v638 = vmul.f32 %v628, %v637
    %639 = vrot.lane.b32.xlu0 %v119, 48
    %v640 = vpop.permute.xlu0 %639
    %v643 = vsel %vm286, %v636, 0
    %645 = vmatprep.subr.mxu0 0.0
    %646 = vmatpush1.msra.mxu0 %v640
    %647 = vmatprep.subr.mxu0 0.0
    %648 = vmatpush1.msra.mxu0 0.0
    %649 = vmatprep.subr.mxu0 0.0
    %650 = vmatpush1.msra.mxu0 0.0
    %651 = vmatprep.subr.mxu0 0.0
    %652 = vmatpush1.msra.mxu0 0.0
    %653 = vmatprep.subr.mxu0 0.0
    %654 = vmatpush1.msra.mxu0 0.0
    %655 = vmatprep.subr.mxu0 0.0
    %656 = vmatpush1.msra.mxu0 0.0
    %657 = vmatprep.subr.mxu0 0.0
    %658 = vmatpush1.msra.mxu0 0.0
    %659 = vmatprep.subr.mxu0 0.0
    %660 = vmatpush1.msra.mxu0 0.0
    %661 = vmatprep.subr.mxu0 0.0
    %662 = vmatpush1.msra.mxu0 0.0
    %663 = vmatprep.subr.mxu0 0.0
    %664 = vmatpush1.msra.mxu0 0.0
    %665 = vmatprep.subr.mxu0 0.0
    %666 = vmatpush1.msra.mxu0 0.0
    %667 = vmatprep.subr.mxu0 0.0
    %668 = vmatpush1.msra.mxu0 0.0
    %669 = vmatprep.subr.mxu0 0.0
    %670 = vmatpush1.msra.mxu0 0.0
    %671 = vmatprep.subr.mxu0 0.0
    %672 = vmatpush1.msra.mxu0 0.0
    %673 = vmatprep.subr.mxu0 0.0
    %674 = vmatpush1.msra.mxu0 0.0
    %675 = vmatprep.subr.mxu0 0.0
    %676 = vmatpush1.msra.mxu0 0.0
    %677 = vmatprep.subr.mxu0 0.0
    %678 = vmatpush1.msra.mxu0 0.0
    %679 = vmatprep.subr.mxu0 0.0
    %680 = vmatpush1.msra.mxu0 0.0
    %681 = vmatprep.subr.mxu0 0.0
    %682 = vmatpush1.msra.mxu0 0.0
    %683 = vmatprep.subr.mxu0 0.0
    %684 = vmatpush1.msra.mxu0 0.0
    %685 = vmatprep.subr.mxu0 0.0
    %686 = vmatpush1.msra.mxu0 0.0
    %687 = vmatprep.subr.mxu0 0.0
    %688 = vmatpush1.msra.mxu0 0.0
    %689 = vmatprep.subr.mxu0 0.0
    %690 = vmatpush1.msra.mxu0 0.0
    %691 = vmatprep.subr.mxu0 0.0
    %692 = vmatpush1.msra.mxu0 0.0
    %693 = vmatprep.subr.mxu0 0.0
    %694 = vmatpush1.msra.mxu0 0.0
    %695 = vmatprep.subr.mxu0 0.0
    %696 = vmatpush1.msra.mxu0 0.0
    %697 = vmatprep.subr.mxu0 0.0
    %698 = vmatpush1.msra.mxu0 0.0
    %699 = vmatprep.subr.mxu0 0.0
    %700 = vmatpush1.msra.mxu0 0.0
    %701 = vmatprep.subr.mxu0 0.0
    %702 = vmatpush1.msra.mxu0 0.0
    %703 = vmatprep.subr.mxu0 0.0
    %704 = vmatpush1.msra.mxu0 0.0
    %705 = vmatprep.subr.mxu0 0.0
    %706 = vmatpush1.msra.mxu0 0.0
    %707 = vmatprep.subr.mxu0 0.0
    %708 = vmatpush1.msra.mxu0 0.0
    %709 = vmatprep.mubr.f32.mxu0 0.0
    %710 = vmatmul.mubr.f32.gmra.mrb[0].mxu0 %v643
    %v711 = vpop.f32.mrb[0].mxu0
    %v712 = vadd.f32 0.0, %v711
    %v713 = vpop.f32.mrb[0].mxu0
    %714 = vdwg.mxu0
    %715 = vrot.lane.b32.xlu0 %v124, 48
    %v716 = vpop.permute.xlu0 %715
    %v719 = vsel %vm286, %v638, 0
    %721 = vmatprep.subr.mxu0 0.0
    %722 = vmatpush1.msra.mxu0 %v716
    %723 = vmatprep.subr.mxu0 0.0
    %724 = vmatpush1.msra.mxu0 0.0
    %725 = vmatprep.subr.mxu0 0.0
    %726 = vmatpush1.msra.mxu0 0.0
    %727 = vmatprep.subr.mxu0 0.0
    %728 = vmatpush1.msra.mxu0 0.0
    %729 = vmatprep.subr.mxu0 0.0
    %730 = vmatpush1.msra.mxu0 0.0
    %731 = vmatprep.subr.mxu0 0.0
    %732 = vmatpush1.msra.mxu0 0.0
    %733 = vmatprep.subr.mxu0 0.0
    %734 = vmatpush1.msra.mxu0 0.0
    %735 = vmatprep.subr.mxu0 0.0
    %736 = vmatpush1.msra.mxu0 0.0
    %737 = vmatprep.subr.mxu0 0.0
    %738 = vmatpush1.msra.mxu0 0.0
    %739 = vmatprep.subr.mxu0 0.0
    %740 = vmatpush1.msra.mxu0 0.0
    %741 = vmatprep.subr.mxu0 0.0
    %742 = vmatpush1.msra.mxu0 0.0
    %743 = vmatprep.subr.mxu0 0.0
    %744 = vmatpush1.msra.mxu0 0.0
    %745 = vmatprep.subr.mxu0 0.0
    %746 = vmatpush1.msra.mxu0 0.0
    %747 = vmatprep.subr.mxu0 0.0
    %748 = vmatpush1.msra.mxu0 0.0
    %749 = vmatprep.subr.mxu0 0.0
    %750 = vmatpush1.msra.mxu0 0.0
    %751 = vmatprep.subr.mxu0 0.0
    %752 = vmatpush1.msra.mxu0 0.0
    %753 = vmatprep.subr.mxu0 0.0
    %754 = vmatpush1.msra.mxu0 0.0
    %755 = vmatprep.subr.mxu0 0.0
    %756 = vmatpush1.msra.mxu0 0.0
    %757 = vmatprep.subr.mxu0 0.0
    %758 = vmatpush1.msra.mxu0 0.0
    %759 = vmatprep.subr.mxu0 0.0
    %760 = vmatpush1.msra.mxu0 0.0
    %761 = vmatprep.subr.mxu0 0.0
    %762 = vmatpush1.msra.mxu0 0.0
    %763 = vmatprep.subr.mxu0 0.0
    %764 = vmatpush1.msra.mxu0 0.0
    %765 = vmatprep.subr.mxu0 0.0
    %766 = vmatpush1.msra.mxu0 0.0
    %767 = vmatprep.subr.mxu0 0.0
    %768 = vmatpush1.msra.mxu0 0.0
    %769 = vmatprep.subr.mxu0 0.0
    %770 = vmatpush1.msra.mxu0 0.0
    %771 = vmatprep.subr.mxu0 0.0
    %772 = vmatpush1.msra.mxu0 0.0
    %773 = vmatprep.subr.mxu0 0.0
    %774 = vmatpush1.msra.mxu0 0.0
    %775 = vmatprep.subr.mxu0 0.0
    %776 = vmatpush1.msra.mxu0 0.0
    %777 = vmatprep.subr.mxu0 0.0
    %778 = vmatpush1.msra.mxu0 0.0
    %779 = vmatprep.subr.mxu0 0.0
    %780 = vmatpush1.msra.mxu0 0.0
    %781 = vmatprep.subr.mxu0 0.0
    %782 = vmatpush1.msra.mxu0 0.0
    %783 = vmatprep.subr.mxu0 0.0
    %784 = vmatpush1.msra.mxu0 0.0
    %785 = vmatprep.mubr.f32.mxu0 0.0
    %786 = vmatmul.mubr.f32.gmra.mrb[0].mxu0 %v719
    %v787 = vpop.f32.mrb[0].mxu0
    %v788 = vadd.f32 0.0, %v787
    %v789 = vpop.f32.mrb[0].mxu0
    %790 = vdwg.mxu0
    %v792 = vsel %vm134, %v712, 0
    %v795 = vsel %vm134, %v788, 0
    %797 = vmatprep.subr.mxu0 0.0
    %798 = vmatpush1.msra.mxu0 %v129
    %799 = vmatprep.subr.mxu0 0.0
    %800 = vmatpush1.msra.mxu0 %v130
    %801 = vmatprep.subr.mxu0 0.0
    %802 = vmatpush1.msra.mxu0 0.0
    %803 = vmatprep.subr.mxu0 0.0
    %804 = vmatpush1.msra.mxu0 0.0
    %805 = vmatprep.subr.mxu0 0.0
    %806 = vmatpush1.msra.mxu0 0.0
    %807 = vmatprep.subr.mxu0 0.0
    %808 = vmatpush1.msra.mxu0 0.0
    %809 = vmatprep.subr.mxu0 0.0
    %810 = vmatpush1.msra.mxu0 0.0
    %811 = vmatprep.subr.mxu0 0.0
    %812 = vmatpush1.msra.mxu0 0.0
    %813 = vmatprep.subr.mxu0 0.0
    %814 = vmatpush1.msra.mxu0 0.0
    %815 = vmatprep.subr.mxu0 0.0
    %816 = vmatpush1.msra.mxu0 0.0
    %817 = vmatprep.subr.mxu0 0.0
    %818 = vmatpush1.msra.mxu0 0.0
    %819 = vmatprep.subr.mxu0 0.0
    %820 = vmatpush1.msra.mxu0 0.0
    %821 = vmatprep.subr.mxu0 0.0
    %822 = vmatpush1.msra.mxu0 0.0
    %823 = vmatprep.subr.mxu0 0.0
    %824 = vmatpush1.msra.mxu0 0.0
    %825 = vmatprep.subr.mxu0 0.0
    %826 = vmatpush1.msra.mxu0 0.0
    %827 = vmatprep.subr.mxu0 0.0
    %828 = vmatpush1.msra.mxu0 0.0
    %829 = vmatprep.subr.mxu0 0.0
    %830 = vmatpush1.msra.mxu0 0.0
    %831 = vmatprep.subr.mxu0 0.0
    %832 = vmatpush1.msra.mxu0 0.0
    %833 = vmatprep.subr.mxu0 0.0
    %834 = vmatpush1.msra.mxu0 0.0
    %835 = vmatprep.subr.mxu0 0.0
    %836 = vmatpush1.msra.mxu0 0.0
    %837 = vmatprep.subr.mxu0 0.0
    %838 = vmatpush1.msra.mxu0 0.0
    %839 = vmatprep.subr.mxu0 0.0
    %840 = vmatpush1.msra.mxu0 0.0
    %841 = vmatprep.subr.mxu0 0.0
    %842 = vmatpush1.msra.mxu0 0.0
    %843 = vmatprep.subr.mxu0 0.0
    %844 = vmatpush1.msra.mxu0 0.0
    %845 = vmatprep.subr.mxu0 0.0
    %846 = vmatpush1.msra.mxu0 0.0
    %847 = vmatprep.subr.mxu0 0.0
    %848 = vmatpush1.msra.mxu0 0.0
    %849 = vmatprep.subr.mxu0 0.0
    %850 = vmatpush1.msra.mxu0 0.0
    %851 = vmatprep.subr.mxu0 0.0
    %852 = vmatpush1.msra.mxu0 0.0
    %853 = vmatprep.subr.mxu0 0.0
    %854 = vmatpush1.msra.mxu0 0.0
    %855 = vmatprep.subr.mxu0 0.0
    %856 = vmatpush1.msra.mxu0 0.0
    %857 = vmatprep.subr.mxu0 0.0
    %858 = vmatpush1.msra.mxu0 0.0
    %859 = vmatprep.subr.mxu0 0.0
    %860 = vmatpush1.msra.mxu0 0.0
    %861 = vmatprep.mubr.f32.mxu0 0.0
    %862 = vmatmul.mubr.f32.gmra.mrb[0].mxu0 %v792
    %v863 = vpop.f32.mrb[0].mxu0
    %v864 = vadd.f32 0.0, %v863
    %v865 = vpop.f32.mrb[0].mxu0
    %866 = vmatprep.mubr.f32.mxu0 0.0
    %867 = vmatmul.mubr.f32.gmra.mrb[0].mxu0 %v795
    %v868 = vpop.f32.mrb[0].mxu0
    %v869 = vadd.f32 0.0, %v868
    %v870 = vpop.f32.mrb[0].mxu0
    %871 = vdwg.mxu0
    %v873 = vsel %vm134, %v382, 0
    %v876 = vsel %vm134, %v458, 0
    %878 = vmatprep.subr.mxu0 0.0
    %879 = vmatpush1.msra.mxu0 %v127
    %880 = vmatprep.subr.mxu0 0.0
    %881 = vmatpush1.msra.mxu0 %v128
    %882 = vmatprep.subr.mxu0 0.0
    %883 = vmatpush1.msra.mxu0 0.0
    %884 = vmatprep.subr.mxu0 0.0
    %885 = vmatpush1.msra.mxu0 0.0
    %886 = vmatprep.subr.mxu0 0.0
    %887 = vmatpush1.msra.mxu0 0.0
    %888 = vmatprep.subr.mxu0 0.0
    %889 = vmatpush1.msra.mxu0 0.0
    %890 = vmatprep.subr.mxu0 0.0
    %891 = vmatpush1.msra.mxu0 0.0
    %892 = vmatprep.subr.mxu0 0.0
    %893 = vmatpush1.msra.mxu0 0.0
    %894 = vmatprep.subr.mxu0 0.0
    %895 = vmatpush1.msra.mxu0 0.0
    %896 = vmatprep.subr.mxu0 0.0
    %897 = vmatpush1.msra.mxu0 0.0
    %898 = vmatprep.subr.mxu0 0.0
    %899 = vmatpush1.msra.mxu0 0.0
    %900 = vmatprep.subr.mxu0 0.0
    %901 = vmatpush1.msra.mxu0 0.0
    %902 = vmatprep.subr.mxu0 0.0
    %903 = vmatpush1.msra.mxu0 0.0
    %904 = vmatprep.subr.mxu0 0.0
    %905 = vmatpush1.msra.mxu0 0.0
    %906 = vmatprep.subr.mxu0 0.0
    %907 = vmatpush1.msra.mxu0 0.0
    %908 = vmatprep.subr.mxu0 0.0
    %909 = vmatpush1.msra.mxu0 0.0
    %910 = vmatprep.subr.mxu0 0.0
    %911 = vmatpush1.msra.mxu0 0.0
    %912 = vmatprep.subr.mxu0 0.0
    %913 = vmatpush1.msra.mxu0 0.0
    %914 = vmatprep.subr.mxu0 0.0
    %915 = vmatpush1.msra.mxu0 0.0
    %916 = vmatprep.subr.mxu0 0.0
    %917 = vmatpush1.msra.mxu0 0.0
    %918 = vmatprep.subr.mxu0 0.0
    %919 = vmatpush1.msra.mxu0 0.0
    %920 = vmatprep.subr.mxu0 0.0
    %921 = vmatpush1.msra.mxu0 0.0
    %922 = vmatprep.subr.mxu0 0.0
    %923 = vmatpush1.msra.mxu0 0.0
    %924 = vmatprep.subr.mxu0 0.0
    %925 = vmatpush1.msra.mxu0 0.0
    %926 = vmatprep.subr.mxu0 0.0
    %927 = vmatpush1.msra.mxu0 0.0
    %928 = vmatprep.subr.mxu0 0.0
    %929 = vmatpush1.msra.mxu0 0.0
    %930 = vmatprep.subr.mxu0 0.0
    %931 = vmatpush1.msra.mxu0 0.0
    %932 = vmatprep.subr.mxu0 0.0
    %933 = vmatpush1.msra.mxu0 0.0
    %934 = vmatprep.subr.mxu0 0.0
    %935 = vmatpush1.msra.mxu0 0.0
    %936 = vmatprep.subr.mxu0 0.0
    %937 = vmatpush1.msra.mxu0 0.0
    %938 = vmatprep.subr.mxu0 0.0
    %939 = vmatpush1.msra.mxu0 0.0
    %940 = vmatprep.subr.mxu0 0.0
    %941 = vmatpush1.msra.mxu0 0.0
    %942 = vmatprep.mubr.f32.mxu0 0.0
    %943 = vmatmul.mubr.f32.gmra.mrb[0].mxu0 %v873
    %v944 = vpop.f32.mrb[0].mxu0
    %v945 = vadd.f32 %v864, %v944
    %v946 = vpop.f32.mrb[0].mxu0
    %947 = vmatprep.mubr.f32.mxu0 0.0
    %948 = vmatmul.mubr.f32.gmra.mrb[0].mxu0 %v876
    %v949 = vpop.f32.mrb[0].mxu0
    %v950 = vadd.f32 %v869, %v949
    %v951 = vpop.f32.mrb[0].mxu0
    %952 = vdwg.mxu0
    %v953 = vlaneseq
    %v954 = vshrl.u32 %v953, 7
    %v955 = vsub.s32 0, %v954
    %v956 = vrot.slane %v32, %v955
    %v957 = vadd.f32 %v945, %v956
    %v958 = vadd.f32 %v950, %v956
    %v959 = vadd.f32 %v30, %v957
    %v960 = vadd.f32 %v31, %v958
    %v961 = vsel %vm45, %v959, 0.0
    %962 = vadd.xlane.f32.xlu0 %v961
    %v963 = vpop.xlane.xlu0 %962
    %v964 = vsel %vm45, %v960, 0.0
    %965 = vadd.xlane.f32.xlu0 %v964
    %v966 = vpop.xlane.xlu0 %965
    %v967 = vrcp.pop 32.0
    %v968 = vmul.f32 %v963, %v967
    %v969 = vmul.f32 %v966, %v967
    %v970 = vsub.f32 %v959, %v968
    %v971 = vsub.f32 %v960, %v969
    %v972 = vmul.f32 %v970, %v970
    %v973 = vmul.f32 %v971, %v971
    %v974 = vsel %vm45, %v972, 0.0
    %975 = vadd.xlane.f32.xlu0 %v974
    %v976 = vpop.xlane.xlu0 %975
    %v977 = vsel %vm45, %v973, 0.0
    %978 = vadd.xlane.f32.xlu0 %v977
    %v979 = vpop.xlane.xlu0 %978
    %v980 = vmul.f32 %v976, %v967
    %v981 = vmul.f32 %v979, %v967
    %v982 = vadd.f32 %v980, 1e-05
    %v983 = vadd.f32 %v981, 1e-05
    %v984 = vrsqrt.pop %v982
    %v985 = vrsqrt.pop %v983
    %v986 = vmul.f32 %v970, %v984
    %v987 = vmul.f32 %v971, %v985
    %v988 = vlaneseq
    %v989 = vshrl.u32 %v988, 7
    %v990 = vsub.s32 3, %v989
    %v991 = vrot.slane %v32, %v990
    %v992 = vmul.f32 %v986, %v991
    %v993 = vmul.f32 %v987, %v991
    %v994 = vlaneseq
    %v995 = vshrl.u32 %v994, 7
    %v996 = vsub.s32 4, %v995
    %v997 = vrot.slane %v32, %v996
    %v998 = vadd.f32 %v992, %v997
    %v999 = vadd.f32 %v993, %v997
    %s1000 = scalar_lea.vmem %s1, 32
    %v1001 = vld [vmem:[%s1000] sm:$0xff]
    %v1002 = vld [vmem:[%s1000 + $0x8] sm:$0xff]
    %v1003 = vld [vmem:[%s1000 + $0x10] sm:$0xff]
    %v1004 = vld [vmem:[%s1000 + $0x18] sm:$0xff]
    %s1005 = scalar_lea.vmem %s2, 1
    %v1006 = vld [vmem:[%s1005] sm:$0x1]
    %v1008 = vlaneseq
    %v1009 = vshrl.u32 %v1008, 7
    %v1010 = vsub.s32 0, %v1009
    %v1011 = vrot.slane %v1006, %v1010
    %v1014 = vsel %vm45, %v998, 0
    %v1017 = vsel %vm45, %v999, 0
    %1019 = vmatprep.subr.mxu0 0.0
    %1020 = vmatpush1.msra.mxu0 %v1001
    %1021 = vmatprep.subr.mxu0 0.0
    %1022 = vmatpush1.msra.mxu0 %v1002
    %1023 = vmatprep.subr.mxu0 0.0
    %1024 = vmatpush1.msra.mxu0 %v1003
    %1025 = vmatprep.subr.mxu0 0.0
    %1026 = vmatpush1.msra.mxu0 %v1004
    %1027 = vmatprep.subr.mxu0 0.0
    %1028 = vmatpush1.msra.mxu0 0.0
    %1029 = vmatprep.subr.mxu0 0.0
    %1030 = vmatpush1.msra.mxu0 0.0
    %1031 = vmatprep.subr.mxu0 0.0
    %1032 = vmatpush1.msra.mxu0 0.0
    %1033 = vmatprep.subr.mxu0 0.0
    %1034 = vmatpush1.msra.mxu0 0.0
    %1035 = vmatprep.subr.mxu0 0.0
    %1036 = vmatpush1.msra.mxu0 0.0
    %1037 = vmatprep.subr.mxu0 0.0
    %1038 = vmatpush1.msra.mxu0 0.0
    %1039 = vmatprep.subr.mxu0 0.0
    %1040 = vmatpush1.msra.mxu0 0.0
    %1041 = vmatprep.subr.mxu0 0.0
    %1042 = vmatpush1.msra.mxu0 0.0
    %1043 = vmatprep.subr.mxu0 0.0
    %1044 = vmatpush1.msra.mxu0 0.0
    %1045 = vmatprep.subr.mxu0 0.0
    %1046 = vmatpush1.msra.mxu0 0.0
    %1047 = vmatprep.subr.mxu0 0.0
    %1048 = vmatpush1.msra.mxu0 0.0
    %1049 = vmatprep.subr.mxu0 0.0
    %1050 = vmatpush1.msra.mxu0 0.0
    %1051 = vmatprep.subr.mxu0 0.0
    %1052 = vmatpush1.msra.mxu0 0.0
    %1053 = vmatprep.subr.mxu0 0.0
    %1054 = vmatpush1.msra.mxu0 0.0
    %1055 = vmatprep.subr.mxu0 0.0
    %1056 = vmatpush1.msra.mxu0 0.0
    %1057 = vmatprep.subr.mxu0 0.0
    %1058 = vmatpush1.msra.mxu0 0.0
    %1059 = vmatprep.subr.mxu0 0.0
    %1060 = vmatpush1.msra.mxu0 0.0
    %1061 = vmatprep.subr.mxu0 0.0
    %1062 = vmatpush1.msra.mxu0 0.0
    %1063 = vmatprep.subr.mxu0 0.0
    %1064 = vmatpush1.msra.mxu0 0.0
    %1065 = vmatprep.subr.mxu0 0.0
    %1066 = vmatpush1.msra.mxu0 0.0
    %1067 = vmatprep.subr.mxu0 0.0
    %1068 = vmatpush1.msra.mxu0 0.0
    %1069 = vmatprep.subr.mxu0 0.0
    %1070 = vmatpush1.msra.mxu0 0.0
    %1071 = vmatprep.subr.mxu0 0.0
    %1072 = vmatpush1.msra.mxu0 0.0
    %1073 = vmatprep.subr.mxu0 0.0
    %1074 = vmatpush1.msra.mxu0 0.0
    %1075 = vmatprep.subr.mxu0 0.0
    %1076 = vmatpush1.msra.mxu0 0.0
    %1077 = vmatprep.subr.mxu0 0.0
    %1078 = vmatpush1.msra.mxu0 0.0
    %1079 = vmatprep.subr.mxu0 0.0
    %1080 = vmatpush1.msra.mxu0 0.0
    %1081 = vmatprep.subr.mxu0 0.0
    %1082 = vmatpush1.msra.mxu0 0.0
    %1083 = vmatprep.mubr.f32.mxu0 0.0
    %1084 = vmatmul.mubr.f32.gmra.mrb[0].mxu0 %v1014
    %v1085 = vpop.f32.mrb[0].mxu0
    %v1086 = vadd.f32 %v1011, %v1085
    %v1087 = vpop.f32.mrb[0].mxu0
    %1088 = vmatprep.mubr.f32.mxu0 0.0
    %1089 = vmatmul.mubr.f32.gmra.mrb[0].mxu0 %v1017
    %v1090 = vpop.f32.mrb[0].mxu0
    %v1091 = vadd.f32 %v1011, %v1090
    %v1092 = vpop.f32.mrb[0].mxu0
    %1093 = vdwg.mxu0
    %1098 = vrot.lane.b32.xlu0 %v1001, 96
    %v1099 = vpop.permute.xlu0 %1098
    %1100 = vrot.lane.b32.xlu0 %v1002, 96
    %v1101 = vpop.permute.xlu0 %1100
    %1102 = vrot.lane.b32.xlu0 %v1003, 96
    %v1103 = vpop.permute.xlu0 %1102
    %1104 = vrot.lane.b32.xlu0 %v1004, 96
    %v1105 = vpop.permute.xlu0 %1104
    %1110 = vrot.lane.b32.xlu0 %v1011, 96
    %v1111 = vpop.permute.xlu0 %1110
    %1113 = vmatprep.subr.mxu0 0.0
    %1114 = vmatpush1.msra.mxu0 %v1099
    %1115 = vmatprep.subr.mxu0 0.0
    %1116 = vmatpush1.msra.mxu0 %v1101
    %1117 = vmatprep.subr.mxu0 0.0
    %1118 = vmatpush1.msra.mxu0 %v1103
    %1119 = vmatprep.subr.mxu0 0.0
    %1120 = vmatpush1.msra.mxu0 %v1105
    %1121 = vmatprep.subr.mxu0 0.0
    %1122 = vmatpush1.msra.mxu0 0.0
    %1123 = vmatprep.subr.mxu0 0.0
    %1124 = vmatpush1.msra.mxu0 0.0
    %1125 = vmatprep.subr.mxu0 0.0
    %1126 = vmatpush1.msra.mxu0 0.0
    %1127 = vmatprep.subr.mxu0 0.0
    %1128 = vmatpush1.msra.mxu0 0.0
    %1129 = vmatprep.subr.mxu0 0.0
    %1130 = vmatpush1.msra.mxu0 0.0
    %1131 = vmatprep.subr.mxu0 0.0
    %1132 = vmatpush1.msra.mxu0 0.0
    %1133 = vmatprep.subr.mxu0 0.0
    %1134 = vmatpush1.msra.mxu0 0.0
    %1135 = vmatprep.subr.mxu0 0.0
    %1136 = vmatpush1.msra.mxu0 0.0
    %1137 = vmatprep.subr.mxu0 0.0
    %1138 = vmatpush1.msra.mxu0 0.0
    %1139 = vmatprep.subr.mxu0 0.0
    %1140 = vmatpush1.msra.mxu0 0.0
    %1141 = vmatprep.subr.mxu0 0.0
    %1142 = vmatpush1.msra.mxu0 0.0
    %1143 = vmatprep.subr.mxu0 0.0
    %1144 = vmatpush1.msra.mxu0 0.0
    %1145 = vmatprep.subr.mxu0 0.0
    %1146 = vmatpush1.msra.mxu0 0.0
    %1147 = vmatprep.subr.mxu0 0.0
    %1148 = vmatpush1.msra.mxu0 0.0
    %1149 = vmatprep.subr.mxu0 0.0
    %1150 = vmatpush1.msra.mxu0 0.0
    %1151 = vmatprep.subr.mxu0 0.0
    %1152 = vmatpush1.msra.mxu0 0.0
    %1153 = vmatprep.subr.mxu0 0.0
    %1154 = vmatpush1.msra.mxu0 0.0
    %1155 = vmatprep.subr.mxu0 0.0
    %1156 = vmatpush1.msra.mxu0 0.0
    %1157 = vmatprep.subr.mxu0 0.0
    %1158 = vmatpush1.msra.mxu0 0.0
    %1159 = vmatprep.subr.mxu0 0.0
    %1160 = vmatpush1.msra.mxu0 0.0
    %1161 = vmatprep.subr.mxu0 0.0
    %1162 = vmatpush1.msra.mxu0 0.0
    %1163 = vmatprep.subr.mxu0 0.0
    %1164 = vmatpush1.msra.mxu0 0.0
    %1165 = vmatprep.subr.mxu0 0.0
    %1166 = vmatpush1.msra.mxu0 0.0
    %1167 = vmatprep.subr.mxu0 0.0
    %1168 = vmatpush1.msra.mxu0 0.0
    %1169 = vmatprep.subr.mxu0 0.0
    %1170 = vmatpush1.msra.mxu0 0.0
    %1171 = vmatprep.subr.mxu0 0.0
    %1172 = vmatpush1.msra.mxu0 0.0
    %1173 = vmatprep.subr.mxu0 0.0
    %1174 = vmatpush1.msra.mxu0 0.0
    %1175 = vmatprep.subr.mxu0 0.0
    %1176 = vmatpush1.msra.mxu0 0.0
    %1177 = vmatprep.mubr.f32.mxu0 0.0
    %1178 = vmatmul.mubr.f32.gmra.mrb[0].mxu0 %v47
    %v1179 = vpop.f32.mrb[0].mxu0
    %v1180 = vadd.f32 %v1111, %v1179
    %v1181 = vpop.f32.mrb[0].mxu0
    %1182 = vmatprep.mubr.f32.mxu0 0.0
    %1183 = vmatmul.mubr.f32.gmra.mrb[0].mxu0 %v50
    %v1184 = vpop.f32.mrb[0].mxu0
    %v1185 = vadd.f32 %v1111, %v1184
    %v1186 = vpop.f32.mrb[0].mxu0
    %1187 = vdwg.mxu0
    %s1188 = scalar_lea.vmem %s3, 32
    %v1189 = vld [vmem:[%s1188] sm:$0xff]
    %v1190 = vld [vmem:[%s1188 + $0x8] sm:$0xff]
    %v1191 = vld [vmem:[%s1188 + $0x10] sm:$0xff]
    %v1192 = vld [vmem:[%s1188 + $0x18] sm:$0xff]
    %v1194 = vsel %vm134, %v1086, 0
    %v1197 = vsel %vm134, %v1180, 0
    %1199 = vmatprep.subr.mxu0 0.0
    %1200 = vmatpush1.xpose.msra.mxu0 %v1197
    %1201 = vmatprep.subr.mxu0 0.0
    %1202 = vmatpush1.xpose.msra.mxu0 0.0
    %1203 = vmatprep.subr.mxu0 0.0
    %1204 = vmatpush1.xpose.msra.mxu0 0.0
    %1205 = vmatprep.subr.mxu0 0.0
    %1206 = vmatpush1.xpose.msra.mxu0 0.0
    %1207 = vmatprep.subr.mxu0 0.0
    %1208 = vmatpush1.xpose.msra.mxu0 0.0
    %1209 = vmatprep.subr.mxu0 0.0
    %1210 = vmatpush1.xpose.msra.mxu0 0.0
    %1211 = vmatprep.subr.mxu0 0.0
    %1212 = vmatpush1.xpose.msra.mxu0 0.0
    %1213 = vmatprep.subr.mxu0 0.0
    %1214 = vmatpush1.xpose.msra.mxu0 0.0
    %1215 = vmatprep.subr.mxu0 0.0
    %1216 = vmatpush1.xpose.msra.mxu0 0.0
    %1217 = vmatprep.subr.mxu0 0.0
    %1218 = vmatpush1.xpose.msra.mxu0 0.0
    %1219 = vmatprep.subr.mxu0 0.0
    %1220 = vmatpush1.xpose.msra.mxu0 0.0
    %1221 = vmatprep.subr.mxu0 0.0
    %1222 = vmatpush1.xpose.msra.mxu0 0.0
    %1223 = vmatprep.subr.mxu0 0.0
    %1224 = vmatpush1.xpose.msra.mxu0 0.0
    %1225 = vmatprep.subr.mxu0 0.0
    %1226 = vmatpush1.xpose.msra.mxu0 0.0
    %1227 = vmatprep.subr.mxu0 0.0
    %1228 = vmatpush1.xpose.msra.mxu0 0.0
    %1229 = vmatprep.subr.mxu0 0.0
    %1230 = vmatpush1.xpose.msra.mxu0 0.0
    %1231 = vmatprep.subr.mxu0 0.0
    %1232 = vmatpush1.xpose.msra.mxu0 0.0
    %1233 = vmatprep.subr.mxu0 0.0
    %1234 = vmatpush1.xpose.msra.mxu0 0.0
    %1235 = vmatprep.subr.mxu0 0.0
    %1236 = vmatpush1.xpose.msra.mxu0 0.0
    %1237 = vmatprep.subr.mxu0 0.0
    %1238 = vmatpush1.xpose.msra.mxu0 0.0
    %1239 = vmatprep.subr.mxu0 0.0
    %1240 = vmatpush1.xpose.msra.mxu0 0.0
    %1241 = vmatprep.subr.mxu0 0.0
    %1242 = vmatpush1.xpose.msra.mxu0 0.0
    %1243 = vmatprep.subr.mxu0 0.0
    %1244 = vmatpush1.xpose.msra.mxu0 0.0
    %1245 = vmatprep.subr.mxu0 0.0
    %1246 = vmatpush1.xpose.msra.mxu0 0.0
    %1247 = vmatprep.subr.mxu0 0.0
    %1248 = vmatpush1.xpose.msra.mxu0 0.0
    %1249 = vmatprep.subr.mxu0 0.0
    %1250 = vmatpush1.xpose.msra.mxu0 0.0
    %1251 = vmatprep.subr.mxu0 0.0
    %1252 = vmatpush1.xpose.msra.mxu0 0.0
    %1253 = vmatprep.subr.mxu0 0.0
    %1254 = vmatpush1.xpose.msra.mxu0 0.0
    %1255 = vmatprep.subr.mxu0 0.0
    %1256 = vmatpush1.xpose.msra.mxu0 0.0
    %1257 = vmatprep.subr.mxu0 0.0
    %1258 = vmatpush1.xpose.msra.mxu0 0.0
    %1259 = vmatprep.subr.mxu0 0.0
    %1260 = vmatpush1.xpose.msra.mxu0 0.0
    %1261 = vmatprep.subr.mxu0 0.0
    %1262 = vmatpush1.xpose.msra.mxu0 0.0
    %1263 = vmatprep.mubr.f32.mxu0 0.0
    %1264 = vmatmul.mubr.f32.gmra.mrb[0].mxu0 %v1194
    %v1265 = vpop.f32.mrb[0].mxu0
    %v1266 = vadd.f32 0.0, %v1265
    %v1267 = vpop.f32.mrb[0].mxu0
    %1268 = vdwg.mxu0
    %v1270 = vsel %vm134, %v1091, 0
    %v1273 = vsel %vm134, %v1185, 0
    %1275 = vmatprep.subr.mxu0 0.0
    %1276 = vmatpush1.xpose.msra.mxu0 %v1273
    %1277 = vmatprep.subr.mxu0 0.0
    %1278 = vmatpush1.xpose.msra.mxu0 0.0
    %1279 = vmatprep.subr.mxu0 0.0
    %1280 = vmatpush1.xpose.msra.mxu0 0.0
    %1281 = vmatprep.subr.mxu0 0.0
    %1282 = vmatpush1.xpose.msra.mxu0 0.0
    %1283 = vmatprep.subr.mxu0 0.0
    %1284 = vmatpush1.xpose.msra.mxu0 0.0
    %1285 = vmatprep.subr.mxu0 0.0
    %1286 = vmatpush1.xpose.msra.mxu0 0.0
    %1287 = vmatprep.subr.mxu0 0.0
    %1288 = vmatpush1.xpose.msra.mxu0 0.0
    %1289 = vmatprep.subr.mxu0 0.0
    %1290 = vmatpush1.xpose.msra.mxu0 0.0
    %1291 = vmatprep.subr.mxu0 0.0
    %1292 = vmatpush1.xpose.msra.mxu0 0.0
    %1293 = vmatprep.subr.mxu0 0.0
    %1294 = vmatpush1.xpose.msra.mxu0 0.0
    %1295 = vmatprep.subr.mxu0 0.0
    %1296 = vmatpush1.xpose.msra.mxu0 0.0
    %1297 = vmatprep.subr.mxu0 0.0
    %1298 = vmatpush1.xpose.msra.mxu0 0.0
    %1299 = vmatprep.subr.mxu0 0.0
    %1300 = vmatpush1.xpose.msra.mxu0 0.0
    %1301 = vmatprep.subr.mxu0 0.0
    %1302 = vmatpush1.xpose.msra.mxu0 0.0
    %1303 = vmatprep.subr.mxu0 0.0
    %1304 = vmatpush1.xpose.msra.mxu0 0.0
    %1305 = vmatprep.subr.mxu0 0.0
    %1306 = vmatpush1.xpose.msra.mxu0 0.0
    %1307 = vmatprep.subr.mxu0 0.0
    %1308 = vmatpush1.xpose.msra.mxu0 0.0
    %1309 = vmatprep.subr.mxu0 0.0
    %1310 = vmatpush1.xpose.msra.mxu0 0.0
    %1311 = vmatprep.subr.mxu0 0.0
    %1312 = vmatpush1.xpose.msra.mxu0 0.0
    %1313 = vmatprep.subr.mxu0 0.0
    %1314 = vmatpush1.xpose.msra.mxu0 0.0
    %1315 = vmatprep.subr.mxu0 0.0
    %1316 = vmatpush1.xpose.msra.mxu0 0.0
    %1317 = vmatprep.subr.mxu0 0.0
    %1318 = vmatpush1.xpose.msra.mxu0 0.0
    %1319 = vmatprep.subr.mxu0 0.0
    %1320 = vmatpush1.xpose.msra.mxu0 0.0
    %1321 = vmatprep.subr.mxu0 0.0
    %1322 = vmatpush1.xpose.msra.mxu0 0.0
    %1323 = vmatprep.subr.mxu0 0.0
    %1324 = vmatpush1.xpose.msra.mxu0 0.0
    %1325 = vmatprep.subr.mxu0 0.0
    %1326 = vmatpush1.xpose.msra.mxu0 0.0
    %1327 = vmatprep.subr.mxu0 0.0
    %1328 = vmatpush1.xpose.msra.mxu0 0.0
    %1329 = vmatprep.subr.mxu0 0.0
    %1330 = vmatpush1.xpose.msra.mxu0 0.0
    %1331 = vmatprep.subr.mxu0 0.0
    %1332 = vmatpush1.xpose.msra.mxu0 0.0
    %1333 = vmatprep.subr.mxu0 0.0
    %1334 = vmatpush1.xpose.msra.mxu0 0.0
    %1335 = vmatprep.subr.mxu0 0.0
    %1336 = vmatpush1.xpose.msra.mxu0 0.0
    %1337 = vmatprep.subr.mxu0 0.0
    %1338 = vmatpush1.xpose.msra.mxu0 0.0
    %1339 = vmatprep.mubr.f32.mxu0 0.0
    %1340 = vmatmul.mubr.f32.gmra.mrb[0].mxu0 %v1270
    %v1341 = vpop.f32.mrb[0].mxu0
    %v1342 = vadd.f32 0.0, %v1341
    %v1343 = vpop.f32.mrb[0].mxu0
    %1344 = vdwg.mxu0
    %v1345 = vsel %vm286, %v1266, -inf
    %1346 = vmax.xlane.f32.xlu0 %v1345
    %v1347 = vpop.xlane.xlu0 %1346
    %v1348 = vsel %vm286, %v1342, -inf
    %1349 = vmax.xlane.f32.xlu0 %v1348
    %v1350 = vpop.xlane.xlu0 %1349
    %v1351 = vsub.f32 %v1266, %v1347
    %v1352 = vsub.f32 %v1342, %v1350
    %v1353 = vmul.f32 %v1351, 1.442695
    %v1354 = vpow.pop %v1353
    %v1355 = vmul.f32 %v1352, 1.442695
    %v1356 = vpow.pop %v1355
    %v1357 = vsel %vm286, %v1354, 0.0
    %1358 = vadd.xlane.f32.xlu0 %v1357
    %v1359 = vpop.xlane.xlu0 %1358
    %v1360 = vsel %vm286, %v1356, 0.0
    %1361 = vadd.xlane.f32.xlu0 %v1360
    %v1362 = vpop.xlane.xlu0 %1361
    %v1363 = vrcp.pop %v1359
    %v1364 = vmul.f32 %v1354, %v1363
    %v1365 = vrcp.pop %v1362
    %v1366 = vmul.f32 %v1356, %v1365
    %1367 = vrot.lane.b32.xlu0 %v1180, 96
    %v1368 = vpop.permute.xlu0 %1367
    %v1371 = vsel %vm286, %v1364, 0
    %1373 = vmatprep.subr.mxu0 0.0
    %1374 = vmatpush1.msra.mxu0 %v1368
    %1375 = vmatprep.subr.mxu0 0.0
    %1376 = vmatpush1.msra.mxu0 0.0
    %1377 = vmatprep.subr.mxu0 0.0
    %1378 = vmatpush1.msra.mxu0 0.0
    %1379 = vmatprep.subr.mxu0 0.0
    %1380 = vmatpush1.msra.mxu0 0.0
    %1381 = vmatprep.subr.mxu0 0.0
    %1382 = vmatpush1.msra.mxu0 0.0
    %1383 = vmatprep.subr.mxu0 0.0
    %1384 = vmatpush1.msra.mxu0 0.0
    %1385 = vmatprep.subr.mxu0 0.0
    %1386 = vmatpush1.msra.mxu0 0.0
    %1387 = vmatprep.subr.mxu0 0.0
    %1388 = vmatpush1.msra.mxu0 0.0
    %1389 = vmatprep.subr.mxu0 0.0
    %1390 = vmatpush1.msra.mxu0 0.0
    %1391 = vmatprep.subr.mxu0 0.0
    %1392 = vmatpush1.msra.mxu0 0.0
    %1393 = vmatprep.subr.mxu0 0.0
    %1394 = vmatpush1.msra.mxu0 0.0
    %1395 = vmatprep.subr.mxu0 0.0
    %1396 = vmatpush1.msra.mxu0 0.0
    %1397 = vmatprep.subr.mxu0 0.0
    %1398 = vmatpush1.msra.mxu0 0.0
    %1399 = vmatprep.subr.mxu0 0.0
    %1400 = vmatpush1.msra.mxu0 0.0
    %1401 = vmatprep.subr.mxu0 0.0
    %1402 = vmatpush1.msra.mxu0 0.0
    %1403 = vmatprep.subr.mxu0 0.0
    %1404 = vmatpush1.msra.mxu0 0.0
    %1405 = vmatprep.subr.mxu0 0.0
    %1406 = vmatpush1.msra.mxu0 0.0
    %1407 = vmatprep.subr.mxu0 0.0
    %1408 = vmatpush1.msra.mxu0 0.0
    %1409 = vmatprep.subr.mxu0 0.0
    %1410 = vmatpush1.msra.mxu0 0.0
    %1411 = vmatprep.subr.mxu0 0.0
    %1412 = vmatpush1.msra.mxu0 0.0
    %1413 = vmatprep.subr.mxu0 0.0
    %1414 = vmatpush1.msra.mxu0 0.0
    %1415 = vmatprep.subr.mxu0 0.0
    %1416 = vmatpush1.msra.mxu0 0.0
    %1417 = vmatprep.subr.mxu0 0.0
    %1418 = vmatpush1.msra.mxu0 0.0
    %1419 = vmatprep.subr.mxu0 0.0
    %1420 = vmatpush1.msra.mxu0 0.0
    %1421 = vmatprep.subr.mxu0 0.0
    %1422 = vmatpush1.msra.mxu0 0.0
    %1423 = vmatprep.subr.mxu0 0.0
    %1424 = vmatpush1.msra.mxu0 0.0
    %1425 = vmatprep.subr.mxu0 0.0
    %1426 = vmatpush1.msra.mxu0 0.0
    %1427 = vmatprep.subr.mxu0 0.0
    %1428 = vmatpush1.msra.mxu0 0.0
    %1429 = vmatprep.subr.mxu0 0.0
    %1430 = vmatpush1.msra.mxu0 0.0
    %1431 = vmatprep.subr.mxu0 0.0
    %1432 = vmatpush1.msra.mxu0 0.0
    %1433 = vmatprep.subr.mxu0 0.0
    %1434 = vmatpush1.msra.mxu0 0.0
    %1435 = vmatprep.subr.mxu0 0.0
    %1436 = vmatpush1.msra.mxu0 0.0
    %1437 = vmatprep.mubr.f32.mxu0 0.0
    %1438 = vmatmul.mubr.f32.gmra.mrb[0].mxu0 %v1371
    %v1439 = vpop.f32.mrb[0].mxu0
    %v1440 = vadd.f32 0.0, %v1439
    %v1441 = vpop.f32.mrb[0].mxu0
    %1442 = vdwg.mxu0
    %1443 = vrot.lane.b32.xlu0 %v1185, 96
    %v1444 = vpop.permute.xlu0 %1443
    %v1447 = vsel %vm286, %v1366, 0
    %1449 = vmatprep.subr.mxu0 0.0
    %1450 = vmatpush1.msra.mxu0 %v1444
    %1451 = vmatprep.subr.mxu0 0.0
    %1452 = vmatpush1.msra.mxu0 0.0
    %1453 = vmatprep.subr.mxu0 0.0
    %1454 = vmatpush1.msra.mxu0 0.0
    %1455 = vmatprep.subr.mxu0 0.0
    %1456 = vmatpush1.msra.mxu0 0.0
    %1457 = vmatprep.subr.mxu0 0.0
    %1458 = vmatpush1.msra.mxu0 0.0
    %1459 = vmatprep.subr.mxu0 0.0
    %1460 = vmatpush1.msra.mxu0 0.0
    %1461 = vmatprep.subr.mxu0 0.0
    %1462 = vmatpush1.msra.mxu0 0.0
    %1463 = vmatprep.subr.mxu0 0.0
    %1464 = vmatpush1.msra.mxu0 0.0
    %1465 = vmatprep.subr.mxu0 0.0
    %1466 = vmatpush1.msra.mxu0 0.0
    %1467 = vmatprep.subr.mxu0 0.0
    %1468 = vmatpush1.msra.mxu0 0.0
    %1469 = vmatprep.subr.mxu0 0.0
    %1470 = vmatpush1.msra.mxu0 0.0
    %1471 = vmatprep.subr.mxu0 0.0
    %1472 = vmatpush1.msra.mxu0 0.0
    %1473 = vmatprep.subr.mxu0 0.0
    %1474 = vmatpush1.msra.mxu0 0.0
    %1475 = vmatprep.subr.mxu0 0.0
    %1476 = vmatpush1.msra.mxu0 0.0
    %1477 = vmatprep.subr.mxu0 0.0
    %1478 = vmatpush1.msra.mxu0 0.0
    %1479 = vmatprep.subr.mxu0 0.0
    %1480 = vmatpush1.msra.mxu0 0.0
    %1481 = vmatprep.subr.mxu0 0.0
    %1482 = vmatpush1.msra.mxu0 0.0
    %1483 = vmatprep.subr.mxu0 0.0
    %1484 = vmatpush1.msra.mxu0 0.0
    %1485 = vmatprep.subr.mxu0 0.0
    %1486 = vmatpush1.msra.mxu0 0.0
    %1487 = vmatprep.subr.mxu0 0.0
    %1488 = vmatpush1.msra.mxu0 0.0
    %1489 = vmatprep.subr.mxu0 0.0
    %1490 = vmatpush1.msra.mxu0 0.0
    %1491 = vmatprep.subr.mxu0 0.0
    %1492 = vmatpush1.msra.mxu0 0.0
    %1493 = vmatprep.subr.mxu0 0.0
    %1494 = vmatpush1.msra.mxu0 0.0
    %1495 = vmatprep.subr.mxu0 0.0
    %1496 = vmatpush1.msra.mxu0 0.0
    %1497 = vmatprep.subr.mxu0 0.0
    %1498 = vmatpush1.msra.mxu0 0.0
    %1499 = vmatprep.subr.mxu0 0.0
    %1500 = vmatpush1.msra.mxu0 0.0
    %1501 = vmatprep.subr.mxu0 0.0
    %1502 = vmatpush1.msra.mxu0 0.0
    %1503 = vmatprep.subr.mxu0 0.0
    %1504 = vmatpush1.msra.mxu0 0.0
    %1505 = vmatprep.subr.mxu0 0.0
    %1506 = vmatpush1.msra.mxu0 0.0
    %1507 = vmatprep.subr.mxu0 0.0
    %1508 = vmatpush1.msra.mxu0 0.0
    %1509 = vmatprep.subr.mxu0 0.0
    %1510 = vmatpush1.msra.mxu0 0.0
    %1511 = vmatprep.subr.mxu0 0.0
    %1512 = vmatpush1.msra.mxu0 0.0
    %1513 = vmatprep.mubr.f32.mxu0 0.0
    %1514 = vmatmul.mubr.f32.gmra.mrb[0].mxu0 %v1447
    %v1515 = vpop.f32.mrb[0].mxu0
    %v1516 = vadd.f32 0.0, %v1515
    %v1517 = vpop.f32.mrb[0].mxu0
    %1518 = vdwg.mxu0
    %1519 = vrot.lane.b32.xlu0 %v1086, 112
    %v1520 = vpop.permute.xlu0 %1519
    %1521 = vrot.lane.b32.xlu0 %v1180, 112
    %v1522 = vpop.permute.xlu0 %1521
    %v1523 = vsel %vm134, %v1520, 0
    %v1525 = vsel %vm134, %v1522, 0
    %1527 = vmatprep.subr.mxu0 0.0
    %1528 = vmatpush1.xpose.msra.mxu0 %v1525
    %1529 = vmatprep.subr.mxu0 0.0
    %1530 = vmatpush1.xpose.msra.mxu0 0.0
    %1531 = vmatprep.subr.mxu0 0.0
    %1532 = vmatpush1.xpose.msra.mxu0 0.0
    %1533 = vmatprep.subr.mxu0 0.0
    %1534 = vmatpush1.xpose.msra.mxu0 0.0
    %1535 = vmatprep.subr.mxu0 0.0
    %1536 = vmatpush1.xpose.msra.mxu0 0.0
    %1537 = vmatprep.subr.mxu0 0.0
    %1538 = vmatpush1.xpose.msra.mxu0 0.0
    %1539 = vmatprep.subr.mxu0 0.0
    %1540 = vmatpush1.xpose.msra.mxu0 0.0
    %1541 = vmatprep.subr.mxu0 0.0
    %1542 = vmatpush1.xpose.msra.mxu0 0.0
    %1543 = vmatprep.subr.mxu0 0.0
    %1544 = vmatpush1.xpose.msra.mxu0 0.0
    %1545 = vmatprep.subr.mxu0 0.0
    %1546 = vmatpush1.xpose.msra.mxu0 0.0
    %1547 = vmatprep.subr.mxu0 0.0
    %1548 = vmatpush1.xpose.msra.mxu0 0.0
    %1549 = vmatprep.subr.mxu0 0.0
    %1550 = vmatpush1.xpose.msra.mxu0 0.0
    %1551 = vmatprep.subr.mxu0 0.0
    %1552 = vmatpush1.xpose.msra.mxu0 0.0
    %1553 = vmatprep.subr.mxu0 0.0
    %1554 = vmatpush1.xpose.msra.mxu0 0.0
    %1555 = vmatprep.subr.mxu0 0.0
    %1556 = vmatpush1.xpose.msra.mxu0 0.0
    %1557 = vmatprep.subr.mxu0 0.0
    %1558 = vmatpush1.xpose.msra.mxu0 0.0
    %1559 = vmatprep.subr.mxu0 0.0
    %1560 = vmatpush1.xpose.msra.mxu0 0.0
    %1561 = vmatprep.subr.mxu0 0.0
    %1562 = vmatpush1.xpose.msra.mxu0 0.0
    %1563 = vmatprep.subr.mxu0 0.0
    %1564 = vmatpush1.xpose.msra.mxu0 0.0
    %1565 = vmatprep.subr.mxu0 0.0
    %1566 = vmatpush1.xpose.msra.mxu0 0.0
    %1567 = vmatprep.subr.mxu0 0.0
    %1568 = vmatpush1.xpose.msra.mxu0 0.0
    %1569 = vmatprep.subr.mxu0 0.0
    %1570 = vmatpush1.xpose.msra.mxu0 0.0
    %1571 = vmatprep.subr.mxu0 0.0
    %1572 = vmatpush1.xpose.msra.mxu0 0.0
    %1573 = vmatprep.subr.mxu0 0.0
    %1574 = vmatpush1.xpose.msra.mxu0 0.0
    %1575 = vmatprep.subr.mxu0 0.0
    %1576 = vmatpush1.xpose.msra.mxu0 0.0
    %1577 = vmatprep.subr.mxu0 0.0
    %1578 = vmatpush1.xpose.msra.mxu0 0.0
    %1579 = vmatprep.subr.mxu0 0.0
    %1580 = vmatpush1.xpose.msra.mxu0 0.0
    %1581 = vmatprep.subr.mxu0 0.0
    %1582 = vmatpush1.xpose.msra.mxu0 0.0
    %1583 = vmatprep.subr.mxu0 0.0
    %1584 = vmatpush1.xpose.msra.mxu0 0.0
    %1585 = vmatprep.subr.mxu0 0.0
    %1586 = vmatpush1.xpose.msra.mxu0 0.0
    %1587 = vmatprep.subr.mxu0 0.0
    %1588 = vmatpush1.xpose.msra.mxu0 0.0
    %1589 = vmatprep.subr.mxu0 0.0
    %1590 = vmatpush1.xpose.msra.mxu0 0.0
    %1591 = vmatprep.mubr.f32.mxu0 0.0
    %1592 = vmatmul.mubr.f32.gmra.mrb[0].mxu0 %v1523
    %v1593 = vpop.f32.mrb[0].mxu0
    %v1594 = vadd.f32 0.0, %v1593
    %v1595 = vpop.f32.mrb[0].mxu0
    %1596 = vdwg.mxu0
    %1597 = vrot.lane.b32.xlu0 %v1091, 112
    %v1598 = vpop.permute.xlu0 %1597
    %1599 = vrot.lane.b32.xlu0 %v1185, 112
    %v1600 = vpop.permute.xlu0 %1599
    %v1601 = vsel %vm134, %v1598, 0
    %v1603 = vsel %vm134, %v1600, 0
    %1605 = vmatprep.subr.mxu0 0.0
    %1606 = vmatpush1.xpose.msra.mxu0 %v1603
    %1607 = vmatprep.subr.mxu0 0.0
    %1608 = vmatpush1.xpose.msra.mxu0 0.0
    %1609 = vmatprep.subr.mxu0 0.0
    %1610 = vmatpush1.xpose.msra.mxu0 0.0
    %1611 = vmatprep.subr.mxu0 0.0
    %1612 = vmatpush1.xpose.msra.mxu0 0.0
    %1613 = vmatprep.subr.mxu0 0.0
    %1614 = vmatpush1.xpose.msra.mxu0 0.0
    %1615 = vmatprep.subr.mxu0 0.0
    %1616 = vmatpush1.xpose.msra.mxu0 0.0
    %1617 = vmatprep.subr.mxu0 0.0
    %1618 = vmatpush1.xpose.msra.mxu0 0.0
    %1619 = vmatprep.subr.mxu0 0.0
    %1620 = vmatpush1.xpose.msra.mxu0 0.0
    %1621 = vmatprep.subr.mxu0 0.0
    %1622 = vmatpush1.xpose.msra.mxu0 0.0
    %1623 = vmatprep.subr.mxu0 0.0
    %1624 = vmatpush1.xpose.msra.mxu0 0.0
    %1625 = vmatprep.subr.mxu0 0.0
    %1626 = vmatpush1.xpose.msra.mxu0 0.0
    %1627 = vmatprep.subr.mxu0 0.0
    %1628 = vmatpush1.xpose.msra.mxu0 0.0
    %1629 = vmatprep.subr.mxu0 0.0
    %1630 = vmatpush1.xpose.msra.mxu0 0.0
    %1631 = vmatprep.subr.mxu0 0.0
    %1632 = vmatpush1.xpose.msra.mxu0 0.0
    %1633 = vmatprep.subr.mxu0 0.0
    %1634 = vmatpush1.xpose.msra.mxu0 0.0
    %1635 = vmatprep.subr.mxu0 0.0
    %1636 = vmatpush1.xpose.msra.mxu0 0.0
    %1637 = vmatprep.subr.mxu0 0.0
    %1638 = vmatpush1.xpose.msra.mxu0 0.0
    %1639 = vmatprep.subr.mxu0 0.0
    %1640 = vmatpush1.xpose.msra.mxu0 0.0
    %1641 = vmatprep.subr.mxu0 0.0
    %1642 = vmatpush1.xpose.msra.mxu0 0.0
    %1643 = vmatprep.subr.mxu0 0.0
    %1644 = vmatpush1.xpose.msra.mxu0 0.0
    %1645 = vmatprep.subr.mxu0 0.0
    %1646 = vmatpush1.xpose.msra.mxu0 0.0
    %1647 = vmatprep.subr.mxu0 0.0
    %1648 = vmatpush1.xpose.msra.mxu0 0.0
    %1649 = vmatprep.subr.mxu0 0.0
    %1650 = vmatpush1.xpose.msra.mxu0 0.0
    %1651 = vmatprep.subr.mxu0 0.0
    %1652 = vmatpush1.xpose.msra.mxu0 0.0
    %1653 = vmatprep.subr.mxu0 0.0
    %1654 = vmatpush1.xpose.msra.mxu0 0.0
    %1655 = vmatprep.subr.mxu0 0.0
    %1656 = vmatpush1.xpose.msra.mxu0 0.0
    %1657 = vmatprep.subr.mxu0 0.0
    %1658 = vmatpush1.xpose.msra.mxu0 0.0
    %1659 = vmatprep.subr.mxu0 0.0
    %1660 = vmatpush1.xpose.msra.mxu0 0.0
    %1661 = vmatprep.subr.mxu0 0.0
    %1662 = vmatpush1.xpose.msra.mxu0 0.0
    %1663 = vmatprep.subr.mxu0 0.0
    %1664 = vmatpush1.xpose.msra.mxu0 0.0
    %1665 = vmatprep.subr.mxu0 0.0
    %1666 = vmatpush1.xpose.msra.mxu0 0.0
    %1667 = vmatprep.subr.mxu0 0.0
    %1668 = vmatpush1.xpose.msra.mxu0 0.0
    %1669 = vmatprep.mubr.f32.mxu0 0.0
    %1670 = vmatmul.mubr.f32.gmra.mrb[0].mxu0 %v1601
    %v1671 = vpop.f32.mrb[0].mxu0
    %v1672 = vadd.f32 0.0, %v1671
    %v1673 = vpop.f32.mrb[0].mxu0
    %1674 = vdwg.mxu0
    %v1675 = vsel %vm286, %v1594, -inf
    %1676 = vmax.xlane.f32.xlu0 %v1675
    %v1677 = vpop.xlane.xlu0 %1676
    %v1678 = vsel %vm286, %v1672, -inf
    %1679 = vmax.xlane.f32.xlu0 %v1678
    %v1680 = vpop.xlane.xlu0 %1679
    %v1681 = vsub.f32 %v1594, %v1677
    %v1682 = vsub.f32 %v1672, %v1680
    %v1683 = vmul.f32 %v1681, 1.442695
    %v1684 = vpow.pop %v1683
    %v1685 = vmul.f32 %v1682, 1.442695
    %v1686 = vpow.pop %v1685
    %v1687 = vsel %vm286, %v1684, 0.0
    %1688 = vadd.xlane.f32.xlu0 %v1687
    %v1689 = vpop.xlane.xlu0 %1688
    %v1690 = vsel %vm286, %v1686, 0.0
    %1691 = vadd.xlane.f32.xlu0 %v1690
    %v1692 = vpop.xlane.xlu0 %1691
    %v1693 = vrcp.pop %v1689
    %v1694 = vmul.f32 %v1684, %v1693
    %v1695 = vrcp.pop %v1692
    %v1696 = vmul.f32 %v1686, %v1695
    %1697 = vrot.lane.b32.xlu0 %v1180, 80
    %v1698 = vpop.permute.xlu0 %1697
    %v1701 = vsel %vm286, %v1694, 0
    %1703 = vmatprep.subr.mxu0 0.0
    %1704 = vmatpush1.msra.mxu0 %v1698
    %1705 = vmatprep.subr.mxu0 0.0
    %1706 = vmatpush1.msra.mxu0 0.0
    %1707 = vmatprep.subr.mxu0 0.0
    %1708 = vmatpush1.msra.mxu0 0.0
    %1709 = vmatprep.subr.mxu0 0.0
    %1710 = vmatpush1.msra.mxu0 0.0
    %1711 = vmatprep.subr.mxu0 0.0
    %1712 = vmatpush1.msra.mxu0 0.0
    %1713 = vmatprep.subr.mxu0 0.0
    %1714 = vmatpush1.msra.mxu0 0.0
    %1715 = vmatprep.subr.mxu0 0.0
    %1716 = vmatpush1.msra.mxu0 0.0
    %1717 = vmatprep.subr.mxu0 0.0
    %1718 = vmatpush1.msra.mxu0 0.0
    %1719 = vmatprep.subr.mxu0 0.0
    %1720 = vmatpush1.msra.mxu0 0.0
    %1721 = vmatprep.subr.mxu0 0.0
    %1722 = vmatpush1.msra.mxu0 0.0
    %1723 = vmatprep.subr.mxu0 0.0
    %1724 = vmatpush1.msra.mxu0 0.0
    %1725 = vmatprep.subr.mxu0 0.0
    %1726 = vmatpush1.msra.mxu0 0.0
    %1727 = vmatprep.subr.mxu0 0.0
    %1728 = vmatpush1.msra.mxu0 0.0
    %1729 = vmatprep.subr.mxu0 0.0
    %1730 = vmatpush1.msra.mxu0 0.0
    %1731 = vmatprep.subr.mxu0 0.0
    %1732 = vmatpush1.msra.mxu0 0.0
    %1733 = vmatprep.subr.mxu0 0.0
    %1734 = vmatpush1.msra.mxu0 0.0
    %1735 = vmatprep.subr.mxu0 0.0
    %1736 = vmatpush1.msra.mxu0 0.0
    %1737 = vmatprep.subr.mxu0 0.0
    %1738 = vmatpush1.msra.mxu0 0.0
    %1739 = vmatprep.subr.mxu0 0.0
    %1740 = vmatpush1.msra.mxu0 0.0
    %1741 = vmatprep.subr.mxu0 0.0
    %1742 = vmatpush1.msra.mxu0 0.0
    %1743 = vmatprep.subr.mxu0 0.0
    %1744 = vmatpush1.msra.mxu0 0.0
    %1745 = vmatprep.subr.mxu0 0.0
    %1746 = vmatpush1.msra.mxu0 0.0
    %1747 = vmatprep.subr.mxu0 0.0
    %1748 = vmatpush1.msra.mxu0 0.0
    %1749 = vmatprep.subr.mxu0 0.0
    %1750 = vmatpush1.msra.mxu0 0.0
    %1751 = vmatprep.subr.mxu0 0.0
    %1752 = vmatpush1.msra.mxu0 0.0
    %1753 = vmatprep.subr.mxu0 0.0
    %1754 = vmatpush1.msra.mxu0 0.0
    %1755 = vmatprep.subr.mxu0 0.0
    %1756 = vmatpush1.msra.mxu0 0.0
    %1757 = vmatprep.subr.mxu0 0.0
    %1758 = vmatpush1.msra.mxu0 0.0
    %1759 = vmatprep.subr.mxu0 0.0
    %1760 = vmatpush1.msra.mxu0 0.0
    %1761 = vmatprep.subr.mxu0 0.0
    %1762 = vmatpush1.msra.mxu0 0.0
    %1763 = vmatprep.subr.mxu0 0.0
    %1764 = vmatpush1.msra.mxu0 0.0
    %1765 = vmatprep.subr.mxu0 0.0
    %1766 = vmatpush1.msra.mxu0 0.0
    %1767 = vmatprep.mubr.f32.mxu0 0.0
    %1768 = vmatmul.mubr.f32.gmra.mrb[0].mxu0 %v1701
    %v1769 = vpop.f32.mrb[0].mxu0
    %v1770 = vadd.f32 0.0, %v1769
    %v1771 = vpop.f32.mrb[0].mxu0
    %1772 = vdwg.mxu0
    %1773 = vrot.lane.b32.xlu0 %v1185, 80
    %v1774 = vpop.permute.xlu0 %1773
    %v1777 = vsel %vm286, %v1696, 0
    %1779 = vmatprep.subr.mxu0 0.0
    %1780 = vmatpush1.msra.mxu0 %v1774
    %1781 = vmatprep.subr.mxu0 0.0
    %1782 = vmatpush1.msra.mxu0 0.0
    %1783 = vmatprep.subr.mxu0 0.0
    %1784 = vmatpush1.msra.mxu0 0.0
    %1785 = vmatprep.subr.mxu0 0.0
    %1786 = vmatpush1.msra.mxu0 0.0
    %1787 = vmatprep.subr.mxu0 0.0
    %1788 = vmatpush1.msra.mxu0 0.0
    %1789 = vmatprep.subr.mxu0 0.0
    %1790 = vmatpush1.msra.mxu0 0.0
    %1791 = vmatprep.subr.mxu0 0.0
    %1792 = vmatpush1.msra.mxu0 0.0
    %1793 = vmatprep.subr.mxu0 0.0
    %1794 = vmatpush1.msra.mxu0 0.0
    %1795 = vmatprep.subr.mxu0 0.0
    %1796 = vmatpush1.msra.mxu0 0.0
    %1797 = vmatprep.subr.mxu0 0.0
    %1798 = vmatpush1.msra.mxu0 0.0
    %1799 = vmatprep.subr.mxu0 0.0
    %1800 = vmatpush1.msra.mxu0 0.0
    %1801 = vmatprep.subr.mxu0 0.0
    %1802 = vmatpush1.msra.mxu0 0.0
    %1803 = vmatprep.subr.mxu0 0.0
    %1804 = vmatpush1.msra.mxu0 0.0
    %1805 = vmatprep.subr.mxu0 0.0
    %1806 = vmatpush1.msra.mxu0 0.0
    %1807 = vmatprep.subr.mxu0 0.0
    %1808 = vmatpush1.msra.mxu0 0.0
    %1809 = vmatprep.subr.mxu0 0.0
    %1810 = vmatpush1.msra.mxu0 0.0
    %1811 = vmatprep.subr.mxu0 0.0
    %1812 = vmatpush1.msra.mxu0 0.0
    %1813 = vmatprep.subr.mxu0 0.0
    %1814 = vmatpush1.msra.mxu0 0.0
    %1815 = vmatprep.subr.mxu0 0.0
    %1816 = vmatpush1.msra.mxu0 0.0
    %1817 = vmatprep.subr.mxu0 0.0
    %1818 = vmatpush1.msra.mxu0 0.0
    %1819 = vmatprep.subr.mxu0 0.0
    %1820 = vmatpush1.msra.mxu0 0.0
    %1821 = vmatprep.subr.mxu0 0.0
    %1822 = vmatpush1.msra.mxu0 0.0
    %1823 = vmatprep.subr.mxu0 0.0
    %1824 = vmatpush1.msra.mxu0 0.0
    %1825 = vmatprep.subr.mxu0 0.0
    %1826 = vmatpush1.msra.mxu0 0.0
    %1827 = vmatprep.subr.mxu0 0.0
    %1828 = vmatpush1.msra.mxu0 0.0
    %1829 = vmatprep.subr.mxu0 0.0
    %1830 = vmatpush1.msra.mxu0 0.0
    %1831 = vmatprep.subr.mxu0 0.0
    %1832 = vmatpush1.msra.mxu0 0.0
    %1833 = vmatprep.subr.mxu0 0.0
    %1834 = vmatpush1.msra.mxu0 0.0
    %1835 = vmatprep.subr.mxu0 0.0
    %1836 = vmatpush1.msra.mxu0 0.0
    %1837 = vmatprep.subr.mxu0 0.0
    %1838 = vmatpush1.msra.mxu0 0.0
    %1839 = vmatprep.subr.mxu0 0.0
    %1840 = vmatpush1.msra.mxu0 0.0
    %1841 = vmatprep.subr.mxu0 0.0
    %1842 = vmatpush1.msra.mxu0 0.0
    %1843 = vmatprep.mubr.f32.mxu0 0.0
    %1844 = vmatmul.mubr.f32.gmra.mrb[0].mxu0 %v1777
    %v1845 = vpop.f32.mrb[0].mxu0
    %v1846 = vadd.f32 0.0, %v1845
    %v1847 = vpop.f32.mrb[0].mxu0
    %1848 = vdwg.mxu0
    %v1850 = vsel %vm134, %v1770, 0
    %v1853 = vsel %vm134, %v1846, 0
    %1855 = vmatprep.subr.mxu0 0.0
    %1856 = vmatpush1.msra.mxu0 %v1191
    %1857 = vmatprep.subr.mxu0 0.0
    %1858 = vmatpush1.msra.mxu0 %v1192
    %1859 = vmatprep.subr.mxu0 0.0
    %1860 = vmatpush1.msra.mxu0 0.0
    %1861 = vmatprep.subr.mxu0 0.0
    %1862 = vmatpush1.msra.mxu0 0.0
    %1863 = vmatprep.subr.mxu0 0.0
    %1864 = vmatpush1.msra.mxu0 0.0
    %1865 = vmatprep.subr.mxu0 0.0
    %1866 = vmatpush1.msra.mxu0 0.0
    %1867 = vmatprep.subr.mxu0 0.0
    %1868 = vmatpush1.msra.mxu0 0.0
    %1869 = vmatprep.subr.mxu0 0.0
    %1870 = vmatpush1.msra.mxu0 0.0
    %1871 = vmatprep.subr.mxu0 0.0
    %1872 = vmatpush1.msra.mxu0 0.0
    %1873 = vmatprep.subr.mxu0 0.0
    %1874 = vmatpush1.msra.mxu0 0.0
    %1875 = vmatprep.subr.mxu0 0.0
    %1876 = vmatpush1.msra.mxu0 0.0
    %1877 = vmatprep.subr.mxu0 0.0
    %1878 = vmatpush1.msra.mxu0 0.0
    %1879 = vmatprep.subr.mxu0 0.0
    %1880 = vmatpush1.msra.mxu0 0.0
    %1881 = vmatprep.subr.mxu0 0.0
    %1882 = vmatpush1.msra.mxu0 0.0
    %1883 = vmatprep.subr.mxu0 0.0
    %1884 = vmatpush1.msra.mxu0 0.0
    %1885 = vmatprep.subr.mxu0 0.0
    %1886 = vmatpush1.msra.mxu0 0.0
    %1887 = vmatprep.subr.mxu0 0.0
    %1888 = vmatpush1.msra.mxu0 0.0
    %1889 = vmatprep.subr.mxu0 0.0
    %1890 = vmatpush1.msra.mxu0 0.0
    %1891 = vmatprep.subr.mxu0 0.0
    %1892 = vmatpush1.msra.mxu0 0.0
    %1893 = vmatprep.subr.mxu0 0.0
    %1894 = vmatpush1.msra.mxu0 0.0
    %1895 = vmatprep.subr.mxu0 0.0
    %1896 = vmatpush1.msra.mxu0 0.0
    %1897 = vmatprep.subr.mxu0 0.0
    %1898 = vmatpush1.msra.mxu0 0.0
    %1899 = vmatprep.subr.mxu0 0.0
    %1900 = vmatpush1.msra.mxu0 0.0
    %1901 = vmatprep.subr.mxu0 0.0
    %1902 = vmatpush1.msra.mxu0 0.0
    %1903 = vmatprep.subr.mxu0 0.0
    %1904 = vmatpush1.msra.mxu0 0.0
    %1905 = vmatprep.subr.mxu0 0.0
    %1906 = vmatpush1.msra.mxu0 0.0
    %1907 = vmatprep.subr.mxu0 0.0
    %1908 = vmatpush1.msra.mxu0 0.0
    %1909 = vmatprep.subr.mxu0 0.0
    %1910 = vmatpush1.msra.mxu0 0.0
    %1911 = vmatprep.subr.mxu0 0.0
    %1912 = vmatpush1.msra.mxu0 0.0
    %1913 = vmatprep.subr.mxu0 0.0
    %1914 = vmatpush1.msra.mxu0 0.0
    %1915 = vmatprep.subr.mxu0 0.0
    %1916 = vmatpush1.msra.mxu0 0.0
    %1917 = vmatprep.subr.mxu0 0.0
    %1918 = vmatpush1.msra.mxu0 0.0
    %1919 = vmatprep.mubr.f32.mxu0 0.0
    %1920 = vmatmul.mubr.f32.gmra.mrb[0].mxu0 %v1850
    %v1921 = vpop.f32.mrb[0].mxu0
    %v1922 = vadd.f32 0.0, %v1921
    %v1923 = vpop.f32.mrb[0].mxu0
    %1924 = vmatprep.mubr.f32.mxu0 0.0
    %1925 = vmatmul.mubr.f32.gmra.mrb[0].mxu0 %v1853
    %v1926 = vpop.f32.mrb[0].mxu0
    %v1927 = vadd.f32 0.0, %v1926
    %v1928 = vpop.f32.mrb[0].mxu0
    %1929 = vdwg.mxu0
    %v1931 = vsel %vm134, %v1440, 0
    %v1934 = vsel %vm134, %v1516, 0
    %1936 = vmatprep.subr.mxu0 0.0
    %1937 = vmatpush1.msra.mxu0 %v1189
    %1938 = vmatprep.subr.mxu0 0.0
    %1939 = vmatpush1.msra.mxu0 %v1190
    %1940 = vmatprep.subr.mxu0 0.0
    %1941 = vmatpush1.msra.mxu0 0.0
    %1942 = vmatprep.subr.mxu0 0.0
    %1943 = vmatpush1.msra.mxu0 0.0
    %1944 = vmatprep.subr.mxu0 0.0
    %1945 = vmatpush1.msra.mxu0 0.0
    %1946 = vmatprep.subr.mxu0 0.0
    %1947 = vmatpush1.msra.mxu0 0.0
    %1948 = vmatprep.subr.mxu0 0.0
    %1949 = vmatpush1.msra.mxu0 0.0
    %1950 = vmatprep.subr.mxu0 0.0
    %1951 = vmatpush1.msra.mxu0 0.0
    %1952 = vmatprep.subr.mxu0 0.0
    %1953 = vmatpush1.msra.mxu0 0.0
    %1954 = vmatprep.subr.mxu0 0.0
    %1955 = vmatpush1.msra.mxu0 0.0
    %1956 = vmatprep.subr.mxu0 0.0
    %1957 = vmatpush1.msra.mxu0 0.0
    %1958 = vmatprep.subr.mxu0 0.0
    %1959 = vmatpush1.msra.mxu0 0.0
    %1960 = vmatprep.subr.mxu0 0.0
    %1961 = vmatpush1.msra.mxu0 0.0
    %1962 = vmatprep.subr.mxu0 0.0
    %1963 = vmatpush1.msra.mxu0 0.0
    %1964 = vmatprep.subr.mxu0 0.0
    %1965 = vmatpush1.msra.mxu0 0.0
    %1966 = vmatprep.subr.mxu0 0.0
    %1967 = vmatpush1.msra.mxu0 0.0
    %1968 = vmatprep.subr.mxu0 0.0
    %1969 = vmatpush1.msra.mxu0 0.0
    %1970 = vmatprep.subr.mxu0 0.0
    %1971 = vmatpush1.msra.mxu0 0.0
    %1972 = vmatprep.subr.mxu0 0.0
    %1973 = vmatpush1.msra.mxu0 0.0
    %1974 = vmatprep.subr.mxu0 0.0
    %1975 = vmatpush1.msra.mxu0 0.0
    %1976 = vmatprep.subr.mxu0 0.0
    %1977 = vmatpush1.msra.mxu0 0.0
    %1978 = vmatprep.subr.mxu0 0.0
    %1979 = vmatpush1.msra.mxu0 0.0
    %1980 = vmatprep.subr.mxu0 0.0
    %1981 = vmatpush1.msra.mxu0 0.0
    %1982 = vmatprep.subr.mxu0 0.0
    %1983 = vmatpush1.msra.mxu0 0.0
    %1984 = vmatprep.subr.mxu0 0.0
    %1985 = vmatpush1.msra.mxu0 0.0
    %1986 = vmatprep.subr.mxu0 0.0
    %1987 = vmatpush1.msra.mxu0 0.0
    %1988 = vmatprep.subr.mxu0 0.0
    %1989 = vmatpush1.msra.mxu0 0.0
    %1990 = vmatprep.subr.mxu0 0.0
    %1991 = vmatpush1.msra.mxu0 0.0
    %1992 = vmatprep.subr.mxu0 0.0
    %1993 = vmatpush1.msra.mxu0 0.0
    %1994 = vmatprep.subr.mxu0 0.0
    %1995 = vmatpush1.msra.mxu0 0.0
    %1996 = vmatprep.subr.mxu0 0.0
    %1997 = vmatpush1.msra.mxu0 0.0
    %1998 = vmatprep.subr.mxu0 0.0
    %1999 = vmatpush1.msra.mxu0 0.0
    %2000 = vmatprep.mubr.f32.mxu0 0.0
    %2001 = vmatmul.mubr.f32.gmra.mrb[0].mxu0 %v1931
    %v2002 = vpop.f32.mrb[0].mxu0
    %v2003 = vadd.f32 %v1922, %v2002
    %v2004 = vpop.f32.mrb[0].mxu0
    %2005 = vmatprep.mubr.f32.mxu0 0.0
    %2006 = vmatmul.mubr.f32.gmra.mrb[0].mxu0 %v1934
    %v2007 = vpop.f32.mrb[0].mxu0
    %v2008 = vadd.f32 %v1927, %v2007
    %v2009 = vpop.f32.mrb[0].mxu0
    %2010 = vdwg.mxu0
    %v2011 = vlaneseq
    %v2012 = vshrl.u32 %v2011, 7
    %v2013 = vsub.s32 1, %v2012
    %v2014 = vrot.slane %v32, %v2013
    %v2015 = vadd.f32 %v2003, %v2014
    %v2016 = vadd.f32 %v2008, %v2014
    %v2017 = vadd.f32 %v998, %v2015
    %v2018 = vadd.f32 %v999, %v2016
    %v2019 = vsel %vm45, %v2017, 0.0
    %2020 = vadd.xlane.f32.xlu0 %v2019
    %v2021 = vpop.xlane.xlu0 %2020
    %v2022 = vsel %vm45, %v2018, 0.0
    %2023 = vadd.xlane.f32.xlu0 %v2022
    %v2024 = vpop.xlane.xlu0 %2023
    %v2025 = vmul.f32 %v2021, %v967
    %v2026 = vmul.f32 %v2024, %v967
    %v2027 = vsub.f32 %v2017, %v2025
    %v2028 = vsub.f32 %v2018, %v2026
    %v2029 = vmul.f32 %v2027, %v2027
    %v2030 = vmul.f32 %v2028, %v2028
    %v2031 = vsel %vm45, %v2029, 0.0
    %2032 = vadd.xlane.f32.xlu0 %v2031
    %v2033 = vpop.xlane.xlu0 %2032
    %v2034 = vsel %vm45, %v2030, 0.0
    %2035 = vadd.xlane.f32.xlu0 %v2034
    %v2036 = vpop.xlane.xlu0 %2035
    %v2037 = vmul.f32 %v2033, %v967
    %v2038 = vmul.f32 %v2036, %v967
    %v2039 = vadd.f32 %v2037, 1e-05
    %v2040 = vadd.f32 %v2038, 1e-05
    %v2041 = vrsqrt.pop %v2039
    %v2042 = vrsqrt.pop %v2040
    %v2043 = vmul.f32 %v2027, %v2041
    %v2044 = vmul.f32 %v2028, %v2042
    %v2045 = vlaneseq
    %v2046 = vshrl.u32 %v2045, 7
    %v2047 = vsub.s32 5, %v2046
    %v2048 = vrot.slane %v32, %v2047
    %v2049 = vmul.f32 %v2043, %v2048
    %v2050 = vmul.f32 %v2044, %v2048
    %v2051 = vlaneseq
    %v2052 = vshrl.u32 %v2051, 7
    %v2053 = vsub.s32 6, %v2052
    %v2054 = vrot.slane %v32, %v2053
    %v2055 = vadd.f32 %v2049, %v2054
    %v2056 = vadd.f32 %v2050, %v2054
    %v2057 = vld [vmem:[%s4] sm:$0xff]
    %v2058 = vld [vmem:[%s4 + $0x8] sm:$0xff]
    %v2059 = vld [vmem:[%s4 + $0x10] sm:$0xff]
    %v2060 = vld [vmem:[%s4 + $0x18] sm:$0xff]
    %v2061 = vld [vmem:[%s4 + $0x20] sm:$0xff]
    %v2062 = vld [vmem:[%s4 + $0x28] sm:$0xff]
    %v2063 = vld [vmem:[%s4 + $0x30] sm:$0xff]
    %v2064 = vld [vmem:[%s4 + $0x38] sm:$0xff]
    %v2065 = vld [vmem:[%s4 + $0x40] sm:$0xff]
    %v2066 = vld [vmem:[%s4 + $0x48] sm:$0xff]
    %v2067 = vld [vmem:[%s4 + $0x50] sm:$0xff]
    %v2068 = vld [vmem:[%s4 + $0x58] sm:$0xff]
    %v2069 = vld [vmem:[%s4 + $0x60] sm:$0xff]
    %v2070 = vld [vmem:[%s4 + $0x68] sm:$0xff]
    %v2071 = vld [vmem:[%s4 + $0x70] sm:$0xff]
    %v2072 = vld [vmem:[%s4 + $0x78] sm:$0xff]
    %v2073 = vunpack.c.l.bf16 %v2057
    %v2074 = vunpack.c.h.bf16 %v2057
    %v2075 = vunpack.c.l.bf16 %v2058
    %v2076 = vunpack.c.h.bf16 %v2058
    %v2077 = vunpack.c.l.bf16 %v2059
    %v2078 = vunpack.c.h.bf16 %v2059
    %v2079 = vunpack.c.l.bf16 %v2060
    %v2080 = vunpack.c.h.bf16 %v2060
    %v2081 = vunpack.c.l.bf16 %v2061
    %v2082 = vunpack.c.h.bf16 %v2061
    %v2083 = vunpack.c.l.bf16 %v2062
    %v2084 = vunpack.c.h.bf16 %v2062
    %v2085 = vunpack.c.l.bf16 %v2063
    %v2086 = vunpack.c.h.bf16 %v2063
    %v2087 = vunpack.c.l.bf16 %v2064
    %v2088 = vunpack.c.h.bf16 %v2064
    %v2089 = vunpack.c.l.bf16 %v2065
    %v2090 = vunpack.c.h.bf16 %v2065
    %v2091 = vunpack.c.l.bf16 %v2066
    %v2092 = vunpack.c.h.bf16 %v2066
    %v2093 = vunpack.c.l.bf16 %v2067
    %v2094 = vunpack.c.h.bf16 %v2067
    %v2095 = vunpack.c.l.bf16 %v2068
    %v2096 = vunpack.c.h.bf16 %v2068
    %v2097 = vunpack.c.l.bf16 %v2069
    %v2098 = vunpack.c.h.bf16 %v2069
    %v2099 = vunpack.c.l.bf16 %v2070
    %v2100 = vunpack.c.h.bf16 %v2070
    %v2101 = vunpack.c.l.bf16 %v2071
    %v2102 = vunpack.c.h.bf16 %v2071
    %v2103 = vunpack.c.l.bf16 %v2072
    %v2104 = vunpack.c.h.bf16 %v2072
    %v2105 = vld [vmem:[%s6] sm:$0xf]
    %v2106 = vld [vmem:[%s6 + $0x4] sm:$0xf]
    %v2107 = vld [vmem:[%s6 + $0x8] sm:$0xf]
    %v2108 = vld [vmem:[%s6 + $0xc] sm:$0xf]
    %v2109 = vld [vmem:[%s6 + $0x10] sm:$0xf]
    %v2110 = vld [vmem:[%s6 + $0x14] sm:$0xf]
    %v2111 = vld [vmem:[%s6 + $0x18] sm:$0xf]
    %v2112 = vld [vmem:[%s6 + $0x1c] sm:$0xf]
    %v2113 = vld [vmem:[%s6 + $0x20] sm:$0xf]
    %v2114 = vld [vmem:[%s6 + $0x24] sm:$0xf]
    %v2115 = vld [vmem:[%s6 + $0x28] sm:$0xf]
    %v2116 = vld [vmem:[%s6 + $0x2c] sm:$0xf]
    %v2117 = vld [vmem:[%s6 + $0x30] sm:$0xf]
    %v2118 = vld [vmem:[%s6 + $0x34] sm:$0xf]
    %v2119 = vld [vmem:[%s6 + $0x38] sm:$0xf]
    %v2120 = vld [vmem:[%s6 + $0x3c] sm:$0xf]
    %v2121 = vld [vmem:[%s6 + $0x40] sm:$0xf]
    %v2122 = vld [vmem:[%s6 + $0x44] sm:$0xf]
    %v2123 = vld [vmem:[%s6 + $0x48] sm:$0xf]
    %v2124 = vld [vmem:[%s6 + $0x4c] sm:$0xf]
    %v2125 = vld [vmem:[%s6 + $0x50] sm:$0xf]
    %v2126 = vld [vmem:[%s6 + $0x54] sm:$0xf]
    %v2127 = vld [vmem:[%s6 + $0x58] sm:$0xf]
    %v2128 = vld [vmem:[%s6 + $0x5c] sm:$0xf]
    %v2129 = vld [vmem:[%s6 + $0x60] sm:$0xf]
    %v2130 = vld [vmem:[%s6 + $0x64] sm:$0xf]
    %v2131 = vld [vmem:[%s6 + $0x68] sm:$0xf]
    %v2132 = vld [vmem:[%s6 + $0x6c] sm:$0xf]
    %v2133 = vld [vmem:[%s6 + $0x70] sm:$0xf]
    %v2134 = vld [vmem:[%s6 + $0x74] sm:$0xf]
    %v2135 = vld [vmem:[%s6 + $0x78] sm:$0xf]
    %v2136 = vld [vmem:[%s6 + $0x7c] sm:$0xf]
    %v2137 = vld [vmem:[%s6 + $0x80] sm:$0xf]
    %v2138 = vld [vmem:[%s6 + $0x84] sm:$0xf]
    %v2139 = vld [vmem:[%s6 + $0x88] sm:$0xf]
    %v2140 = vld [vmem:[%s6 + $0x8c] sm:$0xf]
    %v2141 = vld [vmem:[%s6 + $0x90] sm:$0xf]
    %v2142 = vld [vmem:[%s6 + $0x94] sm:$0xf]
    %v2143 = vld [vmem:[%s6 + $0x98] sm:$0xf]
    %v2144 = vld [vmem:[%s6 + $0x9c] sm:$0xf]
    %v2145 = vld [vmem:[%s6 + $0xa0] sm:$0xf]
    %v2146 = vld [vmem:[%s6 + $0xa4] sm:$0xf]
    %v2147 = vld [vmem:[%s6 + $0xa8] sm:$0xf]
    %v2148 = vld [vmem:[%s6 + $0xac] sm:$0xf]
    %v2149 = vld [vmem:[%s6 + $0xb0] sm:$0xf]
    %v2150 = vld [vmem:[%s6 + $0xb4] sm:$0xf]
    %v2151 = vld [vmem:[%s6 + $0xb8] sm:$0xf]
    %v2152 = vld [vmem:[%s6 + $0xbc] sm:$0xf]
    %v2153 = vld [vmem:[%s6 + $0xc0] sm:$0xf]
    %v2154 = vld [vmem:[%s6 + $0xc4] sm:$0xf]
    %v2155 = vld [vmem:[%s6 + $0xc8] sm:$0xf]
    %v2156 = vld [vmem:[%s6 + $0xcc] sm:$0xf]
    %v2157 = vld [vmem:[%s6 + $0xd0] sm:$0xf]
    %v2158 = vld [vmem:[%s6 + $0xd4] sm:$0xf]
    %v2159 = vld [vmem:[%s6 + $0xd8] sm:$0xf]
    %v2160 = vld [vmem:[%s6 + $0xdc] sm:$0xf]
    %v2161 = vld [vmem:[%s6 + $0xe0] sm:$0xf]
    %v2162 = vld [vmem:[%s6 + $0xe4] sm:$0xf]
    %v2163 = vld [vmem:[%s6 + $0xe8] sm:$0xf]
    %v2164 = vld [vmem:[%s6 + $0xec] sm:$0xf]
    %v2165 = vld [vmem:[%s6 + $0xf0] sm:$0xf]
    %v2166 = vld [vmem:[%s6 + $0xf4] sm:$0xf]
    %v2167 = vld [vmem:[%s6 + $0xf8] sm:$0xf]
    %v2168 = vld [vmem:[%s6 + $0xfc] sm:$0xf]
    %v2169 = vld [vmem:[%s6 + $0x100] sm:$0xf]
    %v2170 = vld [vmem:[%s6 + $0x104] sm:$0xf]
    %v2171 = vld [vmem:[%s6 + $0x108] sm:$0xf]
    %v2172 = vld [vmem:[%s6 + $0x10c] sm:$0xf]
    %v2173 = vld [vmem:[%s6 + $0x110] sm:$0xf]
    %v2174 = vld [vmem:[%s6 + $0x114] sm:$0xf]
    %v2175 = vld [vmem:[%s6 + $0x118] sm:$0xf]
    %v2176 = vld [vmem:[%s6 + $0x11c] sm:$0xf]
    %v2177 = vld [vmem:[%s6 + $0x120] sm:$0xf]
    %v2178 = vld [vmem:[%s6 + $0x124] sm:$0xf]
    %v2179 = vld [vmem:[%s6 + $0x128] sm:$0xf]
    %v2180 = vld [vmem:[%s6 + $0x12c] sm:$0xf]
    %v2181 = vld [vmem:[%s6 + $0x130] sm:$0xf]
    %v2182 = vld [vmem:[%s6 + $0x134] sm:$0xf]
    %v2183 = vld [vmem:[%s6 + $0x138] sm:$0xf]
    %v2184 = vld [vmem:[%s6 + $0x13c] sm:$0xf]
    %v2185 = vld [vmem:[%s6 + $0x140] sm:$0xf]
    %v2186 = vld [vmem:[%s6 + $0x144] sm:$0xf]
    %v2187 = vld [vmem:[%s6 + $0x148] sm:$0xf]
    %v2188 = vld [vmem:[%s6 + $0x14c] sm:$0xf]
    %v2189 = vld [vmem:[%s6 + $0x150] sm:$0xf]
    %v2190 = vld [vmem:[%s6 + $0x154] sm:$0xf]
    %v2191 = vld [vmem:[%s6 + $0x158] sm:$0xf]
    %v2192 = vld [vmem:[%s6 + $0x15c] sm:$0xf]
    %v2193 = vld [vmem:[%s6 + $0x160] sm:$0xf]
    %v2194 = vld [vmem:[%s6 + $0x164] sm:$0xf]
    %v2195 = vld [vmem:[%s6 + $0x168] sm:$0xf]
    %v2196 = vld [vmem:[%s6 + $0x16c] sm:$0xf]
    %v2197 = vld [vmem:[%s6 + $0x170] sm:$0xf]
    %v2198 = vld [vmem:[%s6 + $0x174] sm:$0xf]
    %v2199 = vld [vmem:[%s6 + $0x178] sm:$0xf]
    %v2200 = vld [vmem:[%s6 + $0x17c] sm:$0xf]
    %v2201 = vld [vmem:[%s6 + $0x180] sm:$0xf]
    %v2202 = vld [vmem:[%s6 + $0x184] sm:$0xf]
    %v2203 = vld [vmem:[%s6 + $0x188] sm:$0xf]
    %v2204 = vld [vmem:[%s6 + $0x18c] sm:$0xf]
    %v2205 = vld [vmem:[%s6 + $0x190] sm:$0xf]
    %v2206 = vld [vmem:[%s6 + $0x194] sm:$0xf]
    %v2207 = vld [vmem:[%s6 + $0x198] sm:$0xf]
    %v2208 = vld [vmem:[%s6 + $0x19c] sm:$0xf]
    %v2209 = vld [vmem:[%s6 + $0x1a0] sm:$0xf]
    %v2210 = vld [vmem:[%s6 + $0x1a4] sm:$0xf]
    %v2211 = vld [vmem:[%s6 + $0x1a8] sm:$0xf]
    %v2212 = vld [vmem:[%s6 + $0x1ac] sm:$0xf]
    %v2213 = vld [vmem:[%s6 + $0x1b0] sm:$0xf]
    %v2214 = vld [vmem:[%s6 + $0x1b4] sm:$0xf]
    %v2215 = vld [vmem:[%s6 + $0x1b8] sm:$0xf]
    %v2216 = vld [vmem:[%s6 + $0x1bc] sm:$0xf]
    %v2217 = vld [vmem:[%s6 + $0x1c0] sm:$0xf]
    %v2218 = vld [vmem:[%s6 + $0x1c4] sm:$0xf]
    %v2219 = vld [vmem:[%s6 + $0x1c8] sm:$0xf]
    %v2220 = vld [vmem:[%s6 + $0x1cc] sm:$0xf]
    %v2221 = vld [vmem:[%s6 + $0x1d0] sm:$0xf]
    %v2222 = vld [vmem:[%s6 + $0x1d4] sm:$0xf]
    %v2223 = vld [vmem:[%s6 + $0x1d8] sm:$0xf]
    %v2224 = vld [vmem:[%s6 + $0x1dc] sm:$0xf]
    %v2225 = vld [vmem:[%s6 + $0x1e0] sm:$0xf]
    %v2226 = vld [vmem:[%s6 + $0x1e4] sm:$0xf]
    %v2227 = vld [vmem:[%s6 + $0x1e8] sm:$0xf]
    %v2228 = vld [vmem:[%s6 + $0x1ec] sm:$0xf]
    %v2229 = vld [vmem:[%s6 + $0x1f0] sm:$0xf]
    %v2230 = vld [vmem:[%s6 + $0x1f4] sm:$0xf]
    %v2231 = vld [vmem:[%s6 + $0x1f8] sm:$0xf]
    %v2232 = vld [vmem:[%s6 + $0x1fc] sm:$0xf]
    %v2233 = vunpack.c.l.bf16 %v2105
    %v2234 = vunpack.c.l.bf16 %v2106
    %v2235 = vunpack.c.l.bf16 %v2107
    %v2236 = vunpack.c.l.bf16 %v2108
    %v2237 = vunpack.c.l.bf16 %v2109
    %v2238 = vunpack.c.l.bf16 %v2110
    %v2239 = vunpack.c.l.bf16 %v2111
    %v2240 = vunpack.c.l.bf16 %v2112
    %v2241 = vunpack.c.l.bf16 %v2113
    %v2242 = vunpack.c.l.bf16 %v2114
    %v2243 = vunpack.c.l.bf16 %v2115
    %v2244 = vunpack.c.l.bf16 %v2116
    %v2245 = vunpack.c.l.bf16 %v2117
    %v2246 = vunpack.c.l.bf16 %v2118
    %v2247 = vunpack.c.l.bf16 %v2119
    %v2248 = vunpack.c.l.bf16 %v2120
    %v2249 = vunpack.c.l.bf16 %v2121
    %v2250 = vunpack.c.l.bf16 %v2122
    %v2251 = vunpack.c.l.bf16 %v2123
    %v2252 = vunpack.c.l.bf16 %v2124
    %v2253 = vunpack.c.l.bf16 %v2125
    %v2254 = vunpack.c.l.bf16 %v2126
    %v2255 = vunpack.c.l.bf16 %v2127
    %v2256 = vunpack.c.l.bf16 %v2128
    %v2257 = vunpack.c.l.bf16 %v2129
    %v2258 = vunpack.c.l.bf16 %v2130
    %v2259 = vunpack.c.l.bf16 %v2131
    %v2260 = vunpack.c.l.bf16 %v2132
    %v2261 = vunpack.c.l.bf16 %v2133
    %v2262 = vunpack.c.l.bf16 %v2134
    %v2263 = vunpack.c.l.bf16 %v2135
    %v2264 = vunpack.c.l.bf16 %v2136
    %v2265 = vunpack.c.l.bf16 %v2137
    %v2266 = vunpack.c.l.bf16 %v2138
    %v2267 = vunpack.c.l.bf16 %v2139
    %v2268 = vunpack.c.l.bf16 %v2140
    %v2269 = vunpack.c.l.bf16 %v2141
    %v2270 = vunpack.c.l.bf16 %v2142
    %v2271 = vunpack.c.l.bf16 %v2143
    %v2272 = vunpack.c.l.bf16 %v2144
    %v2273 = vunpack.c.l.bf16 %v2145
    %v2274 = vunpack.c.l.bf16 %v2146
    %v2275 = vunpack.c.l.bf16 %v2147
    %v2276 = vunpack.c.l.bf16 %v2148
    %v2277 = vunpack.c.l.bf16 %v2149
    %v2278 = vunpack.c.l.bf16 %v2150
    %v2279 = vunpack.c.l.bf16 %v2151
    %v2280 = vunpack.c.l.bf16 %v2152
    %v2281 = vunpack.c.l.bf16 %v2153
    %v2282 = vunpack.c.l.bf16 %v2154
    %v2283 = vunpack.c.l.bf16 %v2155
    %v2284 = vunpack.c.l.bf16 %v2156
    %v2285 = vunpack.c.l.bf16 %v2157
    %v2286 = vunpack.c.l.bf16 %v2158
    %v2287 = vunpack.c.l.bf16 %v2159
    %v2288 = vunpack.c.l.bf16 %v2160
    %v2289 = vunpack.c.l.bf16 %v2161
    %v2290 = vunpack.c.l.bf16 %v2162
    %v2291 = vunpack.c.l.bf16 %v2163
    %v2292 = vunpack.c.l.bf16 %v2164
    %v2293 = vunpack.c.l.bf16 %v2165
    %v2294 = vunpack.c.l.bf16 %v2166
    %v2295 = vunpack.c.l.bf16 %v2167
    %v2296 = vunpack.c.l.bf16 %v2168
    %v2297 = vunpack.c.l.bf16 %v2169
    %v2298 = vunpack.c.l.bf16 %v2170
    %v2299 = vunpack.c.l.bf16 %v2171
    %v2300 = vunpack.c.l.bf16 %v2172
    %v2301 = vunpack.c.l.bf16 %v2173
    %v2302 = vunpack.c.l.bf16 %v2174
    %v2303 = vunpack.c.l.bf16 %v2175
    %v2304 = vunpack.c.l.bf16 %v2176
    %v2305 = vunpack.c.l.bf16 %v2177
    %v2306 = vunpack.c.l.bf16 %v2178
    %v2307 = vunpack.c.l.bf16 %v2179
    %v2308 = vunpack.c.l.bf16 %v2180
    %v2309 = vunpack.c.l.bf16 %v2181
    %v2310 = vunpack.c.l.bf16 %v2182
    %v2311 = vunpack.c.l.bf16 %v2183
    %v2312 = vunpack.c.l.bf16 %v2184
    %v2313 = vunpack.c.l.bf16 %v2185
    %v2314 = vunpack.c.l.bf16 %v2186
    %v2315 = vunpack.c.l.bf16 %v2187
    %v2316 = vunpack.c.l.bf16 %v2188
    %v2317 = vunpack.c.l.bf16 %v2189
    %v2318 = vunpack.c.l.bf16 %v2190
    %v2319 = vunpack.c.l.bf16 %v2191
    %v2320 = vunpack.c.l.bf16 %v2192
    %v2321 = vunpack.c.l.bf16 %v2193
    %v2322 = vunpack.c.l.bf16 %v2194
    %v2323 = vunpack.c.l.bf16 %v2195
    %v2324 = vunpack.c.l.bf16 %v2196
    %v2325 = vunpack.c.l.bf16 %v2197
    %v2326 = vunpack.c.l.bf16 %v2198
    %v2327 = vunpack.c.l.bf16 %v2199
    %v2328 = vunpack.c.l.bf16 %v2200
    %v2329 = vunpack.c.l.bf16 %v2201
    %v2330 = vunpack.c.l.bf16 %v2202
    %v2331 = vunpack.c.l.bf16 %v2203
    %v2332 = vunpack.c.l.bf16 %v2204
    %v2333 = vunpack.c.l.bf16 %v2205
    %v2334 = vunpack.c.l.bf16 %v2206
    %v2335 = vunpack.c.l.bf16 %v2207
    %v2336 = vunpack.c.l.bf16 %v2208
    %v2337 = vunpack.c.l.bf16 %v2209
    %v2338 = vunpack.c.l.bf16 %v2210
    %v2339 = vunpack.c.l.bf16 %v2211
    %v2340 = vunpack.c.l.bf16 %v2212
    %v2341 = vunpack.c.l.bf16 %v2213
    %v2342 = vunpack.c.l.bf16 %v2214
    %v2343 = vunpack.c.l.bf16 %v2215
    %v2344 = vunpack.c.l.bf16 %v2216
    %v2345 = vunpack.c.l.bf16 %v2217
    %v2346 = vunpack.c.l.bf16 %v2218
    %v2347 = vunpack.c.l.bf16 %v2219
    %v2348 = vunpack.c.l.bf16 %v2220
    %v2349 = vunpack.c.l.bf16 %v2221
    %v2350 = vunpack.c.l.bf16 %v2222
    %v2351 = vunpack.c.l.bf16 %v2223
    %v2352 = vunpack.c.l.bf16 %v2224
    %v2353 = vunpack.c.l.bf16 %v2225
    %v2354 = vunpack.c.l.bf16 %v2226
    %v2355 = vunpack.c.l.bf16 %v2227
    %v2356 = vunpack.c.l.bf16 %v2228
    %v2357 = vunpack.c.l.bf16 %v2229
    %v2358 = vunpack.c.l.bf16 %v2230
    %v2359 = vunpack.c.l.bf16 %v2231
    %v2360 = vunpack.c.l.bf16 %v2232
    %v2361 = vld [vmem:[%s5] sm:$0xff]
    %v2363 = vlaneseq
    %v2364 = vshrl.u32 %v2363, 7
    %v2365 = vsub.s32 0, %v2364
    %v2366 = vrot.slane %v2361, %v2365
    %v2367 = vlaneseq
    %v2368 = vshrl.u32 %v2367, 7
    %v2369 = vsub.s32 1, %v2368
    %v2370 = vrot.slane %v2361, %v2369
    %v2371 = vlaneseq
    %v2372 = vshrl.u32 %v2371, 7
    %v2373 = vsub.s32 2, %v2372
    %v2374 = vrot.slane %v2361, %v2373
    %v2375 = vlaneseq
    %v2376 = vshrl.u32 %v2375, 7
    %v2377 = vsub.s32 3, %v2376
    %v2378 = vrot.slane %v2361, %v2377
    %v2379 = vlaneseq
    %v2380 = vshrl.u32 %v2379, 7
    %v2381 = vsub.s32 4, %v2380
    %v2382 = vrot.slane %v2361, %v2381
    %v2383 = vlaneseq
    %v2384 = vshrl.u32 %v2383, 7
    %v2385 = vsub.s32 5, %v2384
    %v2386 = vrot.slane %v2361, %v2385
    %v2387 = vlaneseq
    %v2388 = vshrl.u32 %v2387, 7
    %v2389 = vsub.s32 6, %v2388
    %v2390 = vrot.slane %v2361, %v2389
    %v2391 = vlaneseq
    %v2392 = vshrl.u32 %v2391, 7
    %v2393 = vsub.s32 7, %v2392
    %v2394 = vrot.slane %v2361, %v2393
    %v2404 = vsel %vm45, %v2055, 0
    %v2407 = vsel %vm45, %v2056, 0
    %2409 = vmatprep.subr.mxu0 %v2074
    %2410 = vmatpush1.msra.mxu0 %v2073
    %2411 = vmatprep.subr.mxu0 %v2082
    %2412 = vmatpush1.msra.mxu0 %v2081
    %2413 = vmatprep.subr.mxu0 %v2090
    %2414 = vmatpush1.msra.mxu0 %v2089
    %2415 = vmatprep.subr.mxu0 %v2098
    %2416 = vmatpush1.msra.mxu0 %v2097
    %2417 = vmatprep.subr.mxu0 0.0
    %2418 = vmatpush1.msra.mxu0 0.0
    %2419 = vmatprep.subr.mxu0 0.0
    %2420 = vmatpush1.msra.mxu0 0.0
    %2421 = vmatprep.subr.mxu0 0.0
    %2422 = vmatpush1.msra.mxu0 0.0
    %2423 = vmatprep.subr.mxu0 0.0
    %2424 = vmatpush1.msra.mxu0 0.0
    %2425 = vmatprep.subr.mxu0 0.0
    %2426 = vmatpush1.msra.mxu0 0.0
    %2427 = vmatprep.subr.mxu0 0.0
    %2428 = vmatpush1.msra.mxu0 0.0
    %2429 = vmatprep.subr.mxu0 0.0
    %2430 = vmatpush1.msra.mxu0 0.0
    %2431 = vmatprep.subr.mxu0 0.0
    %2432 = vmatpush1.msra.mxu0 0.0
    %2433 = vmatprep.subr.mxu0 0.0
    %2434 = vmatpush1.msra.mxu0 0.0
    %2435 = vmatprep.subr.mxu0 0.0
    %2436 = vmatpush1.msra.mxu0 0.0
    %2437 = vmatprep.subr.mxu0 0.0
    %2438 = vmatpush1.msra.mxu0 0.0
    %2439 = vmatprep.subr.mxu0 0.0
    %2440 = vmatpush1.msra.mxu0 0.0
    %2441 = vmatprep.subr.mxu0 0.0
    %2442 = vmatpush1.msra.mxu0 0.0
    %2443 = vmatprep.subr.mxu0 0.0
    %2444 = vmatpush1.msra.mxu0 0.0
    %2445 = vmatprep.subr.mxu0 0.0
    %2446 = vmatpush1.msra.mxu0 0.0
    %2447 = vmatprep.subr.mxu0 0.0
    %2448 = vmatpush1.msra.mxu0 0.0
    %2449 = vmatprep.subr.mxu0 0.0
    %2450 = vmatpush1.msra.mxu0 0.0
    %2451 = vmatprep.subr.mxu0 0.0
    %2452 = vmatpush1.msra.mxu0 0.0
    %2453 = vmatprep.subr.mxu0 0.0
    %2454 = vmatpush1.msra.mxu0 0.0
    %2455 = vmatprep.subr.mxu0 0.0
    %2456 = vmatpush1.msra.mxu0 0.0
    %2457 = vmatprep.subr.mxu0 0.0
    %2458 = vmatpush1.msra.mxu0 0.0
    %2459 = vmatprep.subr.mxu0 0.0
    %2460 = vmatpush1.msra.mxu0 0.0
    %2461 = vmatprep.subr.mxu0 0.0
    %2462 = vmatpush1.msra.mxu0 0.0
    %2463 = vmatprep.subr.mxu0 0.0
    %2464 = vmatpush1.msra.mxu0 0.0
    %2465 = vmatprep.subr.mxu0 0.0
    %2466 = vmatpush1.msra.mxu0 0.0
    %2467 = vmatprep.subr.mxu0 0.0
    %2468 = vmatpush1.msra.mxu0 0.0
    %2469 = vmatprep.subr.mxu0 0.0
    %2470 = vmatpush1.msra.mxu0 0.0
    %2471 = vmatprep.subr.mxu0 0.0
    %2472 = vmatpush1.msra.mxu0 0.0
    %2473 = vmatprep.mubr.f32.mxu0 0.0
    %2474 = vmatmul.mubr.f32.gmra.mrb[0].mxu0 %v2404
    %v2475 = vpop.f32.mrb[0].mxu0
    %v2476 = vadd.f32 %v2366, %v2475
    %v2477 = vpop.f32.mrb[0].mxu0
    %v2478 = vadd.f32 %v2370, %v2477
    %2479 = vmatprep.mubr.f32.mxu0 0.0
    %2480 = vmatmul.mubr.f32.gmra.mrb[0].mxu0 %v2407
    %v2481 = vpop.f32.mrb[0].mxu0
    %v2482 = vadd.f32 %v2366, %v2481
    %v2483 = vpop.f32.mrb[0].mxu0
    %v2484 = vadd.f32 %v2370, %v2483
    %2485 = vdwg.mxu0
    %2486 = vmatprep.subr.mxu0 %v2076
    %2487 = vmatpush1.msra.mxu0 %v2075
    %2488 = vmatprep.subr.mxu0 %v2084
    %2489 = vmatpush1.msra.mxu0 %v2083
    %2490 = vmatprep.subr.mxu0 %v2092
    %2491 = vmatpush1.msra.mxu0 %v2091
    %2492 = vmatprep.subr.mxu0 %v2100
    %2493 = vmatpush1.msra.mxu0 %v2099
    %2494 = vmatprep.subr.mxu0 0.0
    %2495 = vmatpush1.msra.mxu0 0.0
    %2496 = vmatprep.subr.mxu0 0.0
    %2497 = vmatpush1.msra.mxu0 0.0
    %2498 = vmatprep.subr.mxu0 0.0
    %2499 = vmatpush1.msra.mxu0 0.0
    %2500 = vmatprep.subr.mxu0 0.0
    %2501 = vmatpush1.msra.mxu0 0.0
    %2502 = vmatprep.subr.mxu0 0.0
    %2503 = vmatpush1.msra.mxu0 0.0
    %2504 = vmatprep.subr.mxu0 0.0
    %2505 = vmatpush1.msra.mxu0 0.0
    %2506 = vmatprep.subr.mxu0 0.0
    %2507 = vmatpush1.msra.mxu0 0.0
    %2508 = vmatprep.subr.mxu0 0.0
    %2509 = vmatpush1.msra.mxu0 0.0
    %2510 = vmatprep.subr.mxu0 0.0
    %2511 = vmatpush1.msra.mxu0 0.0
    %2512 = vmatprep.subr.mxu0 0.0
    %2513 = vmatpush1.msra.mxu0 0.0
    %2514 = vmatprep.subr.mxu0 0.0
    %2515 = vmatpush1.msra.mxu0 0.0
    %2516 = vmatprep.subr.mxu0 0.0
    %2517 = vmatpush1.msra.mxu0 0.0
    %2518 = vmatprep.subr.mxu0 0.0
    %2519 = vmatpush1.msra.mxu0 0.0
    %2520 = vmatprep.subr.mxu0 0.0
    %2521 = vmatpush1.msra.mxu0 0.0
    %2522 = vmatprep.subr.mxu0 0.0
    %2523 = vmatpush1.msra.mxu0 0.0
    %2524 = vmatprep.subr.mxu0 0.0
    %2525 = vmatpush1.msra.mxu0 0.0
    %2526 = vmatprep.subr.mxu0 0.0
    %2527 = vmatpush1.msra.mxu0 0.0
    %2528 = vmatprep.subr.mxu0 0.0
    %2529 = vmatpush1.msra.mxu0 0.0
    %2530 = vmatprep.subr.mxu0 0.0
    %2531 = vmatpush1.msra.mxu0 0.0
    %2532 = vmatprep.subr.mxu0 0.0
    %2533 = vmatpush1.msra.mxu0 0.0
    %2534 = vmatprep.subr.mxu0 0.0
    %2535 = vmatpush1.msra.mxu0 0.0
    %2536 = vmatprep.subr.mxu0 0.0
    %2537 = vmatpush1.msra.mxu0 0.0
    %2538 = vmatprep.subr.mxu0 0.0
    %2539 = vmatpush1.msra.mxu0 0.0
    %2540 = vmatprep.subr.mxu0 0.0
    %2541 = vmatpush1.msra.mxu0 0.0
    %2542 = vmatprep.subr.mxu0 0.0
    %2543 = vmatpush1.msra.mxu0 0.0
    %2544 = vmatprep.subr.mxu0 0.0
    %2545 = vmatpush1.msra.mxu0 0.0
    %2546 = vmatprep.subr.mxu0 0.0
    %2547 = vmatpush1.msra.mxu0 0.0
    %2548 = vmatprep.subr.mxu0 0.0
    %2549 = vmatpush1.msra.mxu0 0.0
    %2550 = vmatprep.mubr.f32.mxu0 0.0
    %2551 = vmatmul.mubr.f32.gmra.mrb[0].mxu0 %v2404
    %v2552 = vpop.f32.mrb[0].mxu0
    %v2553 = vadd.f32 %v2374, %v2552
    %v2554 = vpop.f32.mrb[0].mxu0
    %v2555 = vadd.f32 %v2378, %v2554
    %2556 = vmatprep.mubr.f32.mxu0 0.0
    %2557 = vmatmul.mubr.f32.gmra.mrb[0].mxu0 %v2407
    %v2558 = vpop.f32.mrb[0].mxu0
    %v2559 = vadd.f32 %v2374, %v2558
    %v2560 = vpop.f32.mrb[0].mxu0
    %v2561 = vadd.f32 %v2378, %v2560
    %2562 = vdwg.mxu0
    %2563 = vmatprep.subr.mxu0 %v2078
    %2564 = vmatpush1.msra.mxu0 %v2077
    %2565 = vmatprep.subr.mxu0 %v2086
    %2566 = vmatpush1.msra.mxu0 %v2085
    %2567 = vmatprep.subr.mxu0 %v2094
    %2568 = vmatpush1.msra.mxu0 %v2093
    %2569 = vmatprep.subr.mxu0 %v2102
    %2570 = vmatpush1.msra.mxu0 %v2101
    %2571 = vmatprep.subr.mxu0 0.0
    %2572 = vmatpush1.msra.mxu0 0.0
    %2573 = vmatprep.subr.mxu0 0.0
    %2574 = vmatpush1.msra.mxu0 0.0
    %2575 = vmatprep.subr.mxu0 0.0
    %2576 = vmatpush1.msra.mxu0 0.0
    %2577 = vmatprep.subr.mxu0 0.0
    %2578 = vmatpush1.msra.mxu0 0.0
    %2579 = vmatprep.subr.mxu0 0.0
    %2580 = vmatpush1.msra.mxu0 0.0
    %2581 = vmatprep.subr.mxu0 0.0
    %2582 = vmatpush1.msra.mxu0 0.0
    %2583 = vmatprep.subr.mxu0 0.0
    %2584 = vmatpush1.msra.mxu0 0.0
    %2585 = vmatprep.subr.mxu0 0.0
    %2586 = vmatpush1.msra.mxu0 0.0
    %2587 = vmatprep.subr.mxu0 0.0
    %2588 = vmatpush1.msra.mxu0 0.0
    %2589 = vmatprep.subr.mxu0 0.0
    %2590 = vmatpush1.msra.mxu0 0.0
    %2591 = vmatprep.subr.mxu0 0.0
    %2592 = vmatpush1.msra.mxu0 0.0
    %2593 = vmatprep.subr.mxu0 0.0
    %2594 = vmatpush1.msra.mxu0 0.0
    %2595 = vmatprep.subr.mxu0 0.0
    %2596 = vmatpush1.msra.mxu0 0.0
    %2597 = vmatprep.subr.mxu0 0.0
    %2598 = vmatpush1.msra.mxu0 0.0
    %2599 = vmatprep.subr.mxu0 0.0
    %2600 = vmatpush1.msra.mxu0 0.0
    %2601 = vmatprep.subr.mxu0 0.0
    %2602 = vmatpush1.msra.mxu0 0.0
    %2603 = vmatprep.subr.mxu0 0.0
    %2604 = vmatpush1.msra.mxu0 0.0
    %2605 = vmatprep.subr.mxu0 0.0
    %2606 = vmatpush1.msra.mxu0 0.0
    %2607 = vmatprep.subr.mxu0 0.0
    %2608 = vmatpush1.msra.mxu0 0.0
    %2609 = vmatprep.subr.mxu0 0.0
    %2610 = vmatpush1.msra.mxu0 0.0
    %2611 = vmatprep.subr.mxu0 0.0
    %2612 = vmatpush1.msra.mxu0 0.0
    %2613 = vmatprep.subr.mxu0 0.0
    %2614 = vmatpush1.msra.mxu0 0.0
    %2615 = vmatprep.subr.mxu0 0.0
    %2616 = vmatpush1.msra.mxu0 0.0
    %2617 = vmatprep.subr.mxu0 0.0
    %2618 = vmatpush1.msra.mxu0 0.0
    %2619 = vmatprep.subr.mxu0 0.0
    %2620 = vmatpush1.msra.mxu0 0.0
    %2621 = vmatprep.subr.mxu0 0.0
    %2622 = vmatpush1.msra.mxu0 0.0
    %2623 = vmatprep.subr.mxu0 0.0
    %2624 = vmatpush1.msra.mxu0 0.0
    %2625 = vmatprep.subr.mxu0 0.0
    %2626 = vmatpush1.msra.mxu0 0.0
    %2627 = vmatprep.mubr.f32.mxu0 0.0
    %2628 = vmatmul.mubr.f32.gmra.mrb[0].mxu0 %v2404
    %v2629 = vpop.f32.mrb[0].mxu0
    %v2630 = vadd.f32 %v2382, %v2629
    %v2631 = vpop.f32.mrb[0].mxu0
    %v2632 = vadd.f32 %v2386, %v2631
    %2633 = vmatprep.mubr.f32.mxu0 0.0
    %2634 = vmatmul.mubr.f32.gmra.mrb[0].mxu0 %v2407
    %v2635 = vpop.f32.mrb[0].mxu0
    %v2636 = vadd.f32 %v2382, %v2635
    %v2637 = vpop.f32.mrb[0].mxu0
    %v2638 = vadd.f32 %v2386, %v2637
    %2639 = vdwg.mxu0
    %2640 = vmatprep.subr.mxu0 %v2080
    %2641 = vmatpush1.msra.mxu0 %v2079
    %2642 = vmatprep.subr.mxu0 %v2088
    %2643 = vmatpush1.msra.mxu0 %v2087
    %2644 = vmatprep.subr.mxu0 %v2096
    %2645 = vmatpush1.msra.mxu0 %v2095
    %2646 = vmatprep.subr.mxu0 %v2104
    %2647 = vmatpush1.msra.mxu0 %v2103
    %2648 = vmatprep.subr.mxu0 0.0
    %2649 = vmatpush1.msra.mxu0 0.0
    %2650 = vmatprep.subr.mxu0 0.0
    %2651 = vmatpush1.msra.mxu0 0.0
    %2652 = vmatprep.subr.mxu0 0.0
    %2653 = vmatpush1.msra.mxu0 0.0
    %2654 = vmatprep.subr.mxu0 0.0
    %2655 = vmatpush1.msra.mxu0 0.0
    %2656 = vmatprep.subr.mxu0 0.0
    %2657 = vmatpush1.msra.mxu0 0.0
    %2658 = vmatprep.subr.mxu0 0.0
    %2659 = vmatpush1.msra.mxu0 0.0
    %2660 = vmatprep.subr.mxu0 0.0
    %2661 = vmatpush1.msra.mxu0 0.0
    %2662 = vmatprep.subr.mxu0 0.0
    %2663 = vmatpush1.msra.mxu0 0.0
    %2664 = vmatprep.subr.mxu0 0.0
    %2665 = vmatpush1.msra.mxu0 0.0
    %2666 = vmatprep.subr.mxu0 0.0
    %2667 = vmatpush1.msra.mxu0 0.0
    %2668 = vmatprep.subr.mxu0 0.0
    %2669 = vmatpush1.msra.mxu0 0.0
    %2670 = vmatprep.subr.mxu0 0.0
    %2671 = vmatpush1.msra.mxu0 0.0
    %2672 = vmatprep.subr.mxu0 0.0
    %2673 = vmatpush1.msra.mxu0 0.0
    %2674 = vmatprep.subr.mxu0 0.0
    %2675 = vmatpush1.msra.mxu0 0.0
    %2676 = vmatprep.subr.mxu0 0.0
    %2677 = vmatpush1.msra.mxu0 0.0
    %2678 = vmatprep.subr.mxu0 0.0
    %2679 = vmatpush1.msra.mxu0 0.0
    %2680 = vmatprep.subr.mxu0 0.0
    %2681 = vmatpush1.msra.mxu0 0.0
    %2682 = vmatprep.subr.mxu0 0.0
    %2683 = vmatpush1.msra.mxu0 0.0
    %2684 = vmatprep.subr.mxu0 0.0
    %2685 = vmatpush1.msra.mxu0 0.0
    %2686 = vmatprep.subr.mxu0 0.0
    %2687 = vmatpush1.msra.mxu0 0.0
    %2688 = vmatprep.subr.mxu0 0.0
    %2689 = vmatpush1.msra.mxu0 0.0
    %2690 = vmatprep.subr.mxu0 0.0
    %2691 = vmatpush1.msra.mxu0 0.0
    %2692 = vmatprep.subr.mxu0 0.0
    %2693 = vmatpush1.msra.mxu0 0.0
    %2694 = vmatprep.subr.mxu0 0.0
    %2695 = vmatpush1.msra.mxu0 0.0
    %2696 = vmatprep.subr.mxu0 0.0
    %2697 = vmatpush1.msra.mxu0 0.0
    %2698 = vmatprep.subr.mxu0 0.0
    %2699 = vmatpush1.msra.mxu0 0.0
    %2700 = vmatprep.subr.mxu0 0.0
    %2701 = vmatpush1.msra.mxu0 0.0
    %2702 = vmatprep.subr.mxu0 0.0
    %2703 = vmatpush1.msra.mxu0 0.0
    %2704 = vmatprep.mubr.f32.mxu0 0.0
    %2705 = vmatmul.mubr.f32.gmra.mrb[0].mxu0 %v2404
    %v2706 = vpop.f32.mrb[0].mxu0
    %v2707 = vadd.f32 %v2390, %v2706
    %v2708 = vpop.f32.mrb[0].mxu0
    %v2709 = vadd.f32 %v2394, %v2708
    %2710 = vmatprep.mubr.f32.mxu0 0.0
    %2711 = vmatmul.mubr.f32.gmra.mrb[0].mxu0 %v2407
    %v2712 = vpop.f32.mrb[0].mxu0
    %v2713 = vadd.f32 %v2390, %v2712
    %v2714 = vpop.f32.mrb[0].mxu0
    %v2715 = vadd.f32 %v2394, %v2714
    %2716 = vdwg.mxu0
    %v2717 = vmax.f32 %v2476, 0.0
    %v2718 = vmax.f32 %v2478, 0.0
    %v2719 = vmax.f32 %v2553, 0.0
    %v2720 = vmax.f32 %v2555, 0.0
    %v2721 = vmax.f32 %v2630, 0.0
    %v2722 = vmax.f32 %v2632, 0.0
    %v2723 = vmax.f32 %v2707, 0.0
    %v2724 = vmax.f32 %v2709, 0.0
    %v2725 = vmax.f32 %v2482, 0.0
    %v2726 = vmax.f32 %v2484, 0.0
    %v2727 = vmax.f32 %v2559, 0.0
    %v2728 = vmax.f32 %v2561, 0.0
    %v2729 = vmax.f32 %v2636, 0.0
    %v2730 = vmax.f32 %v2638, 0.0
    %v2731 = vmax.f32 %v2713, 0.0
    %v2732 = vmax.f32 %v2715, 0.0
    %v2733 = vlaneseq
    %v2734 = vshrl.u32 %v2733, 7
    %v2735 = vsub.s32 2, %v2734
    %v2736 = vrot.slane %v32, %v2735
    %2737 = vmatprep.subr.mxu0 0.0
    %2738 = vmatpush1.msra.mxu0 %v2233
    %2739 = vmatprep.subr.mxu0 0.0
    %2740 = vmatpush1.msra.mxu0 %v2234
    %2741 = vmatprep.subr.mxu0 0.0
    %2742 = vmatpush1.msra.mxu0 %v2235
    %2743 = vmatprep.subr.mxu0 0.0
    %2744 = vmatpush1.msra.mxu0 %v2236
    %2745 = vmatprep.subr.mxu0 0.0
    %2746 = vmatpush1.msra.mxu0 %v2237
    %2747 = vmatprep.subr.mxu0 0.0
    %2748 = vmatpush1.msra.mxu0 %v2238
    %2749 = vmatprep.subr.mxu0 0.0
    %2750 = vmatpush1.msra.mxu0 %v2239
    %2751 = vmatprep.subr.mxu0 0.0
    %2752 = vmatpush1.msra.mxu0 %v2240
    %2753 = vmatprep.subr.mxu0 0.0
    %2754 = vmatpush1.msra.mxu0 %v2241
    %2755 = vmatprep.subr.mxu0 0.0
    %2756 = vmatpush1.msra.mxu0 %v2242
    %2757 = vmatprep.subr.mxu0 0.0
    %2758 = vmatpush1.msra.mxu0 %v2243
    %2759 = vmatprep.subr.mxu0 0.0
    %2760 = vmatpush1.msra.mxu0 %v2244
    %2761 = vmatprep.subr.mxu0 0.0
    %2762 = vmatpush1.msra.mxu0 %v2245
    %2763 = vmatprep.subr.mxu0 0.0
    %2764 = vmatpush1.msra.mxu0 %v2246
    %2765 = vmatprep.subr.mxu0 0.0
    %2766 = vmatpush1.msra.mxu0 %v2247
    %2767 = vmatprep.subr.mxu0 0.0
    %2768 = vmatpush1.msra.mxu0 %v2248
    %2769 = vmatprep.subr.mxu0 0.0
    %2770 = vmatpush1.msra.mxu0 %v2249
    %2771 = vmatprep.subr.mxu0 0.0
    %2772 = vmatpush1.msra.mxu0 %v2250
    %2773 = vmatprep.subr.mxu0 0.0
    %2774 = vmatpush1.msra.mxu0 %v2251
    %2775 = vmatprep.subr.mxu0 0.0
    %2776 = vmatpush1.msra.mxu0 %v2252
    %2777 = vmatprep.subr.mxu0 0.0
    %2778 = vmatpush1.msra.mxu0 %v2253
    %2779 = vmatprep.subr.mxu0 0.0
    %2780 = vmatpush1.msra.mxu0 %v2254
    %2781 = vmatprep.subr.mxu0 0.0
    %2782 = vmatpush1.msra.mxu0 %v2255
    %2783 = vmatprep.subr.mxu0 0.0
    %2784 = vmatpush1.msra.mxu0 %v2256
    %2785 = vmatprep.subr.mxu0 0.0
    %2786 = vmatpush1.msra.mxu0 %v2257
    %2787 = vmatprep.subr.mxu0 0.0
    %2788 = vmatpush1.msra.mxu0 %v2258
    %2789 = vmatprep.subr.mxu0 0.0
    %2790 = vmatpush1.msra.mxu0 %v2259
    %2791 = vmatprep.subr.mxu0 0.0
    %2792 = vmatpush1.msra.mxu0 %v2260
    %2793 = vmatprep.subr.mxu0 0.0
    %2794 = vmatpush1.msra.mxu0 %v2261
    %2795 = vmatprep.subr.mxu0 0.0
    %2796 = vmatpush1.msra.mxu0 %v2262
    %2797 = vmatprep.subr.mxu0 0.0
    %2798 = vmatpush1.msra.mxu0 %v2263
    %2799 = vmatprep.subr.mxu0 0.0
    %2800 = vmatpush1.msra.mxu0 %v2264
    %2801 = vmatprep.mubr.f32.mxu0 %v2718
    %2802 = vmatmul.mubr.f32.gmra.mrb[0].mxu0 %v2717
    %v2803 = vpop.f32.mrb[0].mxu0
    %v2804 = vadd.f32 %v2736, %v2803
    %v2805 = vpop.f32.mrb[0].mxu0
    %2806 = vmatprep.mubr.f32.mxu0 %v2726
    %2807 = vmatmul.mubr.f32.gmra.mrb[0].mxu0 %v2725
    %v2808 = vpop.f32.mrb[0].mxu0
    %v2809 = vadd.f32 %v2736, %v2808
    %v2810 = vpop.f32.mrb[0].mxu0
    %2811 = vdwg.mxu0
    %2812 = vmatprep.subr.mxu0 0.0
    %2813 = vmatpush1.msra.mxu0 %v2265
    %2814 = vmatprep.subr.mxu0 0.0
    %2815 = vmatpush1.msra.mxu0 %v2266
    %2816 = vmatprep.subr.mxu0 0.0
    %2817 = vmatpush1.msra.mxu0 %v2267
    %2818 = vmatprep.subr.mxu0 0.0
    %2819 = vmatpush1.msra.mxu0 %v2268
    %2820 = vmatprep.subr.mxu0 0.0
    %2821 = vmatpush1.msra.mxu0 %v2269
    %2822 = vmatprep.subr.mxu0 0.0
    %2823 = vmatpush1.msra.mxu0 %v2270
    %2824 = vmatprep.subr.mxu0 0.0
    %2825 = vmatpush1.msra.mxu0 %v2271
    %2826 = vmatprep.subr.mxu0 0.0
    %2827 = vmatpush1.msra.mxu0 %v2272
    %2828 = vmatprep.subr.mxu0 0.0
    %2829 = vmatpush1.msra.mxu0 %v2273
    %2830 = vmatprep.subr.mxu0 0.0
    %2831 = vmatpush1.msra.mxu0 %v2274
    %2832 = vmatprep.subr.mxu0 0.0
    %2833 = vmatpush1.msra.mxu0 %v2275
    %2834 = vmatprep.subr.mxu0 0.0
    %2835 = vmatpush1.msra.mxu0 %v2276
    %2836 = vmatprep.subr.mxu0 0.0
    %2837 = vmatpush1.msra.mxu0 %v2277
    %2838 = vmatprep.subr.mxu0 0.0
    %2839 = vmatpush1.msra.mxu0 %v2278
    %2840 = vmatprep.subr.mxu0 0.0
    %2841 = vmatpush1.msra.mxu0 %v2279
    %2842 = vmatprep.subr.mxu0 0.0
    %2843 = vmatpush1.msra.mxu0 %v2280
    %2844 = vmatprep.subr.mxu0 0.0
    %2845 = vmatpush1.msra.mxu0 %v2281
    %2846 = vmatprep.subr.mxu0 0.0
    %2847 = vmatpush1.msra.mxu0 %v2282
    %2848 = vmatprep.subr.mxu0 0.0
    %2849 = vmatpush1.msra.mxu0 %v2283
    %2850 = vmatprep.subr.mxu0 0.0
    %2851 = vmatpush1.msra.mxu0 %v2284
    %2852 = vmatprep.subr.mxu0 0.0
    %2853 = vmatpush1.msra.mxu0 %v2285
    %2854 = vmatprep.subr.mxu0 0.0
    %2855 = vmatpush1.msra.mxu0 %v2286
    %2856 = vmatprep.subr.mxu0 0.0
    %2857 = vmatpush1.msra.mxu0 %v2287
    %2858 = vmatprep.subr.mxu0 0.0
    %2859 = vmatpush1.msra.mxu0 %v2288
    %2860 = vmatprep.subr.mxu0 0.0
    %2861 = vmatpush1.msra.mxu0 %v2289
    %2862 = vmatprep.subr.mxu0 0.0
    %2863 = vmatpush1.msra.mxu0 %v2290
    %2864 = vmatprep.subr.mxu0 0.0
    %2865 = vmatpush1.msra.mxu0 %v2291
    %2866 = vmatprep.subr.mxu0 0.0
    %2867 = vmatpush1.msra.mxu0 %v2292
    %2868 = vmatprep.subr.mxu0 0.0
    %2869 = vmatpush1.msra.mxu0 %v2293
    %2870 = vmatprep.subr.mxu0 0.0
    %2871 = vmatpush1.msra.mxu0 %v2294
    %2872 = vmatprep.subr.mxu0 0.0
    %2873 = vmatpush1.msra.mxu0 %v2295
    %2874 = vmatprep.subr.mxu0 0.0
    %2875 = vmatpush1.msra.mxu0 %v2296
    %2876 = vmatprep.mubr.f32.mxu0 %v2720
    %2877 = vmatmul.mubr.f32.gmra.mrb[0].mxu0 %v2719
    %v2878 = vpop.f32.mrb[0].mxu0
    %v2879 = vadd.f32 %v2804, %v2878
    %v2880 = vpop.f32.mrb[0].mxu0
    %2881 = vmatprep.mubr.f32.mxu0 %v2728
    %2882 = vmatmul.mubr.f32.gmra.mrb[0].mxu0 %v2727
    %v2883 = vpop.f32.mrb[0].mxu0
    %v2884 = vadd.f32 %v2809, %v2883
    %v2885 = vpop.f32.mrb[0].mxu0
    %2886 = vdwg.mxu0
    %2887 = vmatprep.subr.mxu0 0.0
    %2888 = vmatpush1.msra.mxu0 %v2297
    %2889 = vmatprep.subr.mxu0 0.0
    %2890 = vmatpush1.msra.mxu0 %v2298
    %2891 = vmatprep.subr.mxu0 0.0
    %2892 = vmatpush1.msra.mxu0 %v2299
    %2893 = vmatprep.subr.mxu0 0.0
    %2894 = vmatpush1.msra.mxu0 %v2300
    %2895 = vmatprep.subr.mxu0 0.0
    %2896 = vmatpush1.msra.mxu0 %v2301
    %2897 = vmatprep.subr.mxu0 0.0
    %2898 = vmatpush1.msra.mxu0 %v2302
    %2899 = vmatprep.subr.mxu0 0.0
    %2900 = vmatpush1.msra.mxu0 %v2303
    %2901 = vmatprep.subr.mxu0 0.0
    %2902 = vmatpush1.msra.mxu0 %v2304
    %2903 = vmatprep.subr.mxu0 0.0
    %2904 = vmatpush1.msra.mxu0 %v2305
    %2905 = vmatprep.subr.mxu0 0.0
    %2906 = vmatpush1.msra.mxu0 %v2306
    %2907 = vmatprep.subr.mxu0 0.0
    %2908 = vmatpush1.msra.mxu0 %v2307
    %2909 = vmatprep.subr.mxu0 0.0
    %2910 = vmatpush1.msra.mxu0 %v2308
    %2911 = vmatprep.subr.mxu0 0.0
    %2912 = vmatpush1.msra.mxu0 %v2309
    %2913 = vmatprep.subr.mxu0 0.0
    %2914 = vmatpush1.msra.mxu0 %v2310
    %2915 = vmatprep.subr.mxu0 0.0
    %2916 = vmatpush1.msra.mxu0 %v2311
    %2917 = vmatprep.subr.mxu0 0.0
    %2918 = vmatpush1.msra.mxu0 %v2312
    %2919 = vmatprep.subr.mxu0 0.0
    %2920 = vmatpush1.msra.mxu0 %v2313
    %2921 = vmatprep.subr.mxu0 0.0
    %2922 = vmatpush1.msra.mxu0 %v2314
    %2923 = vmatprep.subr.mxu0 0.0
    %2924 = vmatpush1.msra.mxu0 %v2315
    %2925 = vmatprep.subr.mxu0 0.0
    %2926 = vmatpush1.msra.mxu0 %v2316
    %2927 = vmatprep.subr.mxu0 0.0
    %2928 = vmatpush1.msra.mxu0 %v2317
    %2929 = vmatprep.subr.mxu0 0.0
    %2930 = vmatpush1.msra.mxu0 %v2318
    %2931 = vmatprep.subr.mxu0 0.0
    %2932 = vmatpush1.msra.mxu0 %v2319
    %2933 = vmatprep.subr.mxu0 0.0
    %2934 = vmatpush1.msra.mxu0 %v2320
    %2935 = vmatprep.subr.mxu0 0.0
    %2936 = vmatpush1.msra.mxu0 %v2321
    %2937 = vmatprep.subr.mxu0 0.0
    %2938 = vmatpush1.msra.mxu0 %v2322
    %2939 = vmatprep.subr.mxu0 0.0
    %2940 = vmatpush1.msra.mxu0 %v2323
    %2941 = vmatprep.subr.mxu0 0.0
    %2942 = vmatpush1.msra.mxu0 %v2324
    %2943 = vmatprep.subr.mxu0 0.0
    %2944 = vmatpush1.msra.mxu0 %v2325
    %2945 = vmatprep.subr.mxu0 0.0
    %2946 = vmatpush1.msra.mxu0 %v2326
    %2947 = vmatprep.subr.mxu0 0.0
    %2948 = vmatpush1.msra.mxu0 %v2327
    %2949 = vmatprep.subr.mxu0 0.0
    %2950 = vmatpush1.msra.mxu0 %v2328
    %2951 = vmatprep.mubr.f32.mxu0 %v2722
    %2952 = vmatmul.mubr.f32.gmra.mrb[0].mxu0 %v2721
    %v2953 = vpop.f32.mrb[0].mxu0
    %v2954 = vadd.f32 %v2879, %v2953
    %v2955 = vpop.f32.mrb[0].mxu0
    %2956 = vmatprep.mubr.f32.mxu0 %v2730
    %2957 = vmatmul.mubr.f32.gmra.mrb[0].mxu0 %v2729
    %v2958 = vpop.f32.mrb[0].mxu0
    %v2959 = vadd.f32 %v2884, %v2958
    %v2960 = vpop.f32.mrb[0].mxu0
    %2961 = vdwg.mxu0
    %2962 = vmatprep.subr.mxu0 0.0
    %2963 = vmatpush1.msra.mxu0 %v2329
    %2964 = vmatprep.subr.mxu0 0.0
    %2965 = vmatpush1.msra.mxu0 %v2330
    %2966 = vmatprep.subr.mxu0 0.0
    %2967 = vmatpush1.msra.mxu0 %v2331
    %2968 = vmatprep.subr.mxu0 0.0
    %2969 = vmatpush1.msra.mxu0 %v2332
    %2970 = vmatprep.subr.mxu0 0.0
    %2971 = vmatpush1.msra.mxu0 %v2333
    %2972 = vmatprep.subr.mxu0 0.0
    %2973 = vmatpush1.msra.mxu0 %v2334
    %2974 = vmatprep.subr.mxu0 0.0
    %2975 = vmatpush1.msra.mxu0 %v2335
    %2976 = vmatprep.subr.mxu0 0.0
    %2977 = vmatpush1.msra.mxu0 %v2336
    %2978 = vmatprep.subr.mxu0 0.0
    %2979 = vmatpush1.msra.mxu0 %v2337
    %2980 = vmatprep.subr.mxu0 0.0
    %2981 = vmatpush1.msra.mxu0 %v2338
    %2982 = vmatprep.subr.mxu0 0.0
    %2983 = vmatpush1.msra.mxu0 %v2339
    %2984 = vmatprep.subr.mxu0 0.0
    %2985 = vmatpush1.msra.mxu0 %v2340
    %2986 = vmatprep.subr.mxu0 0.0
    %2987 = vmatpush1.msra.mxu0 %v2341
    %2988 = vmatprep.subr.mxu0 0.0
    %2989 = vmatpush1.msra.mxu0 %v2342
    %2990 = vmatprep.subr.mxu0 0.0
    %2991 = vmatpush1.msra.mxu0 %v2343
    %2992 = vmatprep.subr.mxu0 0.0
    %2993 = vmatpush1.msra.mxu0 %v2344
    %2994 = vmatprep.subr.mxu0 0.0
    %2995 = vmatpush1.msra.mxu0 %v2345
    %2996 = vmatprep.subr.mxu0 0.0
    %2997 = vmatpush1.msra.mxu0 %v2346
    %2998 = vmatprep.subr.mxu0 0.0
    %2999 = vmatpush1.msra.mxu0 %v2347
    %3000 = vmatprep.subr.mxu0 0.0
    %3001 = vmatpush1.msra.mxu0 %v2348
    %3002 = vmatprep.subr.mxu0 0.0
    %3003 = vmatpush1.msra.mxu0 %v2349
    %3004 = vmatprep.subr.mxu0 0.0
    %3005 = vmatpush1.msra.mxu0 %v2350
    %3006 = vmatprep.subr.mxu0 0.0
    %3007 = vmatpush1.msra.mxu0 %v2351
    %3008 = vmatprep.subr.mxu0 0.0
    %3009 = vmatpush1.msra.mxu0 %v2352
    %3010 = vmatprep.subr.mxu0 0.0
    %3011 = vmatpush1.msra.mxu0 %v2353
    %3012 = vmatprep.subr.mxu0 0.0
    %3013 = vmatpush1.msra.mxu0 %v2354
    %3014 = vmatprep.subr.mxu0 0.0
    %3015 = vmatpush1.msra.mxu0 %v2355
    %3016 = vmatprep.subr.mxu0 0.0
    %3017 = vmatpush1.msra.mxu0 %v2356
    %3018 = vmatprep.subr.mxu0 0.0
    %3019 = vmatpush1.msra.mxu0 %v2357
    %3020 = vmatprep.subr.mxu0 0.0
    %3021 = vmatpush1.msra.mxu0 %v2358
    %3022 = vmatprep.subr.mxu0 0.0
    %3023 = vmatpush1.msra.mxu0 %v2359
    %3024 = vmatprep.subr.mxu0 0.0
    %3025 = vmatpush1.msra.mxu0 %v2360
    %3026 = vmatprep.mubr.f32.mxu0 %v2724
    %3027 = vmatmul.mubr.f32.gmra.mrb[0].mxu0 %v2723
    %v3028 = vpop.f32.mrb[0].mxu0
    %v3029 = vadd.f32 %v2954, %v3028
    %v3030 = vpop.f32.mrb[0].mxu0
    %3031 = vmatprep.mubr.f32.mxu0 %v2732
    %3032 = vmatmul.mubr.f32.gmra.mrb[0].mxu0 %v2731
    %v3033 = vpop.f32.mrb[0].mxu0
    %v3034 = vadd.f32 %v2959, %v3033
    %v3035 = vpop.f32.mrb[0].mxu0
    %3036 = vdwg.mxu0
    %v3037 = vadd.f32 %v2055, %v3029
    %v3038 = vadd.f32 %v2056, %v3034
    %v3039 = vsel %vm45, %v3037, 0.0
    %3040 = vadd.xlane.f32.xlu0 %v3039
    %v3041 = vpop.xlane.xlu0 %3040
    %v3042 = vsel %vm45, %v3038, 0.0
    %3043 = vadd.xlane.f32.xlu0 %v3042
    %v3044 = vpop.xlane.xlu0 %3043
    %v3045 = vmul.f32 %v3041, %v967
    %v3046 = vmul.f32 %v3044, %v967
    %v3047 = vsub.f32 %v3037, %v3045
    %v3048 = vsub.f32 %v3038, %v3046
    %v3049 = vmul.f32 %v3047, %v3047
    %v3050 = vmul.f32 %v3048, %v3048
    %v3051 = vsel %vm45, %v3049, 0.0
    %3052 = vadd.xlane.f32.xlu0 %v3051
    %v3053 = vpop.xlane.xlu0 %3052
    %v3054 = vsel %vm45, %v3050, 0.0
    %3055 = vadd.xlane.f32.xlu0 %v3054
    %v3056 = vpop.xlane.xlu0 %3055
    %v3057 = vmul.f32 %v3053, %v967
    %v3058 = vmul.f32 %v3056, %v967
    %v3059 = vadd.f32 %v3057, 1e-05
    %v3060 = vadd.f32 %v3058, 1e-05
    %v3061 = vrsqrt.pop %v3059
    %v3062 = vrsqrt.pop %v3060
    %v3063 = vmul.f32 %v3047, %v3061
    %v3064 = vmul.f32 %v3048, %v3062
    %v3065 = vlaneseq
    %v3066 = vshrl.u32 %v3065, 7
    %v3067 = vsub.s32 7, %v3066
    %v3068 = vrot.slane %v32, %v3067
    %v3069 = vmul.f32 %v3063, %v3068
    %v3070 = vmul.f32 %v3064, %v3068
    %v3071 = vlaneseq
    %v3072 = vshrl.u32 %v3071, 7
    %v3073 = vsub.s32 0, %v3072
    %v3074 = vrot.slane %v33, %v3073
    %v3075 = vadd.f32 %v3069, %v3074
    %v3076 = vadd.f32 %v3070, %v3074
    %3077 = vst.msk [vmem:[#allocation2] sm:$0xff] %vm45, %v3075
    %3078 = vst.msk [vmem:[#allocation2 + $0x8] sm:$0xff] %vm45, %v3076
    // Predicated region
    $region34: #{tpu_custom_call.1} parent=1 // pred_check
      _
    $region35: #{tpu_custom_call.1} parent=1 // pred_check_branch
      %3080 = sbr.rel (0) target = $region37
    $region36: #{tpu_custom_call.1} parent=1 // pred_region
      %s3082 = ssub.s32 256, 256
      %3083 = vsyncadd [#allocation3], %s3082
      %s3084 = sshll.u32 [#allocation2], 4
      %s3085 = int_to_ptr.vmem [resolvable:$true] %s3084
      %3090 = dma.vmem_to_hbm [thread:$0]  %s3085, 256, %s8, [#allocation3], 128, 128, 8
    $region37: #{tpu_custom_call.1} parent=1 // pred_fallthru
      _
    // Predicated region
    $region38: #{tpu_custom_call.1} parent=1 // pred_check
      _
    $region39: #{tpu_custom_call.1} parent=1 // pred_check_branch
      %3092 = sbr.rel (0) target = $region41
    $region40: #{tpu_custom_call.1} parent=1 // pred_region
      %3093 = dma.done [#allocation3], 256
    $region41: #{tpu_custom_call.1} parent=1 // pred_fallthru
      _
    %3094 = vsyncpa [#allocation3], 1

</llo_original>
